<compile_context>
chip_gen: v7x
topology: tpu7x:2x2x1
jax: 0.10.0
libtpu: 0.0.40
codegen_flags: <defaults>
</compile_context>

<pallas_src>
import jax
import jax.numpy as jnp
from jax.experimental import pallas as pl
from jax.experimental.pallas import tpu as pltpu


def _round_up(x, m):
    return (x + m - 1) // m * m


def _pad_gates(w, H, Hp):
    """Pad the trailing 4*H axis to 4*Hp, padding EACH gate block (i,f,g,o) separately."""
    lead = w.shape[:-1]
    w4 = w.reshape(*lead, 4, H)
    w4 = jnp.pad(w4, [(0, 0)] * len(lead) + [(0, 0), (0, Hp - H)])
    return w4.reshape(*lead, 4 * Hp)


def _char_decoder_kernel(x_ref, wih_ref, whh_ref, b_ref, wout_ref, bout_ref,
                         h0_ref, c0_ref,
                         s_ref, hn_ref, cn_ref,
                         g_sc, h_sc):
    L, Bp, Ep = x_ref.shape
    Hp = h0_ref.shape[-1]

    # (1) Hoisted, batched input projection for ALL timesteps: one (L*Bp, Ep) @ (Ep, 4Hp) matmul.
    x_all = x_ref[...].reshape(L * Bp, Ep)
    g_sc[...] = (jnp.dot(x_all, wih_ref[...], preferred_element_type=jnp.float32)
                 + b_ref[...]).reshape(L, Bp, 4 * Hp)

    # (2) Serial LSTM recurrence, fully unrolled (L is static -> all slice indices are static).
    h = h0_ref[0].astype(jnp.float32)
    c = c0_ref[0].astype(jnp.float32)
    for t in range(L):
        gates = g_sc[t] + jnp.dot(h, whh_ref[...], preferred_element_type=jnp.float32)
        i_g = jax.nn.sigmoid(gates[:, 0 * Hp:1 * Hp])   # lane-aligned gate slices (Hp = 128k)
        f_g = jax.nn.sigmoid(gates[:, 1 * Hp:2 * Hp])
        g_g = jnp.tanh(gates[:, 2 * Hp:3 * Hp])
        o_g = jax.nn.sigmoid(gates[:, 3 * Hp:4 * Hp])
        c = f_g * c + i_g * g_g
        h = o_g * jnp.tanh(c)
        h_sc[t] = h

    hn_ref[0] = h.astype(hn_ref.dtype)
    cn_ref[0] = c.astype(cn_ref.dtype)

    # (3) Deferred, batched vocab projection for ALL timesteps (lane-dense Vp output).
    hs = h_sc[...].reshape(L * Bp, Hp)
    s = jnp.dot(hs, wout_ref[...], preferred_element_type=jnp.float32) + bout_ref[...]
    s_ref[...] = s.reshape(L, Bp, s_ref.shape[-1]).astype(s_ref.dtype)


@jax.jit
def char_decoder_forward(input_ids, emb, w_ih, w_hh, bias, w_out, b_out, h0, c0):
    """Equivalent of CharDecoder.forward(input, dec_hidden=(h0, c0)).

    Returns (scores (L,B,V), (h_n (1,B,H), c_n (1,B,H))).
    """
    # Glue: embedding lookup (padding_idx row of `emb` is already zeroed).
    x = emb[input_ids].astype(jnp.float32)          # (L, B, E)
    L, B, E = x.shape
    H = h0.shape[-1]
    V = w_out.shape[-1]

    # Lane/sublane-friendly padding (all pads are zeros -> padded entries stay inert).
    Bp = _round_up(B, 8)
    Ep = _round_up(E, 128)
    Hp = _round_up(H, 128)
    Vp = _round_up(V, 128)

    x_p = jnp.pad(x, ((0, 0), (0, Bp - B), (0, Ep - E)))
    w_ih_p = _pad_gates(jnp.pad(w_ih, ((0, Ep - E), (0, 0))), H, Hp)     # (Ep, 4Hp)
    w_hh_p = _pad_gates(jnp.pad(w_hh, ((0, Hp - H), (0, 0))), H, Hp)     # (Hp, 4Hp)
    bias_p = _pad_gates(bias, H, Hp)                                     # (1, 4Hp)
    w_out_p = jnp.pad(w_out, ((0, Hp - H), (0, Vp - V)))                 # (Hp, Vp)
    b_out_p = jnp.pad(b_out, ((0, 0), (0, Vp - V)))                      # (1, Vp)
    h0_p = jnp.pad(h0, ((0, 0), (0, Bp - B), (0, Hp - H)))
    c0_p = jnp.pad(c0, ((0, 0), (0, Bp - B), (0, Hp - H)))

    def full(shape):
        return pl.BlockSpec(shape, lambda i, _s=shape: (0,) * len(_s))

    s_p, hn_p, cn_p = pl.pallas_call(
        _char_decoder_kernel,
        out_shape=(
            jax.ShapeDtypeStruct((L, Bp, Vp), jnp.float32),
            jax.ShapeDtypeStruct((1, Bp, Hp), jnp.float32),
            jax.ShapeDtypeStruct((1, Bp, Hp), jnp.float32),
        ),
        grid=(1,),                                   # single invocation; recurrence is in-kernel
        in_specs=[
            full((L, Bp, Ep)),                       # x (all timesteps)
            full((Ep, 4 * Hp)),                      # W_ih
            full((Hp, 4 * Hp)),                      # W_hh
            full((1, 4 * Hp)),                       # bias
            full((Hp, Vp)),                          # W_out
            full((1, Vp)),                           # b_out
            full((1, Bp, Hp)),                       # h0
            full((1, Bp, Hp)),                       # c0
        ],
        out_specs=(
            full((L, Bp, Vp)),                       # scores
            full((1, Bp, Hp)),                       # h_n
            full((1, Bp, Hp)),                       # c_n
        ),
        scratch_shapes=[
            pltpu.VMEM((L, Bp, 4 * Hp), jnp.float32),    # precomputed input gates
            pltpu.VMEM((L, Bp, Hp), jnp.float32),        # all hidden states
        ],
        compiler_params=pltpu.CompilerParams(
            dimension_semantics=("arbitrary",),
        ),
    )(x_p, w_ih_p, w_hh_p, bias_p, w_out_p, b_out_p, h0_p, c0_p)

    return s_p[:, :B, :V], (hn_p[:, :B, :H], cn_p[:, :B, :H])


def _reference_forward(input_ids, emb, w_ih, w_hh, bias, w_out, b_out, h0, c0):
    """Pure-JAX reference (matches torch.nn.LSTM + nn.Linear semantics)."""
    x = emb[input_ids]

    def step(carry, x_t):
        h, c = carry
        gates = x_t @ w_ih + h @ w_hh + bias[0]
        i_g, f_g, g_g, o_g = jnp.split(gates, 4, axis=-1)
        i_g = jax.nn.sigmoid(i_g)
        f_g = jax.nn.sigmoid(f_g)
        g_g = jnp.tanh(g_g)
        o_g = jax.nn.sigmoid(o_g)
        c = f_g * c + i_g * g_g
        h = o_g * jnp.tanh(c)
        return (h, c), h @ w_out + b_out[0]

    (h_n, c_n), s = jax.lax.scan(step, (h0[0], c0[0]), x)
    return s, (h_n[None], c_n[None])


if __name__ == "__main__":
    # Small, deterministic configuration.
    L, B = 8, 4                 # sequence length, batch
    E = 16                      # char_embedding_size
    H = 32                      # hidden_size
    V = 30                      # char vocab size (len(target_vocab.char2id))
    CHAR_PAD = 0                # target_vocab.char_pad

    key = jax.random.PRNGKey(0)
    ks = jax.random.split(key, 10)
    bound = 1.0 / jnp.sqrt(H)

    # Parameters (deterministic synthetic init, PyTorch-like uniform ranges).
    emb = jax.random.normal(ks[0], (V, E), jnp.float32) * 0.1
    emb = emb.at[CHAR_PAD].set(0.0)                                  # padding_idx=char_pad
    w_ih = jax.random.uniform(ks[1], (E, 4 * H), jnp.float32, -bound, bound)
    w_hh = jax.random.uniform(ks[2], (H, 4 * H), jnp.float32, -bound, bound)
    bias = (jax.random.uniform(ks[3], (1, 4 * H), jnp.float32, -bound, bound)
            + jax.random.uniform(ks[4], (1, 4 * H), jnp.float32, -bound, bound))  # b_ih + b_hh
    w_out = jax.random.uniform(ks[5], (H, V), jnp.float32, -bound, bound)
    b_out = jax.random.uniform(ks[6], (1, V), jnp.float32, -bound, bound)

    # Inputs: (L, B) character ids, and dec_hidden = (h_0, c_0) of shape (1, B, H).
    input_ids = jax.random.randint(ks[7], (L, B), 0, V, jnp.int32)
    h0 = jax.random.normal(ks[8], (1, B, H), jnp.float32)
    c0 = jax.random.normal(ks[9], (1, B, H), jnp.float32)

    s, (h_n, c_n) = char_decoder_forward(input_ids, emb, w_ih, w_hh, bias,
                                         w_out, b_out, h0, c0)
    jax.block_until_ready((s, h_n, c_n))

    # Correctness check against the pure-JAX reference.
    s_ref, (h_ref, c_ref) = _reference_forward(input_ids, emb, w_ih, w_hh, bias,
                                               w_out, b_out, h0, c0)
    assert s.shape == (L, B, V) and h_n.shape == (1, B, H) and c_n.shape == (1, B, H)
    assert jnp.allclose(s, s_ref, atol=1e-4, rtol=1e-4)
    assert jnp.allclose(h_n, h_ref, atol=1e-4, rtol=1e-4)
    assert jnp.allclose(c_n, c_ref, atol=1e-4, rtol=1e-4)

    # TODO(synk): decode_greedy / train_forward (host-side loop over Python strings and
    # CrossEntropyLoss reduction) and the optional w_hidden_word_char init-state bmm are
    # left as host/JAX glue; only forward() is kernelized.
    print("KERNEL_OK")
</pallas_src>

<mosaic_0001>
module attributes {stable_mosaic.version = 11 : i64} {
  func.func @_char_decoder_kernel(%arg0: i32, %arg1: memref<8x8x128xf32, #tpu.memory_space<vmem>>, %arg2: memref<128x512xf32, #tpu.memory_space<vmem>>, %arg3: memref<128x512xf32, #tpu.memory_space<vmem>>, %arg4: memref<1x512xf32, #tpu.memory_space<vmem>>, %arg5: memref<128x128xf32, #tpu.memory_space<vmem>>, %arg6: memref<1x128xf32, #tpu.memory_space<vmem>>, %arg7: memref<1x8x128xf32, #tpu.memory_space<vmem>>, %arg8: memref<1x8x128xf32, #tpu.memory_space<vmem>>, %arg9: memref<8x8x128xf32, #tpu.memory_space<vmem>>, %arg10: memref<1x8x128xf32, #tpu.memory_space<vmem>>, %arg11: memref<1x8x128xf32, #tpu.memory_space<vmem>>, %arg12: memref<8x8x512xf32, #tpu.memory_space<vmem>>, %arg13: memref<8x8x128xf32, #tpu.memory_space<vmem>>) attributes {dimension_semantics = [#tpu.dimension_semantics<arbitrary>], iteration_bounds = array<i64: 1>, scalar_prefetch = 0 : i64, scratch_operands = 2 : i64, tpu.core_type = #tpu.core_type<tc>, window_params = [{pipeline_mode = #tpu.pipeline_mode<synchronous>, transform_indices = @transform_0, window_bounds = array<i64: 8, 8, 128>}, {pipeline_mode = #tpu.pipeline_mode<synchronous>, transform_indices = @transform_1, window_bounds = array<i64: 128, 512>}, {pipeline_mode = #tpu.pipeline_mode<synchronous>, transform_indices = @transform_2, window_bounds = array<i64: 128, 512>}, {pipeline_mode = #tpu.pipeline_mode<synchronous>, transform_indices = @transform_3, window_bounds = array<i64: 1, 512>}, {pipeline_mode = #tpu.pipeline_mode<synchronous>, transform_indices = @transform_4, window_bounds = array<i64: 128, 128>}, {pipeline_mode = #tpu.pipeline_mode<synchronous>, transform_indices = @transform_5, window_bounds = array<i64: 1, 128>}, {pipeline_mode = #tpu.pipeline_mode<synchronous>, transform_indices = @transform_6, window_bounds = array<i64: 1, 8, 128>}, {pipeline_mode = #tpu.pipeline_mode<synchronous>, transform_indices = @transform_7, window_bounds = array<i64: 1, 8, 128>}, {pipeline_mode = #tpu.pipeline_mode<synchronous>, transform_indices = @transform_8, window_bounds = array<i64: 8, 8, 128>}, {pipeline_mode = #tpu.pipeline_mode<synchronous>, transform_indices = @transform_9, window_bounds = array<i64: 1, 8, 128>}, {pipeline_mode = #tpu.pipeline_mode<synchronous>, transform_indices = @transform_10, window_bounds = array<i64: 1, 8, 128>}]} {
    %c0 = arith.constant 0 : index
    %c0_0 = arith.constant 0 : index
    %c0_1 = arith.constant 0 : index
    %0 = vector.load %arg1[%c0, %c0_0, %c0_1] : memref<8x8x128xf32, #tpu.memory_space<vmem>>, vector<8x8x128xf32>
    %1 = vector.shape_cast %0 : vector<8x8x128xf32> to vector<64x128xf32>
    %c0_2 = arith.constant 0 : index
    %c0_3 = arith.constant 0 : index
    %2 = vector.load %arg2[%c0_2, %c0_3] : memref<128x512xf32, #tpu.memory_space<vmem>>, vector<128x512xf32>
    %cst = arith.constant dense<0.000000e+00> : vector<64x512xf32>
    %3 = tpu.matmul %1, %2, %cst {dimension_numbers = #tpu.dot_dimension_numbers<[1], [0], [0], [1], [0, 0, 1, 1], [], []>} : vector<64x128xf32>, vector<128x512xf32>, vector<64x512xf32> -> vector<64x512xf32>
    %c0_4 = arith.constant 0 : index
    %c0_5 = arith.constant 0 : index
    %4 = vector.load %arg4[%c0_4, %c0_5] : memref<1x512xf32, #tpu.memory_space<vmem>>, vector<1x512xf32>
    %5 = vector.broadcast %4 : vector<1x512xf32> to vector<64x512xf32>
    %6 = arith.addf %3, %5 : vector<64x512xf32>
    %7 = vector.shape_cast %6 : vector<64x512xf32> to vector<8x8x512xf32>
    %c0_6 = arith.constant 0 : index
    %c0_7 = arith.constant 0 : index
    %c0_8 = arith.constant 0 : index
    %8 = vector.load %arg12[%c0_6, %c0_7, %c0_8] : memref<8x8x512xf32, #tpu.memory_space<vmem>>, vector<8x8x512xf32>
    tpu.vector_store %arg12[%c0_6, %c0_7, %c0_8], %7 {strides = array<i32>} : memref<8x8x512xf32, #tpu.memory_space<vmem>>, vector<8x8x512xf32>,
    %c0_9 = arith.constant 0 : index
    %c0_10 = arith.constant 0 : index
    %c0_11 = arith.constant 0 : index
    %9 = vector.load %arg7[%c0_9, %c0_10, %c0_11] : memref<1x8x128xf32, #tpu.memory_space<vmem>>, vector<1x8x128xf32>
    %10 = vector.shape_cast %9 : vector<1x8x128xf32> to vector<8x128xf32>
    %c0_12 = arith.constant 0 : index
    %c0_13 = arith.constant 0 : index
    %c0_14 = arith.constant 0 : index
    %11 = vector.load %arg8[%c0_12, %c0_13, %c0_14] : memref<1x8x128xf32, #tpu.memory_space<vmem>>, vector<1x8x128xf32>
    %12 = vector.shape_cast %11 : vector<1x8x128xf32> to vector<8x128xf32>
    %c0_15 = arith.constant 0 : index
    %c0_16 = arith.constant 0 : index
    %c0_17 = arith.constant 0 : index
    %13 = vector.load %arg12[%c0_15, %c0_16, %c0_17] : memref<8x8x512xf32, #tpu.memory_space<vmem>>, vector<1x8x512xf32>
    %14 = vector.shape_cast %13 : vector<1x8x512xf32> to vector<8x512xf32>
    %c0_18 = arith.constant 0 : index
    %c0_19 = arith.constant 0 : index
    %15 = vector.load %arg3[%c0_18, %c0_19] : memref<128x512xf32, #tpu.memory_space<vmem>>, vector<128x512xf32>
    %cst_20 = arith.constant dense<0.000000e+00> : vector<8x512xf32>
    %16 = tpu.matmul %10, %15, %cst_20 {dimension_numbers = #tpu.dot_dimension_numbers<[1], [0], [0], [1], [0, 0, 1, 1], [], []>} : vector<8x128xf32>, vector<128x512xf32>, vector<8x512xf32> -> vector<8x512xf32>
    %17 = arith.addf %14, %16 : vector<8x512xf32>
    %18 = vector.extract_strided_slice %17 {offsets = [0, 0], sizes = [8, 128], strides = [1, 1]} : vector<8x512xf32> to vector<8x128xf32>
    %19 = arith.negf %18 : vector<8x128xf32>
    %20 = math.exp %19 : vector<8x128xf32>
    %cst_21 = arith.constant 1.000000e+00 : f32
    %21 = vector.broadcast %cst_21 : f32 to vector<8x128xf32>
    %22 = arith.addf %21, %20 : vector<8x128xf32>
    %23 = arith.divf %21, %22 : vector<8x128xf32>
    %24 = vector.extract_strided_slice %17 {offsets = [0, 128], sizes = [8, 128], strides = [1, 1]} : vector<8x512xf32> to vector<8x128xf32>
    %25 = arith.negf %24 : vector<8x128xf32>
    %26 = math.exp %25 : vector<8x128xf32>
    %cst_22 = arith.constant 1.000000e+00 : f32
    %27 = vector.broadcast %cst_22 : f32 to vector<8x128xf32>
    %28 = arith.addf %27, %26 : vector<8x128xf32>
    %29 = arith.divf %27, %28 : vector<8x128xf32>
    %30 = vector.extract_strided_slice %17 {offsets = [0, 256], sizes = [8, 128], strides = [1, 1]} : vector<8x512xf32> to vector<8x128xf32>
    %31 = math.tanh %30 : vector<8x128xf32>
    %32 = vector.extract_strided_slice %17 {offsets = [0, 384], sizes = [8, 128], strides = [1, 1]} : vector<8x512xf32> to vector<8x128xf32>
    %33 = arith.negf %32 : vector<8x128xf32>
    %34 = math.exp %33 : vector<8x128xf32>
    %cst_23 = arith.constant 1.000000e+00 : f32
    %35 = vector.broadcast %cst_23 : f32 to vector<8x128xf32>
    %36 = arith.addf %35, %34 : vector<8x128xf32>
    %37 = arith.divf %35, %36 : vector<8x128xf32>
    %38 = arith.mulf %29, %12 : vector<8x128xf32>
    %39 = arith.mulf %23, %31 : vector<8x128xf32>
    %40 = arith.addf %38, %39 : vector<8x128xf32>
    %41 = math.tanh %40 : vector<8x128xf32>
    %42 = arith.mulf %37, %41 : vector<8x128xf32>
    %c0_24 = arith.constant 0 : index
    %c0_25 = arith.constant 0 : index
    %c0_26 = arith.constant 0 : index
    %43 = vector.load %arg13[%c0_24, %c0_25, %c0_26] : memref<8x8x128xf32, #tpu.memory_space<vmem>>, vector<1x8x128xf32>
    %44 = vector.shape_cast %43 : vector<1x8x128xf32> to vector<8x128xf32>
    %45 = vector.shape_cast %42 : vector<8x128xf32> to vector<1x8x128xf32>
    tpu.vector_store %arg13[%c0_24, %c0_25, %c0_26], %45 {strides = array<i32>} : memref<8x8x128xf32, #tpu.memory_space<vmem>>, vector<1x8x128xf32>,
    %c1 = arith.constant 1 : index
    %c0_27 = arith.constant 0 : index
    %c0_28 = arith.constant 0 : index
    %46 = vector.load %arg12[%c1, %c0_27, %c0_28] : memref<8x8x512xf32, #tpu.memory_space<vmem>>, vector<1x8x512xf32>
    %47 = vector.shape_cast %46 : vector<1x8x512xf32> to vector<8x512xf32>
    %c0_29 = arith.constant 0 : index
    %c0_30 = arith.constant 0 : index
    %48 = vector.load %arg3[%c0_29, %c0_30] : memref<128x512xf32, #tpu.memory_space<vmem>>, vector<128x512xf32>
    %cst_31 = arith.constant dense<0.000000e+00> : vector<8x512xf32>
    %49 = tpu.matmul %42, %48, %cst_31 {dimension_numbers = #tpu.dot_dimension_numbers<[1], [0], [0], [1], [0, 0, 1, 1], [], []>} : vector<8x128xf32>, vector<128x512xf32>, vector<8x512xf32> -> vector<8x512xf32>
    %50 = arith.addf %47, %49 : vector<8x512xf32>
    %51 = vector.extract_strided_slice %50 {offsets = [0, 0], sizes = [8, 128], strides = [1, 1]} : vector<8x512xf32> to vector<8x128xf32>
    %52 = arith.negf %51 : vector<8x128xf32>
    %53 = math.exp %52 : vector<8x128xf32>
    %cst_32 = arith.constant 1.000000e+00 : f32
    %54 = vector.broadcast %cst_32 : f32 to vector<8x128xf32>
    %55 = arith.addf %54, %53 : vector<8x128xf32>
    %56 = arith.divf %54, %55 : vector<8x128xf32>
    %57 = vector.extract_strided_slice %50 {offsets = [0, 128], sizes = [8, 128], strides = [1, 1]} : vector<8x512xf32> to vector<8x128xf32>
    %58 = arith.negf %57 : vector<8x128xf32>
    %59 = math.exp %58 : vector<8x128xf32>
    %cst_33 = arith.constant 1.000000e+00 : f32
    %60 = vector.broadcast %cst_33 : f32 to vector<8x128xf32>
    %61 = arith.addf %60, %59 : vector<8x128xf32>
    %62 = arith.divf %60, %61 : vector<8x128xf32>
    %63 = vector.extract_strided_slice %50 {offsets = [0, 256], sizes = [8, 128], strides = [1, 1]} : vector<8x512xf32> to vector<8x128xf32>
    %64 = math.tanh %63 : vector<8x128xf32>
    %65 = vector.extract_strided_slice %50 {offsets = [0, 384], sizes = [8, 128], strides = [1, 1]} : vector<8x512xf32> to vector<8x128xf32>
    %66 = arith.negf %65 : vector<8x128xf32>
    %67 = math.exp %66 : vector<8x128xf32>
    %cst_34 = arith.constant 1.000000e+00 : f32
    %68 = vector.broadcast %cst_34 : f32 to vector<8x128xf32>
    %69 = arith.addf %68, %67 : vector<8x128xf32>
    %70 = arith.divf %68, %69 : vector<8x128xf32>
    %71 = arith.mulf %62, %40 : vector<8x128xf32>
    %72 = arith.mulf %56, %64 : vector<8x128xf32>
    %73 = arith.addf %71, %72 : vector<8x128xf32>
    %74 = math.tanh %73 : vector<8x128xf32>
    %75 = arith.mulf %70, %74 : vector<8x128xf32>
    %c1_35 = arith.constant 1 : index
    %c0_36 = arith.constant 0 : index
    %c0_37 = arith.constant 0 : index
    %76 = vector.load %arg13[%c1_35, %c0_36, %c0_37] : memref<8x8x128xf32, #tpu.memory_space<vmem>>, vector<1x8x128xf32>
    %77 = vector.shape_cast %76 : vector<1x8x128xf32> to vector<8x128xf32>
    %78 = vector.shape_cast %75 : vector<8x128xf32> to vector<1x8x128xf32>
    tpu.vector_store %arg13[%c1_35, %c0_36, %c0_37], %78 {strides = array<i32>} : memref<8x8x128xf32, #tpu.memory_space<vmem>>, vector<1x8x128xf32>,
    %c2 = arith.constant 2 : index
    %c0_38 = arith.constant 0 : index
    %c0_39 = arith.constant 0 : index
    %79 = vector.load %arg12[%c2, %c0_38, %c0_39] : memref<8x8x512xf32, #tpu.memory_space<vmem>>, vector<1x8x512xf32>
    %80 = vector.shape_cast %79 : vector<1x8x512xf32> to vector<8x512xf32>
    %c0_40 = arith.constant 0 : index
    %c0_41 = arith.constant 0 : index
    %81 = vector.load %arg3[%c0_40, %c0_41] : memref<128x512xf32, #tpu.memory_space<vmem>>, vector<128x512xf32>
    %cst_42 = arith.constant dense<0.000000e+00> : vector<8x512xf32>
    %82 = tpu.matmul %75, %81, %cst_42 {dimension_numbers = #tpu.dot_dimension_numbers<[1], [0], [0], [1], [0, 0, 1, 1], [], []>} : vector<8x128xf32>, vector<128x512xf32>, vector<8x512xf32> -> vector<8x512xf32>
    %83 = arith.addf %80, %82 : vector<8x512xf32>
    %84 = vector.extract_strided_slice %83 {offsets = [0, 0], sizes = [8, 128], strides = [1, 1]} : vector<8x512xf32> to vector<8x128xf32>
    %85 = arith.negf %84 : vector<8x128xf32>
    %86 = math.exp %85 : vector<8x128xf32>
    %cst_43 = arith.constant 1.000000e+00 : f32
    %87 = vector.broadcast %cst_43 : f32 to vector<8x128xf32>
    %88 = arith.addf %87, %86 : vector<8x128xf32>
    %89 = arith.divf %87, %88 : vector<8x128xf32>
    %90 = vector.extract_strided_slice %83 {offsets = [0, 128], sizes = [8, 128], strides = [1, 1]} : vector<8x512xf32> to vector<8x128xf32>
    %91 = arith.negf %90 : vector<8x128xf32>
    %92 = math.exp %91 : vector<8x128xf32>
    %cst_44 = arith.constant 1.000000e+00 : f32
    %93 = vector.broadcast %cst_44 : f32 to vector<8x128xf32>
    %94 = arith.addf %93, %92 : vector<8x128xf32>
    %95 = arith.divf %93, %94 : vector<8x128xf32>
    %96 = vector.extract_strided_slice %83 {offsets = [0, 256], sizes = [8, 128], strides = [1, 1]} : vector<8x512xf32> to vector<8x128xf32>
    %97 = math.tanh %96 : vector<8x128xf32>
    %98 = vector.extract_strided_slice %83 {offsets = [0, 384], sizes = [8, 128], strides = [1, 1]} : vector<8x512xf32> to vector<8x128xf32>
    %99 = arith.negf %98 : vector<8x128xf32>
    %100 = math.exp %99 : vector<8x128xf32>
    %cst_45 = arith.constant 1.000000e+00 : f32
    %101 = vector.broadcast %cst_45 : f32 to vector<8x128xf32>
    %102 = arith.addf %101, %100 : vector<8x128xf32>
    %103 = arith.divf %101, %102 : vector<8x128xf32>
    %104 = arith.mulf %95, %73 : vector<8x128xf32>
    %105 = arith.mulf %89, %97 : vector<8x128xf32>
    %106 = arith.addf %104, %105 : vector<8x128xf32>
    %107 = math.tanh %106 : vector<8x128xf32>
    %108 = arith.mulf %103, %107 : vector<8x128xf32>
    %c2_46 = arith.constant 2 : index
    %c0_47 = arith.constant 0 : index
    %c0_48 = arith.constant 0 : index
    %109 = vector.load %arg13[%c2_46, %c0_47, %c0_48] : memref<8x8x128xf32, #tpu.memory_space<vmem>>, vector<1x8x128xf32>
    %110 = vector.shape_cast %109 : vector<1x8x128xf32> to vector<8x128xf32>
    %111 = vector.shape_cast %108 : vector<8x128xf32> to vector<1x8x128xf32>
    tpu.vector_store %arg13[%c2_46, %c0_47, %c0_48], %111 {strides = array<i32>} : memref<8x8x128xf32, #tpu.memory_space<vmem>>, vector<1x8x128xf32>,
    %c3 = arith.constant 3 : index
    %c0_49 = arith.constant 0 : index
    %c0_50 = arith.constant 0 : index
    %112 = vector.load %arg12[%c3, %c0_49, %c0_50] : memref<8x8x512xf32, #tpu.memory_space<vmem>>, vector<1x8x512xf32>
    %113 = vector.shape_cast %112 : vector<1x8x512xf32> to vector<8x512xf32>
    %c0_51 = arith.constant 0 : index
    %c0_52 = arith.constant 0 : index
    %114 = vector.load %arg3[%c0_51, %c0_52] : memref<128x512xf32, #tpu.memory_space<vmem>>, vector<128x512xf32>
    %cst_53 = arith.constant dense<0.000000e+00> : vector<8x512xf32>
    %115 = tpu.matmul %108, %114, %cst_53 {dimension_numbers = #tpu.dot_dimension_numbers<[1], [0], [0], [1], [0, 0, 1, 1], [], []>} : vector<8x128xf32>, vector<128x512xf32>, vector<8x512xf32> -> vector<8x512xf32>
    %116 = arith.addf %113, %115 : vector<8x512xf32>
    %117 = vector.extract_strided_slice %116 {offsets = [0, 0], sizes = [8, 128], strides = [1, 1]} : vector<8x512xf32> to vector<8x128xf32>
    %118 = arith.negf %117 : vector<8x128xf32>
    %119 = math.exp %118 : vector<8x128xf32>
    %cst_54 = arith.constant 1.000000e+00 : f32
    %120 = vector.broadcast %cst_54 : f32 to vector<8x128xf32>
    %121 = arith.addf %120, %119 : vector<8x128xf32>
    %122 = arith.divf %120, %121 : vector<8x128xf32>
    %123 = vector.extract_strided_slice %116 {offsets = [0, 128], sizes = [8, 128], strides = [1, 1]} : vector<8x512xf32> to vector<8x128xf32>
    %124 = arith.negf %123 : vector<8x128xf32>
    %125 = math.exp %124 : vector<8x128xf32>
    %cst_55 = arith.constant 1.000000e+00 : f32
    %126 = vector.broadcast %cst_55 : f32 to vector<8x128xf32>
    %127 = arith.addf %126, %125 : vector<8x128xf32>
    %128 = arith.divf %126, %127 : vector<8x128xf32>
    %129 = vector.extract_strided_slice %116 {offsets = [0, 256], sizes = [8, 128], strides = [1, 1]} : vector<8x512xf32> to vector<8x128xf32>
    %130 = math.tanh %129 : vector<8x128xf32>
    %131 = vector.extract_strided_slice %116 {offsets = [0, 384], sizes = [8, 128], strides = [1, 1]} : vector<8x512xf32> to vector<8x128xf32>
    %132 = arith.negf %131 : vector<8x128xf32>
    %133 = math.exp %132 : vector<8x128xf32>
    %cst_56 = arith.constant 1.000000e+00 : f32
    %134 = vector.broadcast %cst_56 : f32 to vector<8x128xf32>
    %135 = arith.addf %134, %133 : vector<8x128xf32>
    %136 = arith.divf %134, %135 : vector<8x128xf32>
    %137 = arith.mulf %128, %106 : vector<8x128xf32>
    %138 = arith.mulf %122, %130 : vector<8x128xf32>
    %139 = arith.addf %137, %138 : vector<8x128xf32>
    %140 = math.tanh %139 : vector<8x128xf32>
    %141 = arith.mulf %136, %140 : vector<8x128xf32>
    %c3_57 = arith.constant 3 : index
    %c0_58 = arith.constant 0 : index
    %c0_59 = arith.constant 0 : index
    %142 = vector.load %arg13[%c3_57, %c0_58, %c0_59] : memref<8x8x128xf32, #tpu.memory_space<vmem>>, vector<1x8x128xf32>
    %143 = vector.shape_cast %142 : vector<1x8x128xf32> to vector<8x128xf32>
    %144 = vector.shape_cast %141 : vector<8x128xf32> to vector<1x8x128xf32>
    tpu.vector_store %arg13[%c3_57, %c0_58, %c0_59], %144 {strides = array<i32>} : memref<8x8x128xf32, #tpu.memory_space<vmem>>, vector<1x8x128xf32>,
    %c4 = arith.constant 4 : index
    %c0_60 = arith.constant 0 : index
    %c0_61 = arith.constant 0 : index
    %145 = vector.load %arg12[%c4, %c0_60, %c0_61] : memref<8x8x512xf32, #tpu.memory_space<vmem>>, vector<1x8x512xf32>
    %146 = vector.shape_cast %145 : vector<1x8x512xf32> to vector<8x512xf32>
    %c0_62 = arith.constant 0 : index
    %c0_63 = arith.constant 0 : index
    %147 = vector.load %arg3[%c0_62, %c0_63] : memref<128x512xf32, #tpu.memory_space<vmem>>, vector<128x512xf32>
    %cst_64 = arith.constant dense<0.000000e+00> : vector<8x512xf32>
    %148 = tpu.matmul %141, %147, %cst_64 {dimension_numbers = #tpu.dot_dimension_numbers<[1], [0], [0], [1], [0, 0, 1, 1], [], []>} : vector<8x128xf32>, vector<128x512xf32>, vector<8x512xf32> -> vector<8x512xf32>
    %149 = arith.addf %146, %148 : vector<8x512xf32>
    %150 = vector.extract_strided_slice %149 {offsets = [0, 0], sizes = [8, 128], strides = [1, 1]} : vector<8x512xf32> to vector<8x128xf32>
    %151 = arith.negf %150 : vector<8x128xf32>
    %152 = math.exp %151 : vector<8x128xf32>
    %cst_65 = arith.constant 1.000000e+00 : f32
    %153 = vector.broadcast %cst_65 : f32 to vector<8x128xf32>
    %154 = arith.addf %153, %152 : vector<8x128xf32>
    %155 = arith.divf %153, %154 : vector<8x128xf32>
    %156 = vector.extract_strided_slice %149 {offsets = [0, 128], sizes = [8, 128], strides = [1, 1]} : vector<8x512xf32> to vector<8x128xf32>
    %157 = arith.negf %156 : vector<8x128xf32>
    %158 = math.exp %157 : vector<8x128xf32>
    %cst_66 = arith.constant 1.000000e+00 : f32
    %159 = vector.broadcast %cst_66 : f32 to vector<8x128xf32>
    %160 = arith.addf %159, %158 : vector<8x128xf32>
    %161 = arith.divf %159, %160 : vector<8x128xf32>
    %162 = vector.extract_strided_slice %149 {offsets = [0, 256], sizes = [8, 128], strides = [1, 1]} : vector<8x512xf32> to vector<8x128xf32>
    %163 = math.tanh %162 : vector<8x128xf32>
    %164 = vector.extract_strided_slice %149 {offsets = [0, 384], sizes = [8, 128], strides = [1, 1]} : vector<8x512xf32> to vector<8x128xf32>
    %165 = arith.negf %164 : vector<8x128xf32>
    %166 = math.exp %165 : vector<8x128xf32>
    %cst_67 = arith.constant 1.000000e+00 : f32
    %167 = vector.broadcast %cst_67 : f32 to vector<8x128xf32>
    %168 = arith.addf %167, %166 : vector<8x128xf32>
    %169 = arith.divf %167, %168 : vector<8x128xf32>
    %170 = arith.mulf %161, %139 : vector<8x128xf32>
    %171 = arith.mulf %155, %163 : vector<8x128xf32>
    %172 = arith.addf %170, %171 : vector<8x128xf32>
    %173 = math.tanh %172 : vector<8x128xf32>
    %174 = arith.mulf %169, %173 : vector<8x128xf32>
    %c4_68 = arith.constant 4 : index
    %c0_69 = arith.constant 0 : index
    %c0_70 = arith.constant 0 : index
    %175 = vector.load %arg13[%c4_68, %c0_69, %c0_70] : memref<8x8x128xf32, #tpu.memory_space<vmem>>, vector<1x8x128xf32>
    %176 = vector.shape_cast %175 : vector<1x8x128xf32> to vector<8x128xf32>
    %177 = vector.shape_cast %174 : vector<8x128xf32> to vector<1x8x128xf32>
    tpu.vector_store %arg13[%c4_68, %c0_69, %c0_70], %177 {strides = array<i32>} : memref<8x8x128xf32, #tpu.memory_space<vmem>>, vector<1x8x128xf32>,
    %c5 = arith.constant 5 : index
    %c0_71 = arith.constant 0 : index
    %c0_72 = arith.constant 0 : index
    %178 = vector.load %arg12[%c5, %c0_71, %c0_72] : memref<8x8x512xf32, #tpu.memory_space<vmem>>, vector<1x8x512xf32>
    %179 = vector.shape_cast %178 : vector<1x8x512xf32> to vector<8x512xf32>
    %c0_73 = arith.constant 0 : index
    %c0_74 = arith.constant 0 : index
    %180 = vector.load %arg3[%c0_73, %c0_74] : memref<128x512xf32, #tpu.memory_space<vmem>>, vector<128x512xf32>
    %cst_75 = arith.constant dense<0.000000e+00> : vector<8x512xf32>
    %181 = tpu.matmul %174, %180, %cst_75 {dimension_numbers = #tpu.dot_dimension_numbers<[1], [0], [0], [1], [0, 0, 1, 1], [], []>} : vector<8x128xf32>, vector<128x512xf32>, vector<8x512xf32> -> vector<8x512xf32>
    %182 = arith.addf %179, %181 : vector<8x512xf32>
    %183 = vector.extract_strided_slice %182 {offsets = [0, 0], sizes = [8, 128], strides = [1, 1]} : vector<8x512xf32> to vector<8x128xf32>
    %184 = arith.negf %183 : vector<8x128xf32>
    %185 = math.exp %184 : vector<8x128xf32>
    %cst_76 = arith.constant 1.000000e+00 : f32
    %186 = vector.broadcast %cst_76 : f32 to vector<8x128xf32>
    %187 = arith.addf %186, %185 : vector<8x128xf32>
    %188 = arith.divf %186, %187 : vector<8x128xf32>
    %189 = vector.extract_strided_slice %182 {offsets = [0, 128], sizes = [8, 128], strides = [1, 1]} : vector<8x512xf32> to vector<8x128xf32>
    %190 = arith.negf %189 : vector<8x128xf32>
    %191 = math.exp %190 : vector<8x128xf32>
    %cst_77 = arith.constant 1.000000e+00 : f32
    %192 = vector.broadcast %cst_77 : f32 to vector<8x128xf32>
    %193 = arith.addf %192, %191 : vector<8x128xf32>
    %194 = arith.divf %192, %193 : vector<8x128xf32>
    %195 = vector.extract_strided_slice %182 {offsets = [0, 256], sizes = [8, 128], strides = [1, 1]} : vector<8x512xf32> to vector<8x128xf32>
    %196 = math.tanh %195 : vector<8x128xf32>
    %197 = vector.extract_strided_slice %182 {offsets = [0, 384], sizes = [8, 128], strides = [1, 1]} : vector<8x512xf32> to vector<8x128xf32>
    %198 = arith.negf %197 : vector<8x128xf32>
    %199 = math.exp %198 : vector<8x128xf32>
    %cst_78 = arith.constant 1.000000e+00 : f32
    %200 = vector.broadcast %cst_78 : f32 to vector<8x128xf32>
    %201 = arith.addf %200, %199 : vector<8x128xf32>
    %202 = arith.divf %200, %201 : vector<8x128xf32>
    %203 = arith.mulf %194, %172 : vector<8x128xf32>
    %204 = arith.mulf %188, %196 : vector<8x128xf32>
    %205 = arith.addf %203, %204 : vector<8x128xf32>
    %206 = math.tanh %205 : vector<8x128xf32>
    %207 = arith.mulf %202, %206 : vector<8x128xf32>
    %c5_79 = arith.constant 5 : index
    %c0_80 = arith.constant 0 : index
    %c0_81 = arith.constant 0 : index
    %208 = vector.load %arg13[%c5_79, %c0_80, %c0_81] : memref<8x8x128xf32, #tpu.memory_space<vmem>>, vector<1x8x128xf32>
    %209 = vector.shape_cast %208 : vector<1x8x128xf32> to vector<8x128xf32>
    %210 = vector.shape_cast %207 : vector<8x128xf32> to vector<1x8x128xf32>
    tpu.vector_store %arg13[%c5_79, %c0_80, %c0_81], %210 {strides = array<i32>} : memref<8x8x128xf32, #tpu.memory_space<vmem>>, vector<1x8x128xf32>,
    %c6 = arith.constant 6 : index
    %c0_82 = arith.constant 0 : index
    %c0_83 = arith.constant 0 : index
    %211 = vector.load %arg12[%c6, %c0_82, %c0_83] : memref<8x8x512xf32, #tpu.memory_space<vmem>>, vector<1x8x512xf32>
    %212 = vector.shape_cast %211 : vector<1x8x512xf32> to vector<8x512xf32>
    %c0_84 = arith.constant 0 : index
    %c0_85 = arith.constant 0 : index
    %213 = vector.load %arg3[%c0_84, %c0_85] : memref<128x512xf32, #tpu.memory_space<vmem>>, vector<128x512xf32>
    %cst_86 = arith.constant dense<0.000000e+00> : vector<8x512xf32>
    %214 = tpu.matmul %207, %213, %cst_86 {dimension_numbers = #tpu.dot_dimension_numbers<[1], [0], [0], [1], [0, 0, 1, 1], [], []>} : vector<8x128xf32>, vector<128x512xf32>, vector<8x512xf32> -> vector<8x512xf32>
    %215 = arith.addf %212, %214 : vector<8x512xf32>
    %216 = vector.extract_strided_slice %215 {offsets = [0, 0], sizes = [8, 128], strides = [1, 1]} : vector<8x512xf32> to vector<8x128xf32>
    %217 = arith.negf %216 : vector<8x128xf32>
    %218 = math.exp %217 : vector<8x128xf32>
    %cst_87 = arith.constant 1.000000e+00 : f32
    %219 = vector.broadcast %cst_87 : f32 to vector<8x128xf32>
    %220 = arith.addf %219, %218 : vector<8x128xf32>
    %221 = arith.divf %219, %220 : vector<8x128xf32>
    %222 = vector.extract_strided_slice %215 {offsets = [0, 128], sizes = [8, 128], strides = [1, 1]} : vector<8x512xf32> to vector<8x128xf32>
    %223 = arith.negf %222 : vector<8x128xf32>
    %224 = math.exp %223 : vector<8x128xf32>
    %cst_88 = arith.constant 1.000000e+00 : f32
    %225 = vector.broadcast %cst_88 : f32 to vector<8x128xf32>
    %226 = arith.addf %225, %224 : vector<8x128xf32>
    %227 = arith.divf %225, %226 : vector<8x128xf32>
    %228 = vector.extract_strided_slice %215 {offsets = [0, 256], sizes = [8, 128], strides = [1, 1]} : vector<8x512xf32> to vector<8x128xf32>
    %229 = math.tanh %228 : vector<8x128xf32>
    %230 = vector.extract_strided_slice %215 {offsets = [0, 384], sizes = [8, 128], strides = [1, 1]} : vector<8x512xf32> to vector<8x128xf32>
    %231 = arith.negf %230 : vector<8x128xf32>
    %232 = math.exp %231 : vector<8x128xf32>
    %cst_89 = arith.constant 1.000000e+00 : f32
    %233 = vector.broadcast %cst_89 : f32 to vector<8x128xf32>
    %234 = arith.addf %233, %232 : vector<8x128xf32>
    %235 = arith.divf %233, %234 : vector<8x128xf32>
    %236 = arith.mulf %227, %205 : vector<8x128xf32>
    %237 = arith.mulf %221, %229 : vector<8x128xf32>
    %238 = arith.addf %236, %237 : vector<8x128xf32>
    %239 = math.tanh %238 : vector<8x128xf32>
    %240 = arith.mulf %235, %239 : vector<8x128xf32>
    %c6_90 = arith.constant 6 : index
    %c0_91 = arith.constant 0 : index
    %c0_92 = arith.constant 0 : index
    %241 = vector.load %arg13[%c6_90, %c0_91, %c0_92] : memref<8x8x128xf32, #tpu.memory_space<vmem>>, vector<1x8x128xf32>
    %242 = vector.shape_cast %241 : vector<1x8x128xf32> to vector<8x128xf32>
    %243 = vector.shape_cast %240 : vector<8x128xf32> to vector<1x8x128xf32>
    tpu.vector_store %arg13[%c6_90, %c0_91, %c0_92], %243 {strides = array<i32>} : memref<8x8x128xf32, #tpu.memory_space<vmem>>, vector<1x8x128xf32>,
    %c7 = arith.constant 7 : index
    %c0_93 = arith.constant 0 : index
    %c0_94 = arith.constant 0 : index
    %244 = vector.load %arg12[%c7, %c0_93, %c0_94] : memref<8x8x512xf32, #tpu.memory_space<vmem>>, vector<1x8x512xf32>
    %245 = vector.shape_cast %244 : vector<1x8x512xf32> to vector<8x512xf32>
    %c0_95 = arith.constant 0 : index
    %c0_96 = arith.constant 0 : index
    %246 = vector.load %arg3[%c0_95, %c0_96] : memref<128x512xf32, #tpu.memory_space<vmem>>, vector<128x512xf32>
    %cst_97 = arith.constant dense<0.000000e+00> : vector<8x512xf32>
    %247 = tpu.matmul %240, %246, %cst_97 {dimension_numbers = #tpu.dot_dimension_numbers<[1], [0], [0], [1], [0, 0, 1, 1], [], []>} : vector<8x128xf32>, vector<128x512xf32>, vector<8x512xf32> -> vector<8x512xf32>
    %248 = arith.addf %245, %247 : vector<8x512xf32>
    %249 = vector.extract_strided_slice %248 {offsets = [0, 0], sizes = [8, 128], strides = [1, 1]} : vector<8x512xf32> to vector<8x128xf32>
    %250 = arith.negf %249 : vector<8x128xf32>
    %251 = math.exp %250 : vector<8x128xf32>
    %cst_98 = arith.constant 1.000000e+00 : f32
    %252 = vector.broadcast %cst_98 : f32 to vector<8x128xf32>
    %253 = arith.addf %252, %251 : vector<8x128xf32>
    %254 = arith.divf %252, %253 : vector<8x128xf32>
    %255 = vector.extract_strided_slice %248 {offsets = [0, 128], sizes = [8, 128], strides = [1, 1]} : vector<8x512xf32> to vector<8x128xf32>
    %256 = arith.negf %255 : vector<8x128xf32>
    %257 = math.exp %256 : vector<8x128xf32>
    %cst_99 = arith.constant 1.000000e+00 : f32
    %258 = vector.broadcast %cst_99 : f32 to vector<8x128xf32>
    %259 = arith.addf %258, %257 : vector<8x128xf32>
    %260 = arith.divf %258, %259 : vector<8x128xf32>
    %261 = vector.extract_strided_slice %248 {offsets = [0, 256], sizes = [8, 128], strides = [1, 1]} : vector<8x512xf32> to vector<8x128xf32>
    %262 = math.tanh %261 : vector<8x128xf32>
    %263 = vector.extract_strided_slice %248 {offsets = [0, 384], sizes = [8, 128], strides = [1, 1]} : vector<8x512xf32> to vector<8x128xf32>
    %264 = arith.negf %263 : vector<8x128xf32>
    %265 = math.exp %264 : vector<8x128xf32>
    %cst_100 = arith.constant 1.000000e+00 : f32
    %266 = vector.broadcast %cst_100 : f32 to vector<8x128xf32>
    %267 = arith.addf %266, %265 : vector<8x128xf32>
    %268 = arith.divf %266, %267 : vector<8x128xf32>
    %269 = arith.mulf %260, %238 : vector<8x128xf32>
    %270 = arith.mulf %254, %262 : vector<8x128xf32>
    %271 = arith.addf %269, %270 : vector<8x128xf32>
    %272 = math.tanh %271 : vector<8x128xf32>
    %273 = arith.mulf %268, %272 : vector<8x128xf32>
    %c7_101 = arith.constant 7 : index
    %c0_102 = arith.constant 0 : index
    %c0_103 = arith.constant 0 : index
    %274 = vector.load %arg13[%c7_101, %c0_102, %c0_103] : memref<8x8x128xf32, #tpu.memory_space<vmem>>, vector<1x8x128xf32>
    %275 = vector.shape_cast %274 : vector<1x8x128xf32> to vector<8x128xf32>
    %276 = vector.shape_cast %273 : vector<8x128xf32> to vector<1x8x128xf32>
    tpu.vector_store %arg13[%c7_101, %c0_102, %c0_103], %276 {strides = array<i32>} : memref<8x8x128xf32, #tpu.memory_space<vmem>>, vector<1x8x128xf32>,
    %c0_104 = arith.constant 0 : index
    %c0_105 = arith.constant 0 : index
    %c0_106 = arith.constant 0 : index
    %277 = vector.load %arg10[%c0_104, %c0_105, %c0_106] : memref<1x8x128xf32, #tpu.memory_space<vmem>>, vector<1x8x128xf32>
    %278 = vector.shape_cast %277 : vector<1x8x128xf32> to vector<8x128xf32>
    %279 = vector.shape_cast %273 : vector<8x128xf32> to vector<1x8x128xf32>
    tpu.vector_store %arg10[%c0_104, %c0_105, %c0_106], %279 {strides = array<i32>} : memref<1x8x128xf32, #tpu.memory_space<vmem>>, vector<1x8x128xf32>,
    %c0_107 = arith.constant 0 : index
    %c0_108 = arith.constant 0 : index
    %c0_109 = arith.constant 0 : index
    %280 = vector.load %arg11[%c0_107, %c0_108, %c0_109] : memref<1x8x128xf32, #tpu.memory_space<vmem>>, vector<1x8x128xf32>
    %281 = vector.shape_cast %280 : vector<1x8x128xf32> to vector<8x128xf32>
    %282 = vector.shape_cast %271 : vector<8x128xf32> to vector<1x8x128xf32>
    tpu.vector_store %arg11[%c0_107, %c0_108, %c0_109], %282 {strides = array<i32>} : memref<1x8x128xf32, #tpu.memory_space<vmem>>, vector<1x8x128xf32>,
    %c0_110 = arith.constant 0 : index
    %c0_111 = arith.constant 0 : index
    %c0_112 = arith.constant 0 : index
    %283 = vector.load %arg13[%c0_110, %c0_111, %c0_112] : memref<8x8x128xf32, #tpu.memory_space<vmem>>, vector<8x8x128xf32>
    %284 = vector.shape_cast %283 : vector<8x8x128xf32> to vector<64x128xf32>
    %c0_113 = arith.constant 0 : index
    %c0_114 = arith.constant 0 : index
    %285 = vector.load %arg5[%c0_113, %c0_114] : memref<128x128xf32, #tpu.memory_space<vmem>>, vector<128x128xf32>
    %cst_115 = arith.constant dense<0.000000e+00> : vector<64x128xf32>
    %286 = tpu.matmul %284, %285, %cst_115 {dimension_numbers = #tpu.dot_dimension_numbers<[1], [0], [0], [1], [0, 0, 1, 1], [], []>} : vector<64x128xf32>, vector<128x128xf32>, vector<64x128xf32> -> vector<64x128xf32>
    %c0_116 = arith.constant 0 : index
    %c0_117 = arith.constant 0 : index
    %287 = vector.load %arg6[%c0_116, %c0_117] : memref<1x128xf32, #tpu.memory_space<vmem>>, vector<1x128xf32>
    %288 = vector.broadcast %287 : vector<1x128xf32> to vector<64x128xf32>
    %289 = arith.addf %286, %288 : vector<64x128xf32>
    %290 = vector.shape_cast %289 : vector<64x128xf32> to vector<8x8x128xf32>
    %c0_118 = arith.constant 0 : index
    %c0_119 = arith.constant 0 : index
    %c0_120 = arith.constant 0 : index
    %291 = vector.load %arg9[%c0_118, %c0_119, %c0_120] : memref<8x8x128xf32, #tpu.memory_space<vmem>>, vector<8x8x128xf32>
    tpu.vector_store %arg9[%c0_118, %c0_119, %c0_120], %290 {strides = array<i32>} : memref<8x8x128xf32, #tpu.memory_space<vmem>>, vector<8x8x128xf32>,
    return
  }
  func.func @transform_0(%arg0: i32) -> (i32, i32, i32) {
    %c0_i32 = arith.constant 0 : i32
    %c0_i32_0 = arith.constant 0 : i32
    %c0_i32_1 = arith.constant 0 : i32
    %c0_i32_2 = arith.constant 0 : i32
    return %c0_i32, %c0_i32_0, %c0_i32_1 : i32, i32, i32
  }
  func.func @transform_1(%arg0: i32) -> (i32, i32) {
    %c0_i32 = arith.constant 0 : i32
    %c0_i32_0 = arith.constant 0 : i32
    %c0_i32_1 = arith.constant 0 : i32
    return %c0_i32, %c0_i32_0 : i32, i32
  }
  func.func @transform_2(%arg0: i32) -> (i32, i32) {
    %c0_i32 = arith.constant 0 : i32
    %c0_i32_0 = arith.constant 0 : i32
    %c0_i32_1 = arith.constant 0 : i32
    return %c0_i32, %c0_i32_0 : i32, i32
  }
  func.func @transform_3(%arg0: i32) -> (i32, i32) {
    %c0_i32 = arith.constant 0 : i32
    %c0_i32_0 = arith.constant 0 : i32
    %c0_i32_1 = arith.constant 0 : i32
    return %c0_i32, %c0_i32_0 : i32, i32
  }
  func.func @transform_4(%arg0: i32) -> (i32, i32) {
    %c0_i32 = arith.constant 0 : i32
    %c0_i32_0 = arith.constant 0 : i32
    %c0_i32_1 = arith.constant 0 : i32
    return %c0_i32, %c0_i32_0 : i32, i32
  }
  func.func @transform_5(%arg0: i32) -> (i32, i32) {
    %c0_i32 = arith.constant 0 : i32
    %c0_i32_0 = arith.constant 0 : i32
    %c0_i32_1 = arith.constant 0 : i32
    return %c0_i32, %c0_i32_0 : i32, i32
  }
  func.func @transform_6(%arg0: i32) -> (i32, i32, i32) {
    %c0_i32 = arith.constant 0 : i32
    %c0_i32_0 = arith.constant 0 : i32
    %c0_i32_1 = arith.constant 0 : i32
    %c0_i32_2 = arith.constant 0 : i32
    return %c0_i32, %c0_i32_0, %c0_i32_1 : i32, i32, i32
  }
  func.func @transform_7(%arg0: i32) -> (i32, i32, i32) {
    %c0_i32 = arith.constant 0 : i32
    %c0_i32_0 = arith.constant 0 : i32
    %c0_i32_1 = arith.constant 0 : i32
    %c0_i32_2 = arith.constant 0 : i32
    return %c0_i32, %c0_i32_0, %c0_i32_1 : i32, i32, i32
  }
  func.func @transform_8(%arg0: i32) -> (i32, i32, i32) {
    %c0_i32 = arith.constant 0 : i32
    %c0_i32_0 = arith.constant 0 : i32
    %c0_i32_1 = arith.constant 0 : i32
    %c0_i32_2 = arith.constant 0 : i32
    return %c0_i32, %c0_i32_0, %c0_i32_1 : i32, i32, i32
  }
  func.func @transform_9(%arg0: i32) -> (i32, i32, i32) {
    %c0_i32 = arith.constant 0 : i32
    %c0_i32_0 = arith.constant 0 : i32
    %c0_i32_1 = arith.constant 0 : i32
    %c0_i32_2 = arith.constant 0 : i32
    return %c0_i32, %c0_i32_0, %c0_i32_1 : i32, i32, i32
  }
  func.func @transform_10(%arg0: i32) -> (i32, i32, i32) {
    %c0_i32 = arith.constant 0 : i32
    %c0_i32_0 = arith.constant 0 : i32
    %c0_i32_1 = arith.constant 0 : i32
    %c0_i32_2 = arith.constant 0 : i32
    return %c0_i32, %c0_i32_0, %c0_i32_1 : i32, i32, i32
  }
}

</mosaic_0001>

<llo_original>
// kernel: char_decoder_forward.1
$region0: #{char_decoder_forward.1}
  #allocation0 [shape = 'u32[]', space=smem, size = 0x4, offset = 0x4, fixed_abs, tag = 'smem constant byte address 0x4 - core index']
  #allocation1 [shape = 'u32[144,128]{1,0:T(1,128)}', space=vmem, size = 0x12000, scoped, tag = 'internal scratch']
  #allocation2 [shape = 'f32[8,8,512]{2,1,0:T(8,128)}', space=vmem, size = 0x20000, scoped, tag = 'scratch operand']
  #allocation3 [shape = 'f32[8,8,128]{2,1,0:T(8,128)}', space=vmem, size = 0x8000, scoped, tag = 'scratch operand']
  %s0 = inlined_call_operand.vmem [shape: f32[8,8,128], index: 0, kind: input, shape index: {}]
  %s1 = inlined_call_operand.vmem [shape: f32[128,512], index: 1, kind: input, shape index: {}]
  %s2 = inlined_call_operand.vmem [shape: f32[128,512], index: 2, kind: input, shape index: {}]
  %s3 = inlined_call_operand.vmem [shape: f32[1,512], index: 3, kind: input, shape index: {}]
  %s4 = inlined_call_operand.vmem [shape: f32[128,128], index: 4, kind: input, shape index: {}]
  %s5 = inlined_call_operand.vmem [shape: f32[1,128], index: 5, kind: input, shape index: {}]
  %s6 = inlined_call_operand.vmem [shape: f32[1,8,128], index: 6, kind: input, shape index: {}]
  %s7 = inlined_call_operand.vmem [shape: f32[1,8,128], index: 7, kind: input, shape index: {}]
  %s8 = inlined_call_operand.vmem [shape: f32[8,8,128], index: 8, kind: output, shape index: {0}]
  %s9 = inlined_call_operand.vmem [shape: f32[1,8,128], index: 9, kind: output, shape index: {1}]
  %s10 = inlined_call_operand.vmem [shape: f32[1,8,128], index: 10, kind: output, shape index: {2}]
  %11 = xla_tuple %s8, %s9, %s10
  %s12 = sld [smem:[#allocation0]]
  $region58: #{char_decoder_forward.1} parent=0
    _
  %s14 = ssub.s32 1, %s12
  %s15 = scalar_select 0, %s14, %s12
  // Predicated region
  $region2: #{char_decoder_forward.1} parent=0 // pred_check
    _
  $region3: #{char_decoder_forward.1} parent=0 // pred_check_branch
    %17 = sbr.rel (0) target = $region5
  $region4: #{char_decoder_forward.1} parent=0 // pred_region
    _
  $region5: #{char_decoder_forward.1} parent=0 // pred_fallthru
    _
  // Predicated region
  $region6: #{char_decoder_forward.1} parent=0 // pred_check
    _
  $region7: #{char_decoder_forward.1} parent=0 // pred_check_branch
    %19 = sbr.rel (0) target = $region9
  $region8: #{char_decoder_forward.1} parent=0 // pred_region
    _
  $region9: #{char_decoder_forward.1} parent=0 // pred_fallthru
    _
  // Predicated region
  $region10: #{char_decoder_forward.1} parent=0 // pred_check
    _
  $region11: #{char_decoder_forward.1} parent=0 // pred_check_branch
    %21 = sbr.rel (0) target = $region13
  $region12: #{char_decoder_forward.1} parent=0 // pred_region
    _
  $region13: #{char_decoder_forward.1} parent=0 // pred_fallthru
    _
  // Predicated region
  $region14: #{char_decoder_forward.1} parent=0 // pred_check
    _
  $region15: #{char_decoder_forward.1} parent=0 // pred_check_branch
    %23 = sbr.rel (0) target = $region17
  $region16: #{char_decoder_forward.1} parent=0 // pred_region
    _
  $region17: #{char_decoder_forward.1} parent=0 // pred_fallthru
    _
  // Predicated region
  $region18: #{char_decoder_forward.1} parent=0 // pred_check
    _
  $region19: #{char_decoder_forward.1} parent=0 // pred_check_branch
    %25 = sbr.rel (0) target = $region21
  $region20: #{char_decoder_forward.1} parent=0 // pred_region
    _
  $region21: #{char_decoder_forward.1} parent=0 // pred_fallthru
    _
  // Predicated region
  $region22: #{char_decoder_forward.1} parent=0 // pred_check
    _
  $region23: #{char_decoder_forward.1} parent=0 // pred_check_branch
    %27 = sbr.rel (0) target = $region25
  $region24: #{char_decoder_forward.1} parent=0 // pred_region
    _
  $region25: #{char_decoder_forward.1} parent=0 // pred_fallthru
    _
  // Predicated region
  $region26: #{char_decoder_forward.1} parent=0 // pred_check
    _
  $region27: #{char_decoder_forward.1} parent=0 // pred_check_branch
    %29 = sbr.rel (0) target = $region29
  $region28: #{char_decoder_forward.1} parent=0 // pred_region
    _
  $region29: #{char_decoder_forward.1} parent=0 // pred_fallthru
    _
  // Predicated region
  $region30: #{char_decoder_forward.1} parent=0 // pred_check
    _
  $region31: #{char_decoder_forward.1} parent=0 // pred_check_branch
    %31 = sbr.rel (0) target = $region33
  $region32: #{char_decoder_forward.1} parent=0 // pred_region
    _
  $region33: #{char_decoder_forward.1} parent=0 // pred_fallthru
    _
  %v32 = vld [vmem:[%s0] sm:$0xff]
  %v33 = vld [vmem:[%s0 + $0x8] sm:$0xff]
  %v34 = vld [vmem:[%s0 + $0x10] sm:$0xff]
  %v35 = vld [vmem:[%s0 + $0x18] sm:$0xff]
  %v36 = vld [vmem:[%s0 + $0x20] sm:$0xff]
  %v37 = vld [vmem:[%s0 + $0x28] sm:$0xff]
  %v38 = vld [vmem:[%s0 + $0x30] sm:$0xff]
  %v39 = vld [vmem:[%s0 + $0x38] sm:$0xff]
  %v40 = vld [vmem:[%s1] sm:$0xff]
  %v41 = vld [vmem:[%s1 + $0x8] sm:$0xff]
  %v42 = vld [vmem:[%s1 + $0x10] sm:$0xff]
  %v43 = vld [vmem:[%s1 + $0x18] sm:$0xff]
  %v44 = vld [vmem:[%s1 + $0x20] sm:$0xff]
  %v45 = vld [vmem:[%s1 + $0x28] sm:$0xff]
  %v46 = vld [vmem:[%s1 + $0x30] sm:$0xff]
  %v47 = vld [vmem:[%s1 + $0x38] sm:$0xff]
  %v48 = vld [vmem:[%s1 + $0x40] sm:$0xff]
  %v49 = vld [vmem:[%s1 + $0x48] sm:$0xff]
  %v50 = vld [vmem:[%s1 + $0x50] sm:$0xff]
  %v51 = vld [vmem:[%s1 + $0x58] sm:$0xff]
  %v52 = vld [vmem:[%s1 + $0x60] sm:$0xff]
  %v53 = vld [vmem:[%s1 + $0x68] sm:$0xff]
  %v54 = vld [vmem:[%s1 + $0x70] sm:$0xff]
  %v55 = vld [vmem:[%s1 + $0x78] sm:$0xff]
  %v56 = vld [vmem:[%s1 + $0x80] sm:$0xff]
  %v57 = vld [vmem:[%s1 + $0x88] sm:$0xff]
  %v58 = vld [vmem:[%s1 + $0x90] sm:$0xff]
  %v59 = vld [vmem:[%s1 + $0x98] sm:$0xff]
  %v60 = vld [vmem:[%s1 + $0xa0] sm:$0xff]
  %v61 = vld [vmem:[%s1 + $0xa8] sm:$0xff]
  %v62 = vld [vmem:[%s1 + $0xb0] sm:$0xff]
  %v63 = vld [vmem:[%s1 + $0xb8] sm:$0xff]
  %v64 = vld [vmem:[%s1 + $0xc0] sm:$0xff]
  %v65 = vld [vmem:[%s1 + $0xc8] sm:$0xff]
  %v66 = vld [vmem:[%s1 + $0xd0] sm:$0xff]
  %v67 = vld [vmem:[%s1 + $0xd8] sm:$0xff]
  %v68 = vld [vmem:[%s1 + $0xe0] sm:$0xff]
  %v69 = vld [vmem:[%s1 + $0xe8] sm:$0xff]
  %v70 = vld [vmem:[%s1 + $0xf0] sm:$0xff]
  %v71 = vld [vmem:[%s1 + $0xf8] sm:$0xff]
  %v72 = vld [vmem:[%s1 + $0x100] sm:$0xff]
  %v73 = vld [vmem:[%s1 + $0x108] sm:$0xff]
  %v74 = vld [vmem:[%s1 + $0x110] sm:$0xff]
  %v75 = vld [vmem:[%s1 + $0x118] sm:$0xff]
  %v76 = vld [vmem:[%s1 + $0x120] sm:$0xff]
  %v77 = vld [vmem:[%s1 + $0x128] sm:$0xff]
  %v78 = vld [vmem:[%s1 + $0x130] sm:$0xff]
  %v79 = vld [vmem:[%s1 + $0x138] sm:$0xff]
  %v80 = vld [vmem:[%s1 + $0x140] sm:$0xff]
  %v81 = vld [vmem:[%s1 + $0x148] sm:$0xff]
  %v82 = vld [vmem:[%s1 + $0x150] sm:$0xff]
  %v83 = vld [vmem:[%s1 + $0x158] sm:$0xff]
  %v84 = vld [vmem:[%s1 + $0x160] sm:$0xff]
  %v85 = vld [vmem:[%s1 + $0x168] sm:$0xff]
  %v86 = vld [vmem:[%s1 + $0x170] sm:$0xff]
  %v87 = vld [vmem:[%s1 + $0x178] sm:$0xff]
  %v88 = vld [vmem:[%s1 + $0x180] sm:$0xff]
  %v89 = vld [vmem:[%s1 + $0x188] sm:$0xff]
  %v90 = vld [vmem:[%s1 + $0x190] sm:$0xff]
  %v91 = vld [vmem:[%s1 + $0x198] sm:$0xff]
  %v92 = vld [vmem:[%s1 + $0x1a0] sm:$0xff]
  %v93 = vld [vmem:[%s1 + $0x1a8] sm:$0xff]
  %v94 = vld [vmem:[%s1 + $0x1b0] sm:$0xff]
  %v95 = vld [vmem:[%s1 + $0x1b8] sm:$0xff]
  %v96 = vld [vmem:[%s1 + $0x1c0] sm:$0xff]
  %v97 = vld [vmem:[%s1 + $0x1c8] sm:$0xff]
  %v98 = vld [vmem:[%s1 + $0x1d0] sm:$0xff]
  %v99 = vld [vmem:[%s1 + $0x1d8] sm:$0xff]
  %v100 = vld [vmem:[%s1 + $0x1e0] sm:$0xff]
  %v101 = vld [vmem:[%s1 + $0x1e8] sm:$0xff]
  %v102 = vld [vmem:[%s1 + $0x1f0] sm:$0xff]
  %v103 = vld [vmem:[%s1 + $0x1f8] sm:$0xff]
  %v104 = vld [vmem:[%s3] sm:$0xf]
  %v106 = vlaneseq
  %v107 = vshrl.u32 %v106, 7
  %v108 = vsub.s32 0, %v107
  %v109 = vrot.slane %v104, %v108
  %v110 = vlaneseq
  %v111 = vshrl.u32 %v110, 7
  %v112 = vsub.s32 1, %v111
  %v113 = vrot.slane %v104, %v112
  %v114 = vlaneseq
  %v115 = vshrl.u32 %v114, 7
  %v116 = vsub.s32 2, %v115
  %v117 = vrot.slane %v104, %v116
  %v118 = vlaneseq
  %v119 = vshrl.u32 %v118, 7
  %v120 = vsub.s32 3, %v119
  %v121 = vrot.slane %v104, %v120
  %126 = vmatprep.subr.mxu0 %v41
  %127 = vmatpush1.msra.mxu0 %v40
  %128 = vmatprep.subr.mxu0 %v45
  %129 = vmatpush1.msra.mxu0 %v44
  %130 = vmatprep.subr.mxu0 %v49
  %131 = vmatpush1.msra.mxu0 %v48
  %132 = vmatprep.subr.mxu0 %v53
  %133 = vmatpush1.msra.mxu0 %v52
  %134 = vmatprep.subr.mxu0 %v57
  %135 = vmatpush1.msra.mxu0 %v56
  %136 = vmatprep.subr.mxu0 %v61
  %137 = vmatpush1.msra.mxu0 %v60
  %138 = vmatprep.subr.mxu0 %v65
  %139 = vmatpush1.msra.mxu0 %v64
  %140 = vmatprep.subr.mxu0 %v69
  %141 = vmatpush1.msra.mxu0 %v68
  %142 = vmatprep.subr.mxu0 %v73
  %143 = vmatpush1.msra.mxu0 %v72
  %144 = vmatprep.subr.mxu0 %v77
  %145 = vmatpush1.msra.mxu0 %v76
  %146 = vmatprep.subr.mxu0 %v81
  %147 = vmatpush1.msra.mxu0 %v80
  %148 = vmatprep.subr.mxu0 %v85
  %149 = vmatpush1.msra.mxu0 %v84
  %150 = vmatprep.subr.mxu0 %v89
  %151 = vmatpush1.msra.mxu0 %v88
  %152 = vmatprep.subr.mxu0 %v93
  %153 = vmatpush1.msra.mxu0 %v92
  %154 = vmatprep.subr.mxu0 %v97
  %155 = vmatpush1.msra.mxu0 %v96
  %156 = vmatprep.subr.mxu0 %v101
  %157 = vmatpush1.msra.mxu0 %v100
  %158 = vmatprep.subr.mxu0 0.0
  %159 = vmatpush1.msra.mxu0 0.0
  %160 = vmatprep.subr.mxu0 0.0
  %161 = vmatpush1.msra.mxu0 0.0
  %162 = vmatprep.subr.mxu0 0.0
  %163 = vmatpush1.msra.mxu0 0.0
  %164 = vmatprep.subr.mxu0 0.0
  %165 = vmatpush1.msra.mxu0 0.0
  %166 = vmatprep.subr.mxu0 0.0
  %167 = vmatpush1.msra.mxu0 0.0
  %168 = vmatprep.subr.mxu0 0.0
  %169 = vmatpush1.msra.mxu0 0.0
  %170 = vmatprep.subr.mxu0 0.0
  %171 = vmatpush1.msra.mxu0 0.0
  %172 = vmatprep.subr.mxu0 0.0
  %173 = vmatpush1.msra.mxu0 0.0
  %174 = vmatprep.subr.mxu0 0.0
  %175 = vmatpush1.msra.mxu0 0.0
  %176 = vmatprep.subr.mxu0 0.0
  %177 = vmatpush1.msra.mxu0 0.0
  %178 = vmatprep.subr.mxu0 0.0
  %179 = vmatpush1.msra.mxu0 0.0
  %180 = vmatprep.subr.mxu0 0.0
  %181 = vmatpush1.msra.mxu0 0.0
  %182 = vmatprep.subr.mxu0 0.0
  %183 = vmatpush1.msra.mxu0 0.0
  %184 = vmatprep.subr.mxu0 0.0
  %185 = vmatpush1.msra.mxu0 0.0
  %186 = vmatprep.subr.mxu0 0.0
  %187 = vmatpush1.msra.mxu0 0.0
  %188 = vmatprep.subr.mxu0 0.0
  %189 = vmatpush1.msra.mxu0 0.0
  %190 = vmatprep.mubr.f32.mxu0 0.0
  %191 = vmatmul.mubr.f32.gmra.mrb[0].mxu0 %v32
  %v192 = vpop.f32.mrb[0].mxu0
  %v193 = vadd.f32 %v109, %v192
  %v194 = vpop.f32.mrb[0].mxu0
  %v195 = vadd.f32 %v113, %v194
  %196 = vmatprep.mubr.f32.mxu0 0.0
  %197 = vmatmul.mubr.f32.gmra.mrb[0].mxu0 %v33
  %v198 = vpop.f32.mrb[0].mxu0
  %v199 = vadd.f32 %v109, %v198
  %v200 = vpop.f32.mrb[0].mxu0
  %v201 = vadd.f32 %v113, %v200
  %202 = vmatprep.mubr.f32.mxu0 0.0
  %203 = vmatmul.mubr.f32.gmra.mrb[0].mxu0 %v34
  %v204 = vpop.f32.mrb[0].mxu0
  %v205 = vadd.f32 %v109, %v204
  %v206 = vpop.f32.mrb[0].mxu0
  %v207 = vadd.f32 %v113, %v206
  %208 = vmatprep.mubr.f32.mxu0 0.0
  %209 = vmatmul.mubr.f32.gmra.mrb[0].mxu0 %v35
  %v210 = vpop.f32.mrb[0].mxu0
  %v211 = vadd.f32 %v109, %v210
  %v212 = vpop.f32.mrb[0].mxu0
  %v213 = vadd.f32 %v113, %v212
  %214 = vmatprep.mubr.f32.mxu0 0.0
  %215 = vmatmul.mubr.f32.gmra.mrb[0].mxu0 %v36
  %v216 = vpop.f32.mrb[0].mxu0
  %v217 = vadd.f32 %v109, %v216
  %v218 = vpop.f32.mrb[0].mxu0
  %v219 = vadd.f32 %v113, %v218
  %220 = vmatprep.mubr.f32.mxu0 0.0
  %221 = vmatmul.mubr.f32.gmra.mrb[0].mxu0 %v37
  %v222 = vpop.f32.mrb[0].mxu0
  %v223 = vadd.f32 %v109, %v222
  %v224 = vpop.f32.mrb[0].mxu0
  %v225 = vadd.f32 %v113, %v224
  %226 = vmatprep.mubr.f32.mxu0 0.0
  %227 = vmatmul.mubr.f32.gmra.mrb[0].mxu0 %v38
  %v228 = vpop.f32.mrb[0].mxu0
  %v229 = vadd.f32 %v109, %v228
  %v230 = vpop.f32.mrb[0].mxu0
  %v231 = vadd.f32 %v113, %v230
  %232 = vmatprep.mubr.f32.mxu0 0.0
  %233 = vmatmul.mubr.f32.gmra.mrb[0].mxu0 %v39
  %v234 = vpop.f32.mrb[0].mxu0
  %v235 = vadd.f32 %v109, %v234
  %v236 = vpop.f32.mrb[0].mxu0
  %v237 = vadd.f32 %v113, %v236
  %238 = vdwg.mxu0
  %239 = vmatprep.subr.mxu0 %v43
  %240 = vmatpush1.msra.mxu0 %v42
  %241 = vmatprep.subr.mxu0 %v47
  %242 = vmatpush1.msra.mxu0 %v46
  %243 = vmatprep.subr.mxu0 %v51
  %244 = vmatpush1.msra.mxu0 %v50
  %245 = vmatprep.subr.mxu0 %v55
  %246 = vmatpush1.msra.mxu0 %v54
  %247 = vmatprep.subr.mxu0 %v59
  %248 = vmatpush1.msra.mxu0 %v58
  %249 = vmatprep.subr.mxu0 %v63
  %250 = vmatpush1.msra.mxu0 %v62
  %251 = vmatprep.subr.mxu0 %v67
  %252 = vmatpush1.msra.mxu0 %v66
  %253 = vmatprep.subr.mxu0 %v71
  %254 = vmatpush1.msra.mxu0 %v70
  %255 = vmatprep.subr.mxu0 %v75
  %256 = vmatpush1.msra.mxu0 %v74
  %257 = vmatprep.subr.mxu0 %v79
  %258 = vmatpush1.msra.mxu0 %v78
  %259 = vmatprep.subr.mxu0 %v83
  %260 = vmatpush1.msra.mxu0 %v82
  %261 = vmatprep.subr.mxu0 %v87
  %262 = vmatpush1.msra.mxu0 %v86
  %263 = vmatprep.subr.mxu0 %v91
  %264 = vmatpush1.msra.mxu0 %v90
  %265 = vmatprep.subr.mxu0 %v95
  %266 = vmatpush1.msra.mxu0 %v94
  %267 = vmatprep.subr.mxu0 %v99
  %268 = vmatpush1.msra.mxu0 %v98
  %269 = vmatprep.subr.mxu0 %v103
  %270 = vmatpush1.msra.mxu0 %v102
  %271 = vmatprep.subr.mxu0 0.0
  %272 = vmatpush1.msra.mxu0 0.0
  %273 = vmatprep.subr.mxu0 0.0
  %274 = vmatpush1.msra.mxu0 0.0
  %275 = vmatprep.subr.mxu0 0.0
  %276 = vmatpush1.msra.mxu0 0.0
  %277 = vmatprep.subr.mxu0 0.0
  %278 = vmatpush1.msra.mxu0 0.0
  %279 = vmatprep.subr.mxu0 0.0
  %280 = vmatpush1.msra.mxu0 0.0
  %281 = vmatprep.subr.mxu0 0.0
  %282 = vmatpush1.msra.mxu0 0.0
  %283 = vmatprep.subr.mxu0 0.0
  %284 = vmatpush1.msra.mxu0 0.0
  %285 = vmatprep.subr.mxu0 0.0
  %286 = vmatpush1.msra.mxu0 0.0
  %287 = vmatprep.subr.mxu0 0.0
  %288 = vmatpush1.msra.mxu0 0.0
  %289 = vmatprep.subr.mxu0 0.0
  %290 = vmatpush1.msra.mxu0 0.0
  %291 = vmatprep.subr.mxu0 0.0
  %292 = vmatpush1.msra.mxu0 0.0
  %293 = vmatprep.subr.mxu0 0.0
  %294 = vmatpush1.msra.mxu0 0.0
  %295 = vmatprep.subr.mxu0 0.0
  %296 = vmatpush1.msra.mxu0 0.0
  %297 = vmatprep.subr.mxu0 0.0
  %298 = vmatpush1.msra.mxu0 0.0
  %299 = vmatprep.subr.mxu0 0.0
  %300 = vmatpush1.msra.mxu0 0.0
  %301 = vmatprep.subr.mxu0 0.0
  %302 = vmatpush1.msra.mxu0 0.0
  %303 = vmatprep.mubr.f32.mxu0 0.0
  %304 = vmatmul.mubr.f32.gmra.mrb[0].mxu0 %v32
  %v305 = vpop.f32.mrb[0].mxu0
  %v306 = vadd.f32 %v117, %v305
  %v307 = vpop.f32.mrb[0].mxu0
  %v308 = vadd.f32 %v121, %v307
  %309 = vmatprep.mubr.f32.mxu0 0.0
  %310 = vmatmul.mubr.f32.gmra.mrb[0].mxu0 %v33
  %v311 = vpop.f32.mrb[0].mxu0
  %v312 = vadd.f32 %v117, %v311
  %v313 = vpop.f32.mrb[0].mxu0
  %v314 = vadd.f32 %v121, %v313
  %315 = vmatprep.mubr.f32.mxu0 0.0
  %316 = vmatmul.mubr.f32.gmra.mrb[0].mxu0 %v34
  %v317 = vpop.f32.mrb[0].mxu0
  %v318 = vadd.f32 %v117, %v317
  %v319 = vpop.f32.mrb[0].mxu0
  %v320 = vadd.f32 %v121, %v319
  %321 = vmatprep.mubr.f32.mxu0 0.0
  %322 = vmatmul.mubr.f32.gmra.mrb[0].mxu0 %v35
  %v323 = vpop.f32.mrb[0].mxu0
  %v324 = vadd.f32 %v117, %v323
  %v325 = vpop.f32.mrb[0].mxu0
  %v326 = vadd.f32 %v121, %v325
  %327 = vmatprep.mubr.f32.mxu0 0.0
  %328 = vmatmul.mubr.f32.gmra.mrb[0].mxu0 %v36
  %v329 = vpop.f32.mrb[0].mxu0
  %v330 = vadd.f32 %v117, %v329
  %v331 = vpop.f32.mrb[0].mxu0
  %v332 = vadd.f32 %v121, %v331
  %333 = vmatprep.mubr.f32.mxu0 0.0
  %334 = vmatmul.mubr.f32.gmra.mrb[0].mxu0 %v37
  %v335 = vpop.f32.mrb[0].mxu0
  %v336 = vadd.f32 %v117, %v335
  %v337 = vpop.f32.mrb[0].mxu0
  %v338 = vadd.f32 %v121, %v337
  %339 = vmatprep.mubr.f32.mxu0 0.0
  %340 = vmatmul.mubr.f32.gmra.mrb[0].mxu0 %v38
  %v341 = vpop.f32.mrb[0].mxu0
  %v342 = vadd.f32 %v117, %v341
  %v343 = vpop.f32.mrb[0].mxu0
  %v344 = vadd.f32 %v121, %v343
  %345 = vmatprep.mubr.f32.mxu0 0.0
  %346 = vmatmul.mubr.f32.gmra.mrb[0].mxu0 %v39
  %v347 = vpop.f32.mrb[0].mxu0
  %v348 = vadd.f32 %v117, %v347
  %v349 = vpop.f32.mrb[0].mxu0
  %v350 = vadd.f32 %v121, %v349
  %351 = vdwg.mxu0
  %352 = vst [vmem:[#allocation2] sm:$0xff] %v193
  %353 = vst [vmem:[#allocation2 + $0x8] sm:$0xff] %v195
  %354 = vst [vmem:[#allocation2 + $0x10] sm:$0xff] %v306
  %355 = vst [vmem:[#allocation2 + $0x18] sm:$0xff] %v308
  %356 = vst [vmem:[#allocation2 + $0x20] sm:$0xff] %v199
  %357 = vst [vmem:[#allocation2 + $0x28] sm:$0xff] %v201
  %358 = vst [vmem:[#allocation2 + $0x30] sm:$0xff] %v312
  %359 = vst [vmem:[#allocation2 + $0x38] sm:$0xff] %v314
  %360 = vst [vmem:[#allocation2 + $0x40] sm:$0xff] %v205
  %361 = vst [vmem:[#allocation2 + $0x48] sm:$0xff] %v207
  %362 = vst [vmem:[#allocation2 + $0x50] sm:$0xff] %v318
  %363 = vst [vmem:[#allocation2 + $0x58] sm:$0xff] %v320
  %364 = vst [vmem:[#allocation2 + $0x60] sm:$0xff] %v211
  %365 = vst [vmem:[#allocation2 + $0x68] sm:$0xff] %v213
  %366 = vst [vmem:[#allocation2 + $0x70] sm:$0xff] %v324
  %367 = vst [vmem:[#allocation2 + $0x78] sm:$0xff] %v326
  %368 = vst [vmem:[#allocation2 + $0x80] sm:$0xff] %v217
  %369 = vst [vmem:[#allocation2 + $0x88] sm:$0xff] %v219
  %370 = vst [vmem:[#allocation2 + $0x90] sm:$0xff] %v330
  %371 = vst [vmem:[#allocation2 + $0x98] sm:$0xff] %v332
  %372 = vst [vmem:[#allocation2 + $0xa0] sm:$0xff] %v223
  %373 = vst [vmem:[#allocation2 + $0xa8] sm:$0xff] %v225
  %374 = vst [vmem:[#allocation2 + $0xb0] sm:$0xff] %v336
  %375 = vst [vmem:[#allocation2 + $0xb8] sm:$0xff] %v338
  %376 = vst [vmem:[#allocation2 + $0xc0] sm:$0xff] %v229
  %377 = vst [vmem:[#allocation2 + $0xc8] sm:$0xff] %v231
  %378 = vst [vmem:[#allocation2 + $0xd0] sm:$0xff] %v342
  %379 = vst [vmem:[#allocation2 + $0xd8] sm:$0xff] %v344
  %380 = vst [vmem:[#allocation2 + $0xe0] sm:$0xff] %v235
  %381 = vst [vmem:[#allocation2 + $0xe8] sm:$0xff] %v237
  %382 = vst [vmem:[#allocation2 + $0xf0] sm:$0xff] %v348
  %383 = vst [vmem:[#allocation2 + $0xf8] sm:$0xff] %v350
  %v384 = vld [vmem:[%s6] sm:$0xff]
  %v385 = vld [vmem:[%s7] sm:$0xff]
  %v386 = vld [vmem:[#allocation2] sm:$0xff]
  %v387 = vld [vmem:[#allocation2 + $0x8] sm:$0xff]
  %v388 = vld [vmem:[#allocation2 + $0x10] sm:$0xff]
  %v389 = vld [vmem:[#allocation2 + $0x18] sm:$0xff]
  %v390 = vld [vmem:[%s2] sm:$0xff]
  %v391 = vld [vmem:[%s2 + $0x8] sm:$0xff]
  %v392 = vld [vmem:[%s2 + $0x10] sm:$0xff]
  %v393 = vld [vmem:[%s2 + $0x18] sm:$0xff]
  %v394 = vld [vmem:[%s2 + $0x20] sm:$0xff]
  %v395 = vld [vmem:[%s2 + $0x28] sm:$0xff]
  %v396 = vld [vmem:[%s2 + $0x30] sm:$0xff]
  %v397 = vld [vmem:[%s2 + $0x38] sm:$0xff]
  %v398 = vld [vmem:[%s2 + $0x40] sm:$0xff]
  %v399 = vld [vmem:[%s2 + $0x48] sm:$0xff]
  %v400 = vld [vmem:[%s2 + $0x50] sm:$0xff]
  %v401 = vld [vmem:[%s2 + $0x58] sm:$0xff]
  %v402 = vld [vmem:[%s2 + $0x60] sm:$0xff]
  %v403 = vld [vmem:[%s2 + $0x68] sm:$0xff]
  %v404 = vld [vmem:[%s2 + $0x70] sm:$0xff]
  %v405 = vld [vmem:[%s2 + $0x78] sm:$0xff]
  %v406 = vld [vmem:[%s2 + $0x80] sm:$0xff]
  %v407 = vld [vmem:[%s2 + $0x88] sm:$0xff]
  %v408 = vld [vmem:[%s2 + $0x90] sm:$0xff]
  %v409 = vld [vmem:[%s2 + $0x98] sm:$0xff]
  %v410 = vld [vmem:[%s2 + $0xa0] sm:$0xff]
  %v411 = vld [vmem:[%s2 + $0xa8] sm:$0xff]
  %v412 = vld [vmem:[%s2 + $0xb0] sm:$0xff]
  %v413 = vld [vmem:[%s2 + $0xb8] sm:$0xff]
  %v414 = vld [vmem:[%s2 + $0xc0] sm:$0xff]
  %v415 = vld [vmem:[%s2 + $0xc8] sm:$0xff]
  %v416 = vld [vmem:[%s2 + $0xd0] sm:$0xff]
  %v417 = vld [vmem:[%s2 + $0xd8] sm:$0xff]
  %v418 = vld [vmem:[%s2 + $0xe0] sm:$0xff]
  %v419 = vld [vmem:[%s2 + $0xe8] sm:$0xff]
  %v420 = vld [vmem:[%s2 + $0xf0] sm:$0xff]
  %v421 = vld [vmem:[%s2 + $0xf8] sm:$0xff]
  %v422 = vld [vmem:[%s2 + $0x100] sm:$0xff]
  %v423 = vld [vmem:[%s2 + $0x108] sm:$0xff]
  %v424 = vld [vmem:[%s2 + $0x110] sm:$0xff]
  %v425 = vld [vmem:[%s2 + $0x118] sm:$0xff]
  %v426 = vld [vmem:[%s2 + $0x120] sm:$0xff]
  %v427 = vld [vmem:[%s2 + $0x128] sm:$0xff]
  %v428 = vld [vmem:[%s2 + $0x130] sm:$0xff]
  %v429 = vld [vmem:[%s2 + $0x138] sm:$0xff]
  %v430 = vld [vmem:[%s2 + $0x140] sm:$0xff]
  %v431 = vld [vmem:[%s2 + $0x148] sm:$0xff]
  %v432 = vld [vmem:[%s2 + $0x150] sm:$0xff]
  %v433 = vld [vmem:[%s2 + $0x158] sm:$0xff]
  %v434 = vld [vmem:[%s2 + $0x160] sm:$0xff]
  %v435 = vld [vmem:[%s2 + $0x168] sm:$0xff]
  %v436 = vld [vmem:[%s2 + $0x170] sm:$0xff]
  %v437 = vld [vmem:[%s2 + $0x178] sm:$0xff]
  %v438 = vld [vmem:[%s2 + $0x180] sm:$0xff]
  %v439 = vld [vmem:[%s2 + $0x188] sm:$0xff]
  %v440 = vld [vmem:[%s2 + $0x190] sm:$0xff]
  %v441 = vld [vmem:[%s2 + $0x198] sm:$0xff]
  %v442 = vld [vmem:[%s2 + $0x1a0] sm:$0xff]
  %v443 = vld [vmem:[%s2 + $0x1a8] sm:$0xff]
  %v444 = vld [vmem:[%s2 + $0x1b0] sm:$0xff]
  %v445 = vld [vmem:[%s2 + $0x1b8] sm:$0xff]
  %v446 = vld [vmem:[%s2 + $0x1c0] sm:$0xff]
  %v447 = vld [vmem:[%s2 + $0x1c8] sm:$0xff]
  %v448 = vld [vmem:[%s2 + $0x1d0] sm:$0xff]
  %v449 = vld [vmem:[%s2 + $0x1d8] sm:$0xff]
  %v450 = vld [vmem:[%s2 + $0x1e0] sm:$0xff]
  %v451 = vld [vmem:[%s2 + $0x1e8] sm:$0xff]
  %v452 = vld [vmem:[%s2 + $0x1f0] sm:$0xff]
  %v453 = vld [vmem:[%s2 + $0x1f8] sm:$0xff]
  %454 = vmatprep.subr.mxu0 %v391
  %455 = vmatpush1.msra.mxu0 %v390
  %456 = vmatprep.subr.mxu0 %v395
  %457 = vmatpush1.msra.mxu0 %v394
  %458 = vmatprep.subr.mxu0 %v399
  %459 = vmatpush1.msra.mxu0 %v398
  %460 = vmatprep.subr.mxu0 %v403
  %461 = vmatpush1.msra.mxu0 %v402
  %462 = vmatprep.subr.mxu0 %v407
  %463 = vmatpush1.msra.mxu0 %v406
  %464 = vmatprep.subr.mxu0 %v411
  %465 = vmatpush1.msra.mxu0 %v410
  %466 = vmatprep.subr.mxu0 %v415
  %467 = vmatpush1.msra.mxu0 %v414
  %468 = vmatprep.subr.mxu0 %v419
  %469 = vmatpush1.msra.mxu0 %v418
  %470 = vmatprep.subr.mxu0 %v423
  %471 = vmatpush1.msra.mxu0 %v422
  %472 = vmatprep.subr.mxu0 %v427
  %473 = vmatpush1.msra.mxu0 %v426
  %474 = vmatprep.subr.mxu0 %v431
  %475 = vmatpush1.msra.mxu0 %v430
  %476 = vmatprep.subr.mxu0 %v435
  %477 = vmatpush1.msra.mxu0 %v434
  %478 = vmatprep.subr.mxu0 %v439
  %479 = vmatpush1.msra.mxu0 %v438
  %480 = vmatprep.subr.mxu0 %v443
  %481 = vmatpush1.msra.mxu0 %v442
  %482 = vmatprep.subr.mxu0 %v447
  %483 = vmatpush1.msra.mxu0 %v446
  %484 = vmatprep.subr.mxu0 %v451
  %485 = vmatpush1.msra.mxu0 %v450
  %486 = vmatprep.subr.mxu0 0.0
  %487 = vmatpush1.msra.mxu0 0.0
  %488 = vmatprep.subr.mxu0 0.0
  %489 = vmatpush1.msra.mxu0 0.0
  %490 = vmatprep.subr.mxu0 0.0
  %491 = vmatpush1.msra.mxu0 0.0
  %492 = vmatprep.subr.mxu0 0.0
  %493 = vmatpush1.msra.mxu0 0.0
  %494 = vmatprep.subr.mxu0 0.0
  %495 = vmatpush1.msra.mxu0 0.0
  %496 = vmatprep.subr.mxu0 0.0
  %497 = vmatpush1.msra.mxu0 0.0
  %498 = vmatprep.subr.mxu0 0.0
  %499 = vmatpush1.msra.mxu0 0.0
  %500 = vmatprep.subr.mxu0 0.0
  %501 = vmatpush1.msra.mxu0 0.0
  %502 = vmatprep.subr.mxu0 0.0
  %503 = vmatpush1.msra.mxu0 0.0
  %504 = vmatprep.subr.mxu0 0.0
  %505 = vmatpush1.msra.mxu0 0.0
  %506 = vmatprep.subr.mxu0 0.0
  %507 = vmatpush1.msra.mxu0 0.0
  %508 = vmatprep.subr.mxu0 0.0
  %509 = vmatpush1.msra.mxu0 0.0
  %510 = vmatprep.subr.mxu0 0.0
  %511 = vmatpush1.msra.mxu0 0.0
  %512 = vmatprep.subr.mxu0 0.0
  %513 = vmatpush1.msra.mxu0 0.0
  %514 = vmatprep.subr.mxu0 0.0
  %515 = vmatpush1.msra.mxu0 0.0
  %516 = vmatprep.subr.mxu0 0.0
  %517 = vmatpush1.msra.mxu0 0.0
  %518 = vmatprep.mubr.f32.mxu0 0.0
  %519 = vmatmul.mubr.f32.gmra.mrb[0].mxu0 %v384
  %v520 = vpop.f32.mrb[0].mxu0
  %v521 = vadd.f32 0.0, %v520
  %v522 = vpop.f32.mrb[0].mxu0
  %v523 = vadd.f32 0.0, %v522
  %524 = vdwg.mxu0
  %525 = vmatprep.subr.mxu0 %v393
  %526 = vmatpush1.msra.mxu0 %v392
  %527 = vmatprep.subr.mxu0 %v397
  %528 = vmatpush1.msra.mxu0 %v396
  %529 = vmatprep.subr.mxu0 %v401
  %530 = vmatpush1.msra.mxu0 %v400
  %531 = vmatprep.subr.mxu0 %v405
  %532 = vmatpush1.msra.mxu0 %v404
  %533 = vmatprep.subr.mxu0 %v409
  %534 = vmatpush1.msra.mxu0 %v408
  %535 = vmatprep.subr.mxu0 %v413
  %536 = vmatpush1.msra.mxu0 %v412
  %537 = vmatprep.subr.mxu0 %v417
  %538 = vmatpush1.msra.mxu0 %v416
  %539 = vmatprep.subr.mxu0 %v421
  %540 = vmatpush1.msra.mxu0 %v420
  %541 = vmatprep.subr.mxu0 %v425
  %542 = vmatpush1.msra.mxu0 %v424
  %543 = vmatprep.subr.mxu0 %v429
  %544 = vmatpush1.msra.mxu0 %v428
  %545 = vmatprep.subr.mxu0 %v433
  %546 = vmatpush1.msra.mxu0 %v432
  %547 = vmatprep.subr.mxu0 %v437
  %548 = vmatpush1.msra.mxu0 %v436
  %549 = vmatprep.subr.mxu0 %v441
  %550 = vmatpush1.msra.mxu0 %v440
  %551 = vmatprep.subr.mxu0 %v445
  %552 = vmatpush1.msra.mxu0 %v444
  %553 = vmatprep.subr.mxu0 %v449
  %554 = vmatpush1.msra.mxu0 %v448
  %555 = vmatprep.subr.mxu0 %v453
  %556 = vmatpush1.msra.mxu0 %v452
  %557 = vmatprep.subr.mxu0 0.0
  %558 = vmatpush1.msra.mxu0 0.0
  %559 = vmatprep.subr.mxu0 0.0
  %560 = vmatpush1.msra.mxu0 0.0
  %561 = vmatprep.subr.mxu0 0.0
  %562 = vmatpush1.msra.mxu0 0.0
  %563 = vmatprep.subr.mxu0 0.0
  %564 = vmatpush1.msra.mxu0 0.0
  %565 = vmatprep.subr.mxu0 0.0
  %566 = vmatpush1.msra.mxu0 0.0
  %567 = vmatprep.subr.mxu0 0.0
  %568 = vmatpush1.msra.mxu0 0.0
  %569 = vmatprep.subr.mxu0 0.0
  %570 = vmatpush1.msra.mxu0 0.0
  %571 = vmatprep.subr.mxu0 0.0
  %572 = vmatpush1.msra.mxu0 0.0
  %573 = vmatprep.subr.mxu0 0.0
  %574 = vmatpush1.msra.mxu0 0.0
  %575 = vmatprep.subr.mxu0 0.0
  %576 = vmatpush1.msra.mxu0 0.0
  %577 = vmatprep.subr.mxu0 0.0
  %578 = vmatpush1.msra.mxu0 0.0
  %579 = vmatprep.subr.mxu0 0.0
  %580 = vmatpush1.msra.mxu0 0.0
  %581 = vmatprep.subr.mxu0 0.0
  %582 = vmatpush1.msra.mxu0 0.0
  %583 = vmatprep.subr.mxu0 0.0
  %584 = vmatpush1.msra.mxu0 0.0
  %585 = vmatprep.subr.mxu0 0.0
  %586 = vmatpush1.msra.mxu0 0.0
  %587 = vmatprep.subr.mxu0 0.0
  %588 = vmatpush1.msra.mxu0 0.0
  %589 = vmatprep.mubr.f32.mxu0 0.0
  %590 = vmatmul.mubr.f32.gmra.mrb[0].mxu0 %v384
  %v591 = vpop.f32.mrb[0].mxu0
  %v592 = vadd.f32 0.0, %v591
  %v593 = vpop.f32.mrb[0].mxu0
  %v594 = vadd.f32 0.0, %v593
  %595 = vdwg.mxu0
  %v596 = vadd.f32 %v386, %v521
  %v597 = vadd.f32 %v387, %v523
  %v598 = vadd.f32 %v388, %v592
  %v599 = vadd.f32 %v389, %v594
  %v600 = vxor.u32 %v596, 2147483648
  %v601 = vmul.f32 %v600, 1.442695
  %v602 = vpow.pop %v601
  %v603 = vadd.f32 %v602, 1.0
  %v604 = vrcp.pop %v603
  %v605 = vmul.f32 1.0, %v604
  %v606 = vxor.u32 %v597, 2147483648
  %v607 = vmul.f32 %v606, 1.442695
  %v608 = vpow.pop %v607
  %v609 = vadd.f32 %v608, 1.0
  %v610 = vrcp.pop %v609
  %v611 = vmul.f32 1.0, %v610
  %v612 = vtanh.pop %v598
  %v613 = vxor.u32 %v599, 2147483648
  %v614 = vmul.f32 %v613, 1.442695
  %v615 = vpow.pop %v614
  %v616 = vadd.f32 %v615, 1.0
  %v617 = vrcp.pop %v616
  %v618 = vmul.f32 1.0, %v617
  %v619 = vmul.f32 %v611, %v385
  %v620 = vmul.f32 %v605, %v612
  %v621 = vadd.f32 %v619, %v620
  %v622 = vtanh.pop %v621
  %v623 = vmul.f32 %v618, %v622
  %624 = vst [vmem:[#allocation3] sm:$0xff] %v623
  %s625 = scalar_lea.vmem [#allocation2], 32
  %v626 = vld [vmem:[%s625] sm:$0xff]
  %v627 = vld [vmem:[%s625 + $0x8] sm:$0xff]
  %v628 = vld [vmem:[%s625 + $0x10] sm:$0xff]
  %v629 = vld [vmem:[%s625 + $0x18] sm:$0xff]
  %v630 = vld [vmem:[%s2] sm:$0xff]
  %v631 = vld [vmem:[%s2 + $0x8] sm:$0xff]
  %v632 = vld [vmem:[%s2 + $0x10] sm:$0xff]
  %v633 = vld [vmem:[%s2 + $0x18] sm:$0xff]
  %v634 = vld [vmem:[%s2 + $0x20] sm:$0xff]
  %v635 = vld [vmem:[%s2 + $0x28] sm:$0xff]
  %v636 = vld [vmem:[%s2 + $0x30] sm:$0xff]
  %v637 = vld [vmem:[%s2 + $0x38] sm:$0xff]
  %v638 = vld [vmem:[%s2 + $0x40] sm:$0xff]
  %v639 = vld [vmem:[%s2 + $0x48] sm:$0xff]
  %v640 = vld [vmem:[%s2 + $0x50] sm:$0xff]
  %v641 = vld [vmem:[%s2 + $0x58] sm:$0xff]
  %v642 = vld [vmem:[%s2 + $0x60] sm:$0xff]
  %v643 = vld [vmem:[%s2 + $0x68] sm:$0xff]
  %v644 = vld [vmem:[%s2 + $0x70] sm:$0xff]
  %v645 = vld [vmem:[%s2 + $0x78] sm:$0xff]
  %v646 = vld [vmem:[%s2 + $0x80] sm:$0xff]
  %v647 = vld [vmem:[%s2 + $0x88] sm:$0xff]
  %v648 = vld [vmem:[%s2 + $0x90] sm:$0xff]
  %v649 = vld [vmem:[%s2 + $0x98] sm:$0xff]
  %v650 = vld [vmem:[%s2 + $0xa0] sm:$0xff]
  %v651 = vld [vmem:[%s2 + $0xa8] sm:$0xff]
  %v652 = vld [vmem:[%s2 + $0xb0] sm:$0xff]
  %v653 = vld [vmem:[%s2 + $0xb8] sm:$0xff]
  %v654 = vld [vmem:[%s2 + $0xc0] sm:$0xff]
  %v655 = vld [vmem:[%s2 + $0xc8] sm:$0xff]
  %v656 = vld [vmem:[%s2 + $0xd0] sm:$0xff]
  %v657 = vld [vmem:[%s2 + $0xd8] sm:$0xff]
  %v658 = vld [vmem:[%s2 + $0xe0] sm:$0xff]
  %v659 = vld [vmem:[%s2 + $0xe8] sm:$0xff]
  %v660 = vld [vmem:[%s2 + $0xf0] sm:$0xff]
  %v661 = vld [vmem:[%s2 + $0xf8] sm:$0xff]
  %v662 = vld [vmem:[%s2 + $0x100] sm:$0xff]
  %v663 = vld [vmem:[%s2 + $0x108] sm:$0xff]
  %v664 = vld [vmem:[%s2 + $0x110] sm:$0xff]
  %v665 = vld [vmem:[%s2 + $0x118] sm:$0xff]
  %v666 = vld [vmem:[%s2 + $0x120] sm:$0xff]
  %v667 = vld [vmem:[%s2 + $0x128] sm:$0xff]
  %v668 = vld [vmem:[%s2 + $0x130] sm:$0xff]
  %v669 = vld [vmem:[%s2 + $0x138] sm:$0xff]
  %v670 = vld [vmem:[%s2 + $0x140] sm:$0xff]
  %v671 = vld [vmem:[%s2 + $0x148] sm:$0xff]
  %v672 = vld [vmem:[%s2 + $0x150] sm:$0xff]
  %v673 = vld [vmem:[%s2 + $0x158] sm:$0xff]
  %v674 = vld [vmem:[%s2 + $0x160] sm:$0xff]
  %v675 = vld [vmem:[%s2 + $0x168] sm:$0xff]
  %v676 = vld [vmem:[%s2 + $0x170] sm:$0xff]
  %v677 = vld [vmem:[%s2 + $0x178] sm:$0xff]
  %v678 = vld [vmem:[%s2 + $0x180] sm:$0xff]
  %v679 = vld [vmem:[%s2 + $0x188] sm:$0xff]
  %v680 = vld [vmem:[%s2 + $0x190] sm:$0xff]
  %v681 = vld [vmem:[%s2 + $0x198] sm:$0xff]
  %v682 = vld [vmem:[%s2 + $0x1a0] sm:$0xff]
  %v683 = vld [vmem:[%s2 + $0x1a8] sm:$0xff]
  %v684 = vld [vmem:[%s2 + $0x1b0] sm:$0xff]
  %v685 = vld [vmem:[%s2 + $0x1b8] sm:$0xff]
  %v686 = vld [vmem:[%s2 + $0x1c0] sm:$0xff]
  %v687 = vld [vmem:[%s2 + $0x1c8] sm:$0xff]
  %v688 = vld [vmem:[%s2 + $0x1d0] sm:$0xff]
  %v689 = vld [vmem:[%s2 + $0x1d8] sm:$0xff]
  %v690 = vld [vmem:[%s2 + $0x1e0] sm:$0xff]
  %v691 = vld [vmem:[%s2 + $0x1e8] sm:$0xff]
  %v692 = vld [vmem:[%s2 + $0x1f0] sm:$0xff]
  %v693 = vld [vmem:[%s2 + $0x1f8] sm:$0xff]
  %694 = vmatprep.subr.mxu0 %v631
  %695 = vmatpush1.msra.mxu0 %v630
  %696 = vmatprep.subr.mxu0 %v635
  %697 = vmatpush1.msra.mxu0 %v634
  %698 = vmatprep.subr.mxu0 %v639
  %699 = vmatpush1.msra.mxu0 %v638
  %700 = vmatprep.subr.mxu0 %v643
  %701 = vmatpush1.msra.mxu0 %v642
  %702 = vmatprep.subr.mxu0 %v647
  %703 = vmatpush1.msra.mxu0 %v646
  %704 = vmatprep.subr.mxu0 %v651
  %705 = vmatpush1.msra.mxu0 %v650
  %706 = vmatprep.subr.mxu0 %v655
  %707 = vmatpush1.msra.mxu0 %v654
  %708 = vmatprep.subr.mxu0 %v659
  %709 = vmatpush1.msra.mxu0 %v658
  %710 = vmatprep.subr.mxu0 %v663
  %711 = vmatpush1.msra.mxu0 %v662
  %712 = vmatprep.subr.mxu0 %v667
  %713 = vmatpush1.msra.mxu0 %v666
  %714 = vmatprep.subr.mxu0 %v671
  %715 = vmatpush1.msra.mxu0 %v670
  %716 = vmatprep.subr.mxu0 %v675
  %717 = vmatpush1.msra.mxu0 %v674
  %718 = vmatprep.subr.mxu0 %v679
  %719 = vmatpush1.msra.mxu0 %v678
  %720 = vmatprep.subr.mxu0 %v683
  %721 = vmatpush1.msra.mxu0 %v682
  %722 = vmatprep.subr.mxu0 %v687
  %723 = vmatpush1.msra.mxu0 %v686
  %724 = vmatprep.subr.mxu0 %v691
  %725 = vmatpush1.msra.mxu0 %v690
  %726 = vmatprep.subr.mxu0 0.0
  %727 = vmatpush1.msra.mxu0 0.0
  %728 = vmatprep.subr.mxu0 0.0
  %729 = vmatpush1.msra.mxu0 0.0
  %730 = vmatprep.subr.mxu0 0.0
  %731 = vmatpush1.msra.mxu0 0.0
  %732 = vmatprep.subr.mxu0 0.0
  %733 = vmatpush1.msra.mxu0 0.0
  %734 = vmatprep.subr.mxu0 0.0
  %735 = vmatpush1.msra.mxu0 0.0
  %736 = vmatprep.subr.mxu0 0.0
  %737 = vmatpush1.msra.mxu0 0.0
  %738 = vmatprep.subr.mxu0 0.0
  %739 = vmatpush1.msra.mxu0 0.0
  %740 = vmatprep.subr.mxu0 0.0
  %741 = vmatpush1.msra.mxu0 0.0
  %742 = vmatprep.subr.mxu0 0.0
  %743 = vmatpush1.msra.mxu0 0.0
  %744 = vmatprep.subr.mxu0 0.0
  %745 = vmatpush1.msra.mxu0 0.0
  %746 = vmatprep.subr.mxu0 0.0
  %747 = vmatpush1.msra.mxu0 0.0
  %748 = vmatprep.subr.mxu0 0.0
  %749 = vmatpush1.msra.mxu0 0.0
  %750 = vmatprep.subr.mxu0 0.0
  %751 = vmatpush1.msra.mxu0 0.0
  %752 = vmatprep.subr.mxu0 0.0
  %753 = vmatpush1.msra.mxu0 0.0
  %754 = vmatprep.subr.mxu0 0.0
  %755 = vmatpush1.msra.mxu0 0.0
  %756 = vmatprep.subr.mxu0 0.0
  %757 = vmatpush1.msra.mxu0 0.0
  %758 = vmatprep.mubr.f32.mxu0 0.0
  %759 = vmatmul.mubr.f32.gmra.mrb[0].mxu0 %v623
  %v760 = vpop.f32.mrb[0].mxu0
  %v761 = vadd.f32 0.0, %v760
  %v762 = vpop.f32.mrb[0].mxu0
  %v763 = vadd.f32 0.0, %v762
  %764 = vdwg.mxu0
  %765 = vmatprep.subr.mxu0 %v633
  %766 = vmatpush1.msra.mxu0 %v632
  %767 = vmatprep.subr.mxu0 %v637
  %768 = vmatpush1.msra.mxu0 %v636
  %769 = vmatprep.subr.mxu0 %v641
  %770 = vmatpush1.msra.mxu0 %v640
  %771 = vmatprep.subr.mxu0 %v645
  %772 = vmatpush1.msra.mxu0 %v644
  %773 = vmatprep.subr.mxu0 %v649
  %774 = vmatpush1.msra.mxu0 %v648
  %775 = vmatprep.subr.mxu0 %v653
  %776 = vmatpush1.msra.mxu0 %v652
  %777 = vmatprep.subr.mxu0 %v657
  %778 = vmatpush1.msra.mxu0 %v656
  %779 = vmatprep.subr.mxu0 %v661
  %780 = vmatpush1.msra.mxu0 %v660
  %781 = vmatprep.subr.mxu0 %v665
  %782 = vmatpush1.msra.mxu0 %v664
  %783 = vmatprep.subr.mxu0 %v669
  %784 = vmatpush1.msra.mxu0 %v668
  %785 = vmatprep.subr.mxu0 %v673
  %786 = vmatpush1.msra.mxu0 %v672
  %787 = vmatprep.subr.mxu0 %v677
  %788 = vmatpush1.msra.mxu0 %v676
  %789 = vmatprep.subr.mxu0 %v681
  %790 = vmatpush1.msra.mxu0 %v680
  %791 = vmatprep.subr.mxu0 %v685
  %792 = vmatpush1.msra.mxu0 %v684
  %793 = vmatprep.subr.mxu0 %v689
  %794 = vmatpush1.msra.mxu0 %v688
  %795 = vmatprep.subr.mxu0 %v693
  %796 = vmatpush1.msra.mxu0 %v692
  %797 = vmatprep.subr.mxu0 0.0
  %798 = vmatpush1.msra.mxu0 0.0
  %799 = vmatprep.subr.mxu0 0.0
  %800 = vmatpush1.msra.mxu0 0.0
  %801 = vmatprep.subr.mxu0 0.0
  %802 = vmatpush1.msra.mxu0 0.0
  %803 = vmatprep.subr.mxu0 0.0
  %804 = vmatpush1.msra.mxu0 0.0
  %805 = vmatprep.subr.mxu0 0.0
  %806 = vmatpush1.msra.mxu0 0.0
  %807 = vmatprep.subr.mxu0 0.0
  %808 = vmatpush1.msra.mxu0 0.0
  %809 = vmatprep.subr.mxu0 0.0
  %810 = vmatpush1.msra.mxu0 0.0
  %811 = vmatprep.subr.mxu0 0.0
  %812 = vmatpush1.msra.mxu0 0.0
  %813 = vmatprep.subr.mxu0 0.0
  %814 = vmatpush1.msra.mxu0 0.0
  %815 = vmatprep.subr.mxu0 0.0
  %816 = vmatpush1.msra.mxu0 0.0
  %817 = vmatprep.subr.mxu0 0.0
  %818 = vmatpush1.msra.mxu0 0.0
  %819 = vmatprep.subr.mxu0 0.0
  %820 = vmatpush1.msra.mxu0 0.0
  %821 = vmatprep.subr.mxu0 0.0
  %822 = vmatpush1.msra.mxu0 0.0
  %823 = vmatprep.subr.mxu0 0.0
  %824 = vmatpush1.msra.mxu0 0.0
  %825 = vmatprep.subr.mxu0 0.0
  %826 = vmatpush1.msra.mxu0 0.0
  %827 = vmatprep.subr.mxu0 0.0
  %828 = vmatpush1.msra.mxu0 0.0
  %829 = vmatprep.mubr.f32.mxu0 0.0
  %830 = vmatmul.mubr.f32.gmra.mrb[0].mxu0 %v623
  %v831 = vpop.f32.mrb[0].mxu0
  %v832 = vadd.f32 0.0, %v831
  %v833 = vpop.f32.mrb[0].mxu0
  %v834 = vadd.f32 0.0, %v833
  %835 = vdwg.mxu0
  %v836 = vadd.f32 %v626, %v761
  %v837 = vadd.f32 %v627, %v763
  %v838 = vadd.f32 %v628, %v832
  %v839 = vadd.f32 %v629, %v834
  %v840 = vxor.u32 %v836, 2147483648
  %v841 = vmul.f32 %v840, 1.442695
  %v842 = vpow.pop %v841
  %v843 = vadd.f32 %v842, 1.0
  %v844 = vrcp.pop %v843
  %v845 = vmul.f32 1.0, %v844
  %v846 = vxor.u32 %v837, 2147483648
  %v847 = vmul.f32 %v846, 1.442695
  %v848 = vpow.pop %v847
  %v849 = vadd.f32 %v848, 1.0
  %v850 = vrcp.pop %v849
  %v851 = vmul.f32 1.0, %v850
  %v852 = vtanh.pop %v838
  %v853 = vxor.u32 %v839, 2147483648
  %v854 = vmul.f32 %v853, 1.442695
  %v855 = vpow.pop %v854
  %v856 = vadd.f32 %v855, 1.0
  %v857 = vrcp.pop %v856
  %v858 = vmul.f32 1.0, %v857
  %v859 = vmul.f32 %v851, %v621
  %v860 = vmul.f32 %v845, %v852
  %v861 = vadd.f32 %v859, %v860
  %v862 = vtanh.pop %v861
  %v863 = vmul.f32 %v858, %v862
  %s864 = scalar_lea.vmem [#allocation3], 8
  %865 = vst [vmem:[%s864] sm:$0xff] %v863
  %s866 = scalar_lea.vmem [#allocation2], 64
  %v867 = vld [vmem:[%s866] sm:$0xff]
  %v868 = vld [vmem:[%s866 + $0x8] sm:$0xff]
  %v869 = vld [vmem:[%s866 + $0x10] sm:$0xff]
  %v870 = vld [vmem:[%s866 + $0x18] sm:$0xff]
  %v871 = vld [vmem:[%s2] sm:$0xff]
  %v872 = vld [vmem:[%s2 + $0x8] sm:$0xff]
  %v873 = vld [vmem:[%s2 + $0x10] sm:$0xff]
  %v874 = vld [vmem:[%s2 + $0x18] sm:$0xff]
  %v875 = vld [vmem:[%s2 + $0x20] sm:$0xff]
  %v876 = vld [vmem:[%s2 + $0x28] sm:$0xff]
  %v877 = vld [vmem:[%s2 + $0x30] sm:$0xff]
  %v878 = vld [vmem:[%s2 + $0x38] sm:$0xff]
  %v879 = vld [vmem:[%s2 + $0x40] sm:$0xff]
  %v880 = vld [vmem:[%s2 + $0x48] sm:$0xff]
  %v881 = vld [vmem:[%s2 + $0x50] sm:$0xff]
  %v882 = vld [vmem:[%s2 + $0x58] sm:$0xff]
  %v883 = vld [vmem:[%s2 + $0x60] sm:$0xff]
  %v884 = vld [vmem:[%s2 + $0x68] sm:$0xff]
  %v885 = vld [vmem:[%s2 + $0x70] sm:$0xff]
  %v886 = vld [vmem:[%s2 + $0x78] sm:$0xff]
  %v887 = vld [vmem:[%s2 + $0x80] sm:$0xff]
  %v888 = vld [vmem:[%s2 + $0x88] sm:$0xff]
  %v889 = vld [vmem:[%s2 + $0x90] sm:$0xff]
  %v890 = vld [vmem:[%s2 + $0x98] sm:$0xff]
  %v891 = vld [vmem:[%s2 + $0xa0] sm:$0xff]
  %v892 = vld [vmem:[%s2 + $0xa8] sm:$0xff]
  %v893 = vld [vmem:[%s2 + $0xb0] sm:$0xff]
  %v894 = vld [vmem:[%s2 + $0xb8] sm:$0xff]
  %v895 = vld [vmem:[%s2 + $0xc0] sm:$0xff]
  %v896 = vld [vmem:[%s2 + $0xc8] sm:$0xff]
  %v897 = vld [vmem:[%s2 + $0xd0] sm:$0xff]
  %v898 = vld [vmem:[%s2 + $0xd8] sm:$0xff]
  %v899 = vld [vmem:[%s2 + $0xe0] sm:$0xff]
  %v900 = vld [vmem:[%s2 + $0xe8] sm:$0xff]
  %v901 = vld [vmem:[%s2 + $0xf0] sm:$0xff]
  %v902 = vld [vmem:[%s2 + $0xf8] sm:$0xff]
  %v903 = vld [vmem:[%s2 + $0x100] sm:$0xff]
  %v904 = vld [vmem:[%s2 + $0x108] sm:$0xff]
  %v905 = vld [vmem:[%s2 + $0x110] sm:$0xff]
  %v906 = vld [vmem:[%s2 + $0x118] sm:$0xff]
  %v907 = vld [vmem:[%s2 + $0x120] sm:$0xff]
  %v908 = vld [vmem:[%s2 + $0x128] sm:$0xff]
  %v909 = vld [vmem:[%s2 + $0x130] sm:$0xff]
  %v910 = vld [vmem:[%s2 + $0x138] sm:$0xff]
  %v911 = vld [vmem:[%s2 + $0x140] sm:$0xff]
  %v912 = vld [vmem:[%s2 + $0x148] sm:$0xff]
  %v913 = vld [vmem:[%s2 + $0x150] sm:$0xff]
  %v914 = vld [vmem:[%s2 + $0x158] sm:$0xff]
  %v915 = vld [vmem:[%s2 + $0x160] sm:$0xff]
  %v916 = vld [vmem:[%s2 + $0x168] sm:$0xff]
  %v917 = vld [vmem:[%s2 + $0x170] sm:$0xff]
  %v918 = vld [vmem:[%s2 + $0x178] sm:$0xff]
  %v919 = vld [vmem:[%s2 + $0x180] sm:$0xff]
  %v920 = vld [vmem:[%s2 + $0x188] sm:$0xff]
  %v921 = vld [vmem:[%s2 + $0x190] sm:$0xff]
  %v922 = vld [vmem:[%s2 + $0x198] sm:$0xff]
  %v923 = vld [vmem:[%s2 + $0x1a0] sm:$0xff]
  %v924 = vld [vmem:[%s2 + $0x1a8] sm:$0xff]
  %v925 = vld [vmem:[%s2 + $0x1b0] sm:$0xff]
  %v926 = vld [vmem:[%s2 + $0x1b8] sm:$0xff]
  %v927 = vld [vmem:[%s2 + $0x1c0] sm:$0xff]
  %v928 = vld [vmem:[%s2 + $0x1c8] sm:$0xff]
  %v929 = vld [vmem:[%s2 + $0x1d0] sm:$0xff]
  %v930 = vld [vmem:[%s2 + $0x1d8] sm:$0xff]
  %v931 = vld [vmem:[%s2 + $0x1e0] sm:$0xff]
  %v932 = vld [vmem:[%s2 + $0x1e8] sm:$0xff]
  %v933 = vld [vmem:[%s2 + $0x1f0] sm:$0xff]
  %v934 = vld [vmem:[%s2 + $0x1f8] sm:$0xff]
  %935 = vmatprep.subr.mxu0 %v872
  %936 = vmatpush1.msra.mxu0 %v871
  %937 = vmatprep.subr.mxu0 %v876
  %938 = vmatpush1.msra.mxu0 %v875
  %939 = vmatprep.subr.mxu0 %v880
  %940 = vmatpush1.msra.mxu0 %v879
  %941 = vmatprep.subr.mxu0 %v884
  %942 = vmatpush1.msra.mxu0 %v883
  %943 = vmatprep.subr.mxu0 %v888
  %944 = vmatpush1.msra.mxu0 %v887
  %945 = vmatprep.subr.mxu0 %v892
  %946 = vmatpush1.msra.mxu0 %v891
  %947 = vmatprep.subr.mxu0 %v896
  %948 = vmatpush1.msra.mxu0 %v895
  %949 = vmatprep.subr.mxu0 %v900
  %950 = vmatpush1.msra.mxu0 %v899
  %951 = vmatprep.subr.mxu0 %v904
  %952 = vmatpush1.msra.mxu0 %v903
  %953 = vmatprep.subr.mxu0 %v908
  %954 = vmatpush1.msra.mxu0 %v907
  %955 = vmatprep.subr.mxu0 %v912
  %956 = vmatpush1.msra.mxu0 %v911
  %957 = vmatprep.subr.mxu0 %v916
  %958 = vmatpush1.msra.mxu0 %v915
  %959 = vmatprep.subr.mxu0 %v920
  %960 = vmatpush1.msra.mxu0 %v919
  %961 = vmatprep.subr.mxu0 %v924
  %962 = vmatpush1.msra.mxu0 %v923
  %963 = vmatprep.subr.mxu0 %v928
  %964 = vmatpush1.msra.mxu0 %v927
  %965 = vmatprep.subr.mxu0 %v932
  %966 = vmatpush1.msra.mxu0 %v931
  %967 = vmatprep.subr.mxu0 0.0
  %968 = vmatpush1.msra.mxu0 0.0
  %969 = vmatprep.subr.mxu0 0.0
  %970 = vmatpush1.msra.mxu0 0.0
  %971 = vmatprep.subr.mxu0 0.0
  %972 = vmatpush1.msra.mxu0 0.0
  %973 = vmatprep.subr.mxu0 0.0
  %974 = vmatpush1.msra.mxu0 0.0
  %975 = vmatprep.subr.mxu0 0.0
  %976 = vmatpush1.msra.mxu0 0.0
  %977 = vmatprep.subr.mxu0 0.0
  %978 = vmatpush1.msra.mxu0 0.0
  %979 = vmatprep.subr.mxu0 0.0
  %980 = vmatpush1.msra.mxu0 0.0
  %981 = vmatprep.subr.mxu0 0.0
  %982 = vmatpush1.msra.mxu0 0.0
  %983 = vmatprep.subr.mxu0 0.0
  %984 = vmatpush1.msra.mxu0 0.0
  %985 = vmatprep.subr.mxu0 0.0
  %986 = vmatpush1.msra.mxu0 0.0
  %987 = vmatprep.subr.mxu0 0.0
  %988 = vmatpush1.msra.mxu0 0.0
  %989 = vmatprep.subr.mxu0 0.0
  %990 = vmatpush1.msra.mxu0 0.0
  %991 = vmatprep.subr.mxu0 0.0
  %992 = vmatpush1.msra.mxu0 0.0
  %993 = vmatprep.subr.mxu0 0.0
  %994 = vmatpush1.msra.mxu0 0.0
  %995 = vmatprep.subr.mxu0 0.0
  %996 = vmatpush1.msra.mxu0 0.0
  %997 = vmatprep.subr.mxu0 0.0
  %998 = vmatpush1.msra.mxu0 0.0
  %999 = vmatprep.mubr.f32.mxu0 0.0
  %1000 = vmatmul.mubr.f32.gmra.mrb[0].mxu0 %v863
  %v1001 = vpop.f32.mrb[0].mxu0
  %v1002 = vadd.f32 0.0, %v1001
  %v1003 = vpop.f32.mrb[0].mxu0
  %v1004 = vadd.f32 0.0, %v1003
  %1005 = vdwg.mxu0
  %1006 = vmatprep.subr.mxu0 %v874
  %1007 = vmatpush1.msra.mxu0 %v873
  %1008 = vmatprep.subr.mxu0 %v878
  %1009 = vmatpush1.msra.mxu0 %v877
  %1010 = vmatprep.subr.mxu0 %v882
  %1011 = vmatpush1.msra.mxu0 %v881
  %1012 = vmatprep.subr.mxu0 %v886
  %1013 = vmatpush1.msra.mxu0 %v885
  %1014 = vmatprep.subr.mxu0 %v890
  %1015 = vmatpush1.msra.mxu0 %v889
  %1016 = vmatprep.subr.mxu0 %v894
  %1017 = vmatpush1.msra.mxu0 %v893
  %1018 = vmatprep.subr.mxu0 %v898
  %1019 = vmatpush1.msra.mxu0 %v897
  %1020 = vmatprep.subr.mxu0 %v902
  %1021 = vmatpush1.msra.mxu0 %v901
  %1022 = vmatprep.subr.mxu0 %v906
  %1023 = vmatpush1.msra.mxu0 %v905
  %1024 = vmatprep.subr.mxu0 %v910
  %1025 = vmatpush1.msra.mxu0 %v909
  %1026 = vmatprep.subr.mxu0 %v914
  %1027 = vmatpush1.msra.mxu0 %v913
  %1028 = vmatprep.subr.mxu0 %v918
  %1029 = vmatpush1.msra.mxu0 %v917
  %1030 = vmatprep.subr.mxu0 %v922
  %1031 = vmatpush1.msra.mxu0 %v921
  %1032 = vmatprep.subr.mxu0 %v926
  %1033 = vmatpush1.msra.mxu0 %v925
  %1034 = vmatprep.subr.mxu0 %v930
  %1035 = vmatpush1.msra.mxu0 %v929
  %1036 = vmatprep.subr.mxu0 %v934
  %1037 = vmatpush1.msra.mxu0 %v933
  %1038 = vmatprep.subr.mxu0 0.0
  %1039 = vmatpush1.msra.mxu0 0.0
  %1040 = vmatprep.subr.mxu0 0.0
  %1041 = vmatpush1.msra.mxu0 0.0
  %1042 = vmatprep.subr.mxu0 0.0
  %1043 = vmatpush1.msra.mxu0 0.0
  %1044 = vmatprep.subr.mxu0 0.0
  %1045 = vmatpush1.msra.mxu0 0.0
  %1046 = vmatprep.subr.mxu0 0.0
  %1047 = vmatpush1.msra.mxu0 0.0
  %1048 = vmatprep.subr.mxu0 0.0
  %1049 = vmatpush1.msra.mxu0 0.0
  %1050 = vmatprep.subr.mxu0 0.0
  %1051 = vmatpush1.msra.mxu0 0.0
  %1052 = vmatprep.subr.mxu0 0.0
  %1053 = vmatpush1.msra.mxu0 0.0
  %1054 = vmatprep.subr.mxu0 0.0
  %1055 = vmatpush1.msra.mxu0 0.0
  %1056 = vmatprep.subr.mxu0 0.0
  %1057 = vmatpush1.msra.mxu0 0.0
  %1058 = vmatprep.subr.mxu0 0.0
  %1059 = vmatpush1.msra.mxu0 0.0
  %1060 = vmatprep.subr.mxu0 0.0
  %1061 = vmatpush1.msra.mxu0 0.0
  %1062 = vmatprep.subr.mxu0 0.0
  %1063 = vmatpush1.msra.mxu0 0.0
  %1064 = vmatprep.subr.mxu0 0.0
  %1065 = vmatpush1.msra.mxu0 0.0
  %1066 = vmatprep.subr.mxu0 0.0
  %1067 = vmatpush1.msra.mxu0 0.0
  %1068 = vmatprep.subr.mxu0 0.0
  %1069 = vmatpush1.msra.mxu0 0.0
  %1070 = vmatprep.mubr.f32.mxu0 0.0
  %1071 = vmatmul.mubr.f32.gmra.mrb[0].mxu0 %v863
  %v1072 = vpop.f32.mrb[0].mxu0
  %v1073 = vadd.f32 0.0, %v1072
  %v1074 = vpop.f32.mrb[0].mxu0
  %v1075 = vadd.f32 0.0, %v1074
  %1076 = vdwg.mxu0
  %v1077 = vadd.f32 %v867, %v1002
  %v1078 = vadd.f32 %v868, %v1004
  %v1079 = vadd.f32 %v869, %v1073
  %v1080 = vadd.f32 %v870, %v1075
  %v1081 = vxor.u32 %v1077, 2147483648
  %v1082 = vmul.f32 %v1081, 1.442695
  %v1083 = vpow.pop %v1082
  %v1084 = vadd.f32 %v1083, 1.0
  %v1085 = vrcp.pop %v1084
  %v1086 = vmul.f32 1.0, %v1085
  %v1087 = vxor.u32 %v1078, 2147483648
  %v1088 = vmul.f32 %v1087, 1.442695
  %v1089 = vpow.pop %v1088
  %v1090 = vadd.f32 %v1089, 1.0
  %v1091 = vrcp.pop %v1090
  %v1092 = vmul.f32 1.0, %v1091
  %v1093 = vtanh.pop %v1079
  %v1094 = vxor.u32 %v1080, 2147483648
  %v1095 = vmul.f32 %v1094, 1.442695
  %v1096 = vpow.pop %v1095
  %v1097 = vadd.f32 %v1096, 1.0
  %v1098 = vrcp.pop %v1097
  %v1099 = vmul.f32 1.0, %v1098
  %v1100 = vmul.f32 %v1092, %v861
  %v1101 = vmul.f32 %v1086, %v1093
  %v1102 = vadd.f32 %v1100, %v1101
  %v1103 = vtanh.pop %v1102
  %v1104 = vmul.f32 %v1099, %v1103
  %s1105 = scalar_lea.vmem [#allocation3], 16
  %1106 = vst [vmem:[%s1105] sm:$0xff] %v1104
  %s1107 = scalar_lea.vmem [#allocation2], 96
  %v1108 = vld [vmem:[%s1107] sm:$0xff]
  %v1109 = vld [vmem:[%s1107 + $0x8] sm:$0xff]
  %v1110 = vld [vmem:[%s1107 + $0x10] sm:$0xff]
  %v1111 = vld [vmem:[%s1107 + $0x18] sm:$0xff]
  %v1112 = vld [vmem:[%s2] sm:$0xff]
  %v1113 = vld [vmem:[%s2 + $0x8] sm:$0xff]
  %v1114 = vld [vmem:[%s2 + $0x10] sm:$0xff]
  %v1115 = vld [vmem:[%s2 + $0x18] sm:$0xff]
  %v1116 = vld [vmem:[%s2 + $0x20] sm:$0xff]
  %v1117 = vld [vmem:[%s2 + $0x28] sm:$0xff]
  %v1118 = vld [vmem:[%s2 + $0x30] sm:$0xff]
  %v1119 = vld [vmem:[%s2 + $0x38] sm:$0xff]
  %v1120 = vld [vmem:[%s2 + $0x40] sm:$0xff]
  %v1121 = vld [vmem:[%s2 + $0x48] sm:$0xff]
  %v1122 = vld [vmem:[%s2 + $0x50] sm:$0xff]
  %v1123 = vld [vmem:[%s2 + $0x58] sm:$0xff]
  %v1124 = vld [vmem:[%s2 + $0x60] sm:$0xff]
  %v1125 = vld [vmem:[%s2 + $0x68] sm:$0xff]
  %v1126 = vld [vmem:[%s2 + $0x70] sm:$0xff]
  %v1127 = vld [vmem:[%s2 + $0x78] sm:$0xff]
  %v1128 = vld [vmem:[%s2 + $0x80] sm:$0xff]
  %v1129 = vld [vmem:[%s2 + $0x88] sm:$0xff]
  %v1130 = vld [vmem:[%s2 + $0x90] sm:$0xff]
  %v1131 = vld [vmem:[%s2 + $0x98] sm:$0xff]
  %v1132 = vld [vmem:[%s2 + $0xa0] sm:$0xff]
  %v1133 = vld [vmem:[%s2 + $0xa8] sm:$0xff]
  %v1134 = vld [vmem:[%s2 + $0xb0] sm:$0xff]
  %v1135 = vld [vmem:[%s2 + $0xb8] sm:$0xff]
  %v1136 = vld [vmem:[%s2 + $0xc0] sm:$0xff]
  %v1137 = vld [vmem:[%s2 + $0xc8] sm:$0xff]
  %v1138 = vld [vmem:[%s2 + $0xd0] sm:$0xff]
  %v1139 = vld [vmem:[%s2 + $0xd8] sm:$0xff]
  %v1140 = vld [vmem:[%s2 + $0xe0] sm:$0xff]
  %v1141 = vld [vmem:[%s2 + $0xe8] sm:$0xff]
  %v1142 = vld [vmem:[%s2 + $0xf0] sm:$0xff]
  %v1143 = vld [vmem:[%s2 + $0xf8] sm:$0xff]
  %v1144 = vld [vmem:[%s2 + $0x100] sm:$0xff]
  %v1145 = vld [vmem:[%s2 + $0x108] sm:$0xff]
  %v1146 = vld [vmem:[%s2 + $0x110] sm:$0xff]
  %v1147 = vld [vmem:[%s2 + $0x118] sm:$0xff]
  %v1148 = vld [vmem:[%s2 + $0x120] sm:$0xff]
  %v1149 = vld [vmem:[%s2 + $0x128] sm:$0xff]
  %v1150 = vld [vmem:[%s2 + $0x130] sm:$0xff]
  %v1151 = vld [vmem:[%s2 + $0x138] sm:$0xff]
  %v1152 = vld [vmem:[%s2 + $0x140] sm:$0xff]
  %v1153 = vld [vmem:[%s2 + $0x148] sm:$0xff]
  %v1154 = vld [vmem:[%s2 + $0x150] sm:$0xff]
  %v1155 = vld [vmem:[%s2 + $0x158] sm:$0xff]
  %v1156 = vld [vmem:[%s2 + $0x160] sm:$0xff]
  %v1157 = vld [vmem:[%s2 + $0x168] sm:$0xff]
  %v1158 = vld [vmem:[%s2 + $0x170] sm:$0xff]
  %v1159 = vld [vmem:[%s2 + $0x178] sm:$0xff]
  %v1160 = vld [vmem:[%s2 + $0x180] sm:$0xff]
  %v1161 = vld [vmem:[%s2 + $0x188] sm:$0xff]
  %v1162 = vld [vmem:[%s2 + $0x190] sm:$0xff]
  %v1163 = vld [vmem:[%s2 + $0x198] sm:$0xff]
  %v1164 = vld [vmem:[%s2 + $0x1a0] sm:$0xff]
  %v1165 = vld [vmem:[%s2 + $0x1a8] sm:$0xff]
  %v1166 = vld [vmem:[%s2 + $0x1b0] sm:$0xff]
  %v1167 = vld [vmem:[%s2 + $0x1b8] sm:$0xff]
  %v1168 = vld [vmem:[%s2 + $0x1c0] sm:$0xff]
  %v1169 = vld [vmem:[%s2 + $0x1c8] sm:$0xff]
  %v1170 = vld [vmem:[%s2 + $0x1d0] sm:$0xff]
  %v1171 = vld [vmem:[%s2 + $0x1d8] sm:$0xff]
  %v1172 = vld [vmem:[%s2 + $0x1e0] sm:$0xff]
  %v1173 = vld [vmem:[%s2 + $0x1e8] sm:$0xff]
  %v1174 = vld [vmem:[%s2 + $0x1f0] sm:$0xff]
  %v1175 = vld [vmem:[%s2 + $0x1f8] sm:$0xff]
  %1176 = vmatprep.subr.mxu0 %v1113
  %1177 = vmatpush1.msra.mxu0 %v1112
  %1178 = vmatprep.subr.mxu0 %v1117
  %1179 = vmatpush1.msra.mxu0 %v1116
  %1180 = vmatprep.subr.mxu0 %v1121
  %1181 = vmatpush1.msra.mxu0 %v1120
  %1182 = vmatprep.subr.mxu0 %v1125
  %1183 = vmatpush1.msra.mxu0 %v1124
  %1184 = vmatprep.subr.mxu0 %v1129
  %1185 = vmatpush1.msra.mxu0 %v1128
  %1186 = vmatprep.subr.mxu0 %v1133
  %1187 = vmatpush1.msra.mxu0 %v1132
  %1188 = vmatprep.subr.mxu0 %v1137
  %1189 = vmatpush1.msra.mxu0 %v1136
  %1190 = vmatprep.subr.mxu0 %v1141
  %1191 = vmatpush1.msra.mxu0 %v1140
  %1192 = vmatprep.subr.mxu0 %v1145
  %1193 = vmatpush1.msra.mxu0 %v1144
  %1194 = vmatprep.subr.mxu0 %v1149
  %1195 = vmatpush1.msra.mxu0 %v1148
  %1196 = vmatprep.subr.mxu0 %v1153
  %1197 = vmatpush1.msra.mxu0 %v1152
  %1198 = vmatprep.subr.mxu0 %v1157
  %1199 = vmatpush1.msra.mxu0 %v1156
  %1200 = vmatprep.subr.mxu0 %v1161
  %1201 = vmatpush1.msra.mxu0 %v1160
  %1202 = vmatprep.subr.mxu0 %v1165
  %1203 = vmatpush1.msra.mxu0 %v1164
  %1204 = vmatprep.subr.mxu0 %v1169
  %1205 = vmatpush1.msra.mxu0 %v1168
  %1206 = vmatprep.subr.mxu0 %v1173
  %1207 = vmatpush1.msra.mxu0 %v1172
  %1208 = vmatprep.subr.mxu0 0.0
  %1209 = vmatpush1.msra.mxu0 0.0
  %1210 = vmatprep.subr.mxu0 0.0
  %1211 = vmatpush1.msra.mxu0 0.0
  %1212 = vmatprep.subr.mxu0 0.0
  %1213 = vmatpush1.msra.mxu0 0.0
  %1214 = vmatprep.subr.mxu0 0.0
  %1215 = vmatpush1.msra.mxu0 0.0
  %1216 = vmatprep.subr.mxu0 0.0
  %1217 = vmatpush1.msra.mxu0 0.0
  %1218 = vmatprep.subr.mxu0 0.0
  %1219 = vmatpush1.msra.mxu0 0.0
  %1220 = vmatprep.subr.mxu0 0.0
  %1221 = vmatpush1.msra.mxu0 0.0
  %1222 = vmatprep.subr.mxu0 0.0
  %1223 = vmatpush1.msra.mxu0 0.0
  %1224 = vmatprep.subr.mxu0 0.0
  %1225 = vmatpush1.msra.mxu0 0.0
  %1226 = vmatprep.subr.mxu0 0.0
  %1227 = vmatpush1.msra.mxu0 0.0
  %1228 = vmatprep.subr.mxu0 0.0
  %1229 = vmatpush1.msra.mxu0 0.0
  %1230 = vmatprep.subr.mxu0 0.0
  %1231 = vmatpush1.msra.mxu0 0.0
  %1232 = vmatprep.subr.mxu0 0.0
  %1233 = vmatpush1.msra.mxu0 0.0
  %1234 = vmatprep.subr.mxu0 0.0
  %1235 = vmatpush1.msra.mxu0 0.0
  %1236 = vmatprep.subr.mxu0 0.0
  %1237 = vmatpush1.msra.mxu0 0.0
  %1238 = vmatprep.subr.mxu0 0.0
  %1239 = vmatpush1.msra.mxu0 0.0
  %1240 = vmatprep.mubr.f32.mxu0 0.0
  %1241 = vmatmul.mubr.f32.gmra.mrb[0].mxu0 %v1104
  %v1242 = vpop.f32.mrb[0].mxu0
  %v1243 = vadd.f32 0.0, %v1242
  %v1244 = vpop.f32.mrb[0].mxu0
  %v1245 = vadd.f32 0.0, %v1244
  %1246 = vdwg.mxu0
  %1247 = vmatprep.subr.mxu0 %v1115
  %1248 = vmatpush1.msra.mxu0 %v1114
  %1249 = vmatprep.subr.mxu0 %v1119
  %1250 = vmatpush1.msra.mxu0 %v1118
  %1251 = vmatprep.subr.mxu0 %v1123
  %1252 = vmatpush1.msra.mxu0 %v1122
  %1253 = vmatprep.subr.mxu0 %v1127
  %1254 = vmatpush1.msra.mxu0 %v1126
  %1255 = vmatprep.subr.mxu0 %v1131
  %1256 = vmatpush1.msra.mxu0 %v1130
  %1257 = vmatprep.subr.mxu0 %v1135
  %1258 = vmatpush1.msra.mxu0 %v1134
  %1259 = vmatprep.subr.mxu0 %v1139
  %1260 = vmatpush1.msra.mxu0 %v1138
  %1261 = vmatprep.subr.mxu0 %v1143
  %1262 = vmatpush1.msra.mxu0 %v1142
  %1263 = vmatprep.subr.mxu0 %v1147
  %1264 = vmatpush1.msra.mxu0 %v1146
  %1265 = vmatprep.subr.mxu0 %v1151
  %1266 = vmatpush1.msra.mxu0 %v1150
  %1267 = vmatprep.subr.mxu0 %v1155
  %1268 = vmatpush1.msra.mxu0 %v1154
  %1269 = vmatprep.subr.mxu0 %v1159
  %1270 = vmatpush1.msra.mxu0 %v1158
  %1271 = vmatprep.subr.mxu0 %v1163
  %1272 = vmatpush1.msra.mxu0 %v1162
  %1273 = vmatprep.subr.mxu0 %v1167
  %1274 = vmatpush1.msra.mxu0 %v1166
  %1275 = vmatprep.subr.mxu0 %v1171
  %1276 = vmatpush1.msra.mxu0 %v1170
  %1277 = vmatprep.subr.mxu0 %v1175
  %1278 = vmatpush1.msra.mxu0 %v1174
  %1279 = vmatprep.subr.mxu0 0.0
  %1280 = vmatpush1.msra.mxu0 0.0
  %1281 = vmatprep.subr.mxu0 0.0
  %1282 = vmatpush1.msra.mxu0 0.0
  %1283 = vmatprep.subr.mxu0 0.0
  %1284 = vmatpush1.msra.mxu0 0.0
  %1285 = vmatprep.subr.mxu0 0.0
  %1286 = vmatpush1.msra.mxu0 0.0
  %1287 = vmatprep.subr.mxu0 0.0
  %1288 = vmatpush1.msra.mxu0 0.0
  %1289 = vmatprep.subr.mxu0 0.0
  %1290 = vmatpush1.msra.mxu0 0.0
  %1291 = vmatprep.subr.mxu0 0.0
  %1292 = vmatpush1.msra.mxu0 0.0
  %1293 = vmatprep.subr.mxu0 0.0
  %1294 = vmatpush1.msra.mxu0 0.0
  %1295 = vmatprep.subr.mxu0 0.0
  %1296 = vmatpush1.msra.mxu0 0.0
  %1297 = vmatprep.subr.mxu0 0.0
  %1298 = vmatpush1.msra.mxu0 0.0
  %1299 = vmatprep.subr.mxu0 0.0
  %1300 = vmatpush1.msra.mxu0 0.0
  %1301 = vmatprep.subr.mxu0 0.0
  %1302 = vmatpush1.msra.mxu0 0.0
  %1303 = vmatprep.subr.mxu0 0.0
  %1304 = vmatpush1.msra.mxu0 0.0
  %1305 = vmatprep.subr.mxu0 0.0
  %1306 = vmatpush1.msra.mxu0 0.0
  %1307 = vmatprep.subr.mxu0 0.0
  %1308 = vmatpush1.msra.mxu0 0.0
  %1309 = vmatprep.subr.mxu0 0.0
  %1310 = vmatpush1.msra.mxu0 0.0
  %1311 = vmatprep.mubr.f32.mxu0 0.0
  %1312 = vmatmul.mubr.f32.gmra.mrb[0].mxu0 %v1104
  %v1313 = vpop.f32.mrb[0].mxu0
  %v1314 = vadd.f32 0.0, %v1313
  %v1315 = vpop.f32.mrb[0].mxu0
  %v1316 = vadd.f32 0.0, %v1315
  %1317 = vdwg.mxu0
  %v1318 = vadd.f32 %v1108, %v1243
  %v1319 = vadd.f32 %v1109, %v1245
  %v1320 = vadd.f32 %v1110, %v1314
  %v1321 = vadd.f32 %v1111, %v1316
  %v1322 = vxor.u32 %v1318, 2147483648
  %v1323 = vmul.f32 %v1322, 1.442695
  %v1324 = vpow.pop %v1323
  %v1325 = vadd.f32 %v1324, 1.0
  %v1326 = vrcp.pop %v1325
  %v1327 = vmul.f32 1.0, %v1326
  %v1328 = vxor.u32 %v1319, 2147483648
  %v1329 = vmul.f32 %v1328, 1.442695
  %v1330 = vpow.pop %v1329
  %v1331 = vadd.f32 %v1330, 1.0
  %v1332 = vrcp.pop %v1331
  %v1333 = vmul.f32 1.0, %v1332
  %v1334 = vtanh.pop %v1320
  %v1335 = vxor.u32 %v1321, 2147483648
  %v1336 = vmul.f32 %v1335, 1.442695
  %v1337 = vpow.pop %v1336
  %v1338 = vadd.f32 %v1337, 1.0
  %v1339 = vrcp.pop %v1338
  %v1340 = vmul.f32 1.0, %v1339
  %v1341 = vmul.f32 %v1333, %v1102
  %v1342 = vmul.f32 %v1327, %v1334
  %v1343 = vadd.f32 %v1341, %v1342
  %v1344 = vtanh.pop %v1343
  %v1345 = vmul.f32 %v1340, %v1344
  %s1346 = scalar_lea.vmem [#allocation3], 24
  %1347 = vst [vmem:[%s1346] sm:$0xff] %v1345
  %s1348 = scalar_lea.vmem [#allocation2], 128
  %v1349 = vld [vmem:[%s1348] sm:$0xff]
  %v1350 = vld [vmem:[%s1348 + $0x8] sm:$0xff]
  %v1351 = vld [vmem:[%s1348 + $0x10] sm:$0xff]
  %v1352 = vld [vmem:[%s1348 + $0x18] sm:$0xff]
  %v1353 = vld [vmem:[%s2] sm:$0xff]
  %v1354 = vld [vmem:[%s2 + $0x8] sm:$0xff]
  %v1355 = vld [vmem:[%s2 + $0x10] sm:$0xff]
  %v1356 = vld [vmem:[%s2 + $0x18] sm:$0xff]
  %v1357 = vld [vmem:[%s2 + $0x20] sm:$0xff]
  %v1358 = vld [vmem:[%s2 + $0x28] sm:$0xff]
  %v1359 = vld [vmem:[%s2 + $0x30] sm:$0xff]
  %v1360 = vld [vmem:[%s2 + $0x38] sm:$0xff]
  %v1361 = vld [vmem:[%s2 + $0x40] sm:$0xff]
  %v1362 = vld [vmem:[%s2 + $0x48] sm:$0xff]
  %v1363 = vld [vmem:[%s2 + $0x50] sm:$0xff]
  %v1364 = vld [vmem:[%s2 + $0x58] sm:$0xff]
  %v1365 = vld [vmem:[%s2 + $0x60] sm:$0xff]
  %v1366 = vld [vmem:[%s2 + $0x68] sm:$0xff]
  %v1367 = vld [vmem:[%s2 + $0x70] sm:$0xff]
  %v1368 = vld [vmem:[%s2 + $0x78] sm:$0xff]
  %v1369 = vld [vmem:[%s2 + $0x80] sm:$0xff]
  %v1370 = vld [vmem:[%s2 + $0x88] sm:$0xff]
  %v1371 = vld [vmem:[%s2 + $0x90] sm:$0xff]
  %v1372 = vld [vmem:[%s2 + $0x98] sm:$0xff]
  %v1373 = vld [vmem:[%s2 + $0xa0] sm:$0xff]
  %v1374 = vld [vmem:[%s2 + $0xa8] sm:$0xff]
  %v1375 = vld [vmem:[%s2 + $0xb0] sm:$0xff]
  %v1376 = vld [vmem:[%s2 + $0xb8] sm:$0xff]
  %v1377 = vld [vmem:[%s2 + $0xc0] sm:$0xff]
  %v1378 = vld [vmem:[%s2 + $0xc8] sm:$0xff]
  %v1379 = vld [vmem:[%s2 + $0xd0] sm:$0xff]
  %v1380 = vld [vmem:[%s2 + $0xd8] sm:$0xff]
  %v1381 = vld [vmem:[%s2 + $0xe0] sm:$0xff]
  %v1382 = vld [vmem:[%s2 + $0xe8] sm:$0xff]
  %v1383 = vld [vmem:[%s2 + $0xf0] sm:$0xff]
  %v1384 = vld [vmem:[%s2 + $0xf8] sm:$0xff]
  %v1385 = vld [vmem:[%s2 + $0x100] sm:$0xff]
  %v1386 = vld [vmem:[%s2 + $0x108] sm:$0xff]
  %v1387 = vld [vmem:[%s2 + $0x110] sm:$0xff]
  %v1388 = vld [vmem:[%s2 + $0x118] sm:$0xff]
  %v1389 = vld [vmem:[%s2 + $0x120] sm:$0xff]
  %v1390 = vld [vmem:[%s2 + $0x128] sm:$0xff]
  %v1391 = vld [vmem:[%s2 + $0x130] sm:$0xff]
  %v1392 = vld [vmem:[%s2 + $0x138] sm:$0xff]
  %v1393 = vld [vmem:[%s2 + $0x140] sm:$0xff]
  %v1394 = vld [vmem:[%s2 + $0x148] sm:$0xff]
  %v1395 = vld [vmem:[%s2 + $0x150] sm:$0xff]
  %v1396 = vld [vmem:[%s2 + $0x158] sm:$0xff]
  %v1397 = vld [vmem:[%s2 + $0x160] sm:$0xff]
  %v1398 = vld [vmem:[%s2 + $0x168] sm:$0xff]
  %v1399 = vld [vmem:[%s2 + $0x170] sm:$0xff]
  %v1400 = vld [vmem:[%s2 + $0x178] sm:$0xff]
  %v1401 = vld [vmem:[%s2 + $0x180] sm:$0xff]
  %v1402 = vld [vmem:[%s2 + $0x188] sm:$0xff]
  %v1403 = vld [vmem:[%s2 + $0x190] sm:$0xff]
  %v1404 = vld [vmem:[%s2 + $0x198] sm:$0xff]
  %v1405 = vld [vmem:[%s2 + $0x1a0] sm:$0xff]
  %v1406 = vld [vmem:[%s2 + $0x1a8] sm:$0xff]
  %v1407 = vld [vmem:[%s2 + $0x1b0] sm:$0xff]
  %v1408 = vld [vmem:[%s2 + $0x1b8] sm:$0xff]
  %v1409 = vld [vmem:[%s2 + $0x1c0] sm:$0xff]
  %v1410 = vld [vmem:[%s2 + $0x1c8] sm:$0xff]
  %v1411 = vld [vmem:[%s2 + $0x1d0] sm:$0xff]
  %v1412 = vld [vmem:[%s2 + $0x1d8] sm:$0xff]
  %v1413 = vld [vmem:[%s2 + $0x1e0] sm:$0xff]
  %v1414 = vld [vmem:[%s2 + $0x1e8] sm:$0xff]
  %v1415 = vld [vmem:[%s2 + $0x1f0] sm:$0xff]
  %v1416 = vld [vmem:[%s2 + $0x1f8] sm:$0xff]
  %1417 = vmatprep.subr.mxu0 %v1354
  %1418 = vmatpush1.msra.mxu0 %v1353
  %1419 = vmatprep.subr.mxu0 %v1358
  %1420 = vmatpush1.msra.mxu0 %v1357
  %1421 = vmatprep.subr.mxu0 %v1362
  %1422 = vmatpush1.msra.mxu0 %v1361
  %1423 = vmatprep.subr.mxu0 %v1366
  %1424 = vmatpush1.msra.mxu0 %v1365
  %1425 = vmatprep.subr.mxu0 %v1370
  %1426 = vmatpush1.msra.mxu0 %v1369
  %1427 = vmatprep.subr.mxu0 %v1374
  %1428 = vmatpush1.msra.mxu0 %v1373
  %1429 = vmatprep.subr.mxu0 %v1378
  %1430 = vmatpush1.msra.mxu0 %v1377
  %1431 = vmatprep.subr.mxu0 %v1382
  %1432 = vmatpush1.msra.mxu0 %v1381
  %1433 = vmatprep.subr.mxu0 %v1386
  %1434 = vmatpush1.msra.mxu0 %v1385
  %1435 = vmatprep.subr.mxu0 %v1390
  %1436 = vmatpush1.msra.mxu0 %v1389
  %1437 = vmatprep.subr.mxu0 %v1394
  %1438 = vmatpush1.msra.mxu0 %v1393
  %1439 = vmatprep.subr.mxu0 %v1398
  %1440 = vmatpush1.msra.mxu0 %v1397
  %1441 = vmatprep.subr.mxu0 %v1402
  %1442 = vmatpush1.msra.mxu0 %v1401
  %1443 = vmatprep.subr.mxu0 %v1406
  %1444 = vmatpush1.msra.mxu0 %v1405
  %1445 = vmatprep.subr.mxu0 %v1410
  %1446 = vmatpush1.msra.mxu0 %v1409
  %1447 = vmatprep.subr.mxu0 %v1414
  %1448 = vmatpush1.msra.mxu0 %v1413
  %1449 = vmatprep.subr.mxu0 0.0
  %1450 = vmatpush1.msra.mxu0 0.0
  %1451 = vmatprep.subr.mxu0 0.0
  %1452 = vmatpush1.msra.mxu0 0.0
  %1453 = vmatprep.subr.mxu0 0.0
  %1454 = vmatpush1.msra.mxu0 0.0
  %1455 = vmatprep.subr.mxu0 0.0
  %1456 = vmatpush1.msra.mxu0 0.0
  %1457 = vmatprep.subr.mxu0 0.0
  %1458 = vmatpush1.msra.mxu0 0.0
  %1459 = vmatprep.subr.mxu0 0.0
  %1460 = vmatpush1.msra.mxu0 0.0
  %1461 = vmatprep.subr.mxu0 0.0
  %1462 = vmatpush1.msra.mxu0 0.0
  %1463 = vmatprep.subr.mxu0 0.0
  %1464 = vmatpush1.msra.mxu0 0.0
  %1465 = vmatprep.subr.mxu0 0.0
  %1466 = vmatpush1.msra.mxu0 0.0
  %1467 = vmatprep.subr.mxu0 0.0
  %1468 = vmatpush1.msra.mxu0 0.0
  %1469 = vmatprep.subr.mxu0 0.0
  %1470 = vmatpush1.msra.mxu0 0.0
  %1471 = vmatprep.subr.mxu0 0.0
  %1472 = vmatpush1.msra.mxu0 0.0
  %1473 = vmatprep.subr.mxu0 0.0
  %1474 = vmatpush1.msra.mxu0 0.0
  %1475 = vmatprep.subr.mxu0 0.0
  %1476 = vmatpush1.msra.mxu0 0.0
  %1477 = vmatprep.subr.mxu0 0.0
  %1478 = vmatpush1.msra.mxu0 0.0
  %1479 = vmatprep.subr.mxu0 0.0
  %1480 = vmatpush1.msra.mxu0 0.0
  %1481 = vmatprep.mubr.f32.mxu0 0.0
  %1482 = vmatmul.mubr.f32.gmra.mrb[0].mxu0 %v1345
  %v1483 = vpop.f32.mrb[0].mxu0
  %v1484 = vadd.f32 0.0, %v1483
  %v1485 = vpop.f32.mrb[0].mxu0
  %v1486 = vadd.f32 0.0, %v1485
  %1487 = vdwg.mxu0
  %1488 = vmatprep.subr.mxu0 %v1356
  %1489 = vmatpush1.msra.mxu0 %v1355
  %1490 = vmatprep.subr.mxu0 %v1360
  %1491 = vmatpush1.msra.mxu0 %v1359
  %1492 = vmatprep.subr.mxu0 %v1364
  %1493 = vmatpush1.msra.mxu0 %v1363
  %1494 = vmatprep.subr.mxu0 %v1368
  %1495 = vmatpush1.msra.mxu0 %v1367
  %1496 = vmatprep.subr.mxu0 %v1372
  %1497 = vmatpush1.msra.mxu0 %v1371
  %1498 = vmatprep.subr.mxu0 %v1376
  %1499 = vmatpush1.msra.mxu0 %v1375
  %1500 = vmatprep.subr.mxu0 %v1380
  %1501 = vmatpush1.msra.mxu0 %v1379
  %1502 = vmatprep.subr.mxu0 %v1384
  %1503 = vmatpush1.msra.mxu0 %v1383
  %1504 = vmatprep.subr.mxu0 %v1388
  %1505 = vmatpush1.msra.mxu0 %v1387
  %1506 = vmatprep.subr.mxu0 %v1392
  %1507 = vmatpush1.msra.mxu0 %v1391
  %1508 = vmatprep.subr.mxu0 %v1396
  %1509 = vmatpush1.msra.mxu0 %v1395
  %1510 = vmatprep.subr.mxu0 %v1400
  %1511 = vmatpush1.msra.mxu0 %v1399
  %1512 = vmatprep.subr.mxu0 %v1404
  %1513 = vmatpush1.msra.mxu0 %v1403
  %1514 = vmatprep.subr.mxu0 %v1408
  %1515 = vmatpush1.msra.mxu0 %v1407
  %1516 = vmatprep.subr.mxu0 %v1412
  %1517 = vmatpush1.msra.mxu0 %v1411
  %1518 = vmatprep.subr.mxu0 %v1416
  %1519 = vmatpush1.msra.mxu0 %v1415
  %1520 = vmatprep.subr.mxu0 0.0
  %1521 = vmatpush1.msra.mxu0 0.0
  %1522 = vmatprep.subr.mxu0 0.0
  %1523 = vmatpush1.msra.mxu0 0.0
  %1524 = vmatprep.subr.mxu0 0.0
  %1525 = vmatpush1.msra.mxu0 0.0
  %1526 = vmatprep.subr.mxu0 0.0
  %1527 = vmatpush1.msra.mxu0 0.0
  %1528 = vmatprep.subr.mxu0 0.0
  %1529 = vmatpush1.msra.mxu0 0.0
  %1530 = vmatprep.subr.mxu0 0.0
  %1531 = vmatpush1.msra.mxu0 0.0
  %1532 = vmatprep.subr.mxu0 0.0
  %1533 = vmatpush1.msra.mxu0 0.0
  %1534 = vmatprep.subr.mxu0 0.0
  %1535 = vmatpush1.msra.mxu0 0.0
  %1536 = vmatprep.subr.mxu0 0.0
  %1537 = vmatpush1.msra.mxu0 0.0
  %1538 = vmatprep.subr.mxu0 0.0
  %1539 = vmatpush1.msra.mxu0 0.0
  %1540 = vmatprep.subr.mxu0 0.0
  %1541 = vmatpush1.msra.mxu0 0.0
  %1542 = vmatprep.subr.mxu0 0.0
  %1543 = vmatpush1.msra.mxu0 0.0
  %1544 = vmatprep.subr.mxu0 0.0
  %1545 = vmatpush1.msra.mxu0 0.0
  %1546 = vmatprep.subr.mxu0 0.0
  %1547 = vmatpush1.msra.mxu0 0.0
  %1548 = vmatprep.subr.mxu0 0.0
  %1549 = vmatpush1.msra.mxu0 0.0
  %1550 = vmatprep.subr.mxu0 0.0
  %1551 = vmatpush1.msra.mxu0 0.0
  %1552 = vmatprep.mubr.f32.mxu0 0.0
  %1553 = vmatmul.mubr.f32.gmra.mrb[0].mxu0 %v1345
  %v1554 = vpop.f32.mrb[0].mxu0
  %v1555 = vadd.f32 0.0, %v1554
  %v1556 = vpop.f32.mrb[0].mxu0
  %v1557 = vadd.f32 0.0, %v1556
  %1558 = vdwg.mxu0
  %v1559 = vadd.f32 %v1349, %v1484
  %v1560 = vadd.f32 %v1350, %v1486
  %v1561 = vadd.f32 %v1351, %v1555
  %v1562 = vadd.f32 %v1352, %v1557
  %v1563 = vxor.u32 %v1559, 2147483648
  %v1564 = vmul.f32 %v1563, 1.442695
  %v1565 = vpow.pop %v1564
  %v1566 = vadd.f32 %v1565, 1.0
  %v1567 = vrcp.pop %v1566
  %v1568 = vmul.f32 1.0, %v1567
  %v1569 = vxor.u32 %v1560, 2147483648
  %v1570 = vmul.f32 %v1569, 1.442695
  %v1571 = vpow.pop %v1570
  %v1572 = vadd.f32 %v1571, 1.0
  %v1573 = vrcp.pop %v1572
  %v1574 = vmul.f32 1.0, %v1573
  %v1575 = vtanh.pop %v1561
  %v1576 = vxor.u32 %v1562, 2147483648
  %v1577 = vmul.f32 %v1576, 1.442695
  %v1578 = vpow.pop %v1577
  %v1579 = vadd.f32 %v1578, 1.0
  %v1580 = vrcp.pop %v1579
  %v1581 = vmul.f32 1.0, %v1580
  %v1582 = vmul.f32 %v1574, %v1343
  %v1583 = vmul.f32 %v1568, %v1575
  %v1584 = vadd.f32 %v1582, %v1583
  %v1585 = vtanh.pop %v1584
  %v1586 = vmul.f32 %v1581, %v1585
  %s1587 = scalar_lea.vmem [#allocation3], 32
  %1588 = vst [vmem:[%s1587] sm:$0xff] %v1586
  %s1589 = scalar_lea.vmem [#allocation2], 160
  %v1590 = vld [vmem:[%s1589] sm:$0xff]
  %v1591 = vld [vmem:[%s1589 + $0x8] sm:$0xff]
  %v1592 = vld [vmem:[%s1589 + $0x10] sm:$0xff]
  %v1593 = vld [vmem:[%s1589 + $0x18] sm:$0xff]
  %v1594 = vld [vmem:[%s2] sm:$0xff]
  %v1595 = vld [vmem:[%s2 + $0x8] sm:$0xff]
  %v1596 = vld [vmem:[%s2 + $0x10] sm:$0xff]
  %v1597 = vld [vmem:[%s2 + $0x18] sm:$0xff]
  %v1598 = vld [vmem:[%s2 + $0x20] sm:$0xff]
  %v1599 = vld [vmem:[%s2 + $0x28] sm:$0xff]
  %v1600 = vld [vmem:[%s2 + $0x30] sm:$0xff]
  %v1601 = vld [vmem:[%s2 + $0x38] sm:$0xff]
  %v1602 = vld [vmem:[%s2 + $0x40] sm:$0xff]
  %v1603 = vld [vmem:[%s2 + $0x48] sm:$0xff]
  %v1604 = vld [vmem:[%s2 + $0x50] sm:$0xff]
  %v1605 = vld [vmem:[%s2 + $0x58] sm:$0xff]
  %v1606 = vld [vmem:[%s2 + $0x60] sm:$0xff]
  %v1607 = vld [vmem:[%s2 + $0x68] sm:$0xff]
  %v1608 = vld [vmem:[%s2 + $0x70] sm:$0xff]
  %v1609 = vld [vmem:[%s2 + $0x78] sm:$0xff]
  %v1610 = vld [vmem:[%s2 + $0x80] sm:$0xff]
  %v1611 = vld [vmem:[%s2 + $0x88] sm:$0xff]
  %v1612 = vld [vmem:[%s2 + $0x90] sm:$0xff]
  %v1613 = vld [vmem:[%s2 + $0x98] sm:$0xff]
  %v1614 = vld [vmem:[%s2 + $0xa0] sm:$0xff]
  %v1615 = vld [vmem:[%s2 + $0xa8] sm:$0xff]
  %v1616 = vld [vmem:[%s2 + $0xb0] sm:$0xff]
  %v1617 = vld [vmem:[%s2 + $0xb8] sm:$0xff]
  %v1618 = vld [vmem:[%s2 + $0xc0] sm:$0xff]
  %v1619 = vld [vmem:[%s2 + $0xc8] sm:$0xff]
  %v1620 = vld [vmem:[%s2 + $0xd0] sm:$0xff]
  %v1621 = vld [vmem:[%s2 + $0xd8] sm:$0xff]
  %v1622 = vld [vmem:[%s2 + $0xe0] sm:$0xff]
  %v1623 = vld [vmem:[%s2 + $0xe8] sm:$0xff]
  %v1624 = vld [vmem:[%s2 + $0xf0] sm:$0xff]
  %v1625 = vld [vmem:[%s2 + $0xf8] sm:$0xff]
  %v1626 = vld [vmem:[%s2 + $0x100] sm:$0xff]
  %v1627 = vld [vmem:[%s2 + $0x108] sm:$0xff]
  %v1628 = vld [vmem:[%s2 + $0x110] sm:$0xff]
  %v1629 = vld [vmem:[%s2 + $0x118] sm:$0xff]
  %v1630 = vld [vmem:[%s2 + $0x120] sm:$0xff]
  %v1631 = vld [vmem:[%s2 + $0x128] sm:$0xff]
  %v1632 = vld [vmem:[%s2 + $0x130] sm:$0xff]
  %v1633 = vld [vmem:[%s2 + $0x138] sm:$0xff]
  %v1634 = vld [vmem:[%s2 + $0x140] sm:$0xff]
  %v1635 = vld [vmem:[%s2 + $0x148] sm:$0xff]
  %v1636 = vld [vmem:[%s2 + $0x150] sm:$0xff]
  %v1637 = vld [vmem:[%s2 + $0x158] sm:$0xff]
  %v1638 = vld [vmem:[%s2 + $0x160] sm:$0xff]
  %v1639 = vld [vmem:[%s2 + $0x168] sm:$0xff]
  %v1640 = vld [vmem:[%s2 + $0x170] sm:$0xff]
  %v1641 = vld [vmem:[%s2 + $0x178] sm:$0xff]
  %v1642 = vld [vmem:[%s2 + $0x180] sm:$0xff]
  %v1643 = vld [vmem:[%s2 + $0x188] sm:$0xff]
  %v1644 = vld [vmem:[%s2 + $0x190] sm:$0xff]
  %v1645 = vld [vmem:[%s2 + $0x198] sm:$0xff]
  %v1646 = vld [vmem:[%s2 + $0x1a0] sm:$0xff]
  %v1647 = vld [vmem:[%s2 + $0x1a8] sm:$0xff]
  %v1648 = vld [vmem:[%s2 + $0x1b0] sm:$0xff]
  %v1649 = vld [vmem:[%s2 + $0x1b8] sm:$0xff]
  %v1650 = vld [vmem:[%s2 + $0x1c0] sm:$0xff]
  %v1651 = vld [vmem:[%s2 + $0x1c8] sm:$0xff]
  %v1652 = vld [vmem:[%s2 + $0x1d0] sm:$0xff]
  %v1653 = vld [vmem:[%s2 + $0x1d8] sm:$0xff]
  %v1654 = vld [vmem:[%s2 + $0x1e0] sm:$0xff]
  %v1655 = vld [vmem:[%s2 + $0x1e8] sm:$0xff]
  %v1656 = vld [vmem:[%s2 + $0x1f0] sm:$0xff]
  %v1657 = vld [vmem:[%s2 + $0x1f8] sm:$0xff]
  %1658 = vmatprep.subr.mxu0 %v1595
  %1659 = vmatpush1.msra.mxu0 %v1594
  %1660 = vmatprep.subr.mxu0 %v1599
  %1661 = vmatpush1.msra.mxu0 %v1598
  %1662 = vmatprep.subr.mxu0 %v1603
  %1663 = vmatpush1.msra.mxu0 %v1602
  %1664 = vmatprep.subr.mxu0 %v1607
  %1665 = vmatpush1.msra.mxu0 %v1606
  %1666 = vmatprep.subr.mxu0 %v1611
  %1667 = vmatpush1.msra.mxu0 %v1610
  %1668 = vmatprep.subr.mxu0 %v1615
  %1669 = vmatpush1.msra.mxu0 %v1614
  %1670 = vmatprep.subr.mxu0 %v1619
  %1671 = vmatpush1.msra.mxu0 %v1618
  %1672 = vmatprep.subr.mxu0 %v1623
  %1673 = vmatpush1.msra.mxu0 %v1622
  %1674 = vmatprep.subr.mxu0 %v1627
  %1675 = vmatpush1.msra.mxu0 %v1626
  %1676 = vmatprep.subr.mxu0 %v1631
  %1677 = vmatpush1.msra.mxu0 %v1630
  %1678 = vmatprep.subr.mxu0 %v1635
  %1679 = vmatpush1.msra.mxu0 %v1634
  %1680 = vmatprep.subr.mxu0 %v1639
  %1681 = vmatpush1.msra.mxu0 %v1638
  %1682 = vmatprep.subr.mxu0 %v1643
  %1683 = vmatpush1.msra.mxu0 %v1642
  %1684 = vmatprep.subr.mxu0 %v1647
  %1685 = vmatpush1.msra.mxu0 %v1646
  %1686 = vmatprep.subr.mxu0 %v1651
  %1687 = vmatpush1.msra.mxu0 %v1650
  %1688 = vmatprep.subr.mxu0 %v1655
  %1689 = vmatpush1.msra.mxu0 %v1654
  %1690 = vmatprep.subr.mxu0 0.0
  %1691 = vmatpush1.msra.mxu0 0.0
  %1692 = vmatprep.subr.mxu0 0.0
  %1693 = vmatpush1.msra.mxu0 0.0
  %1694 = vmatprep.subr.mxu0 0.0
  %1695 = vmatpush1.msra.mxu0 0.0
  %1696 = vmatprep.subr.mxu0 0.0
  %1697 = vmatpush1.msra.mxu0 0.0
  %1698 = vmatprep.subr.mxu0 0.0
  %1699 = vmatpush1.msra.mxu0 0.0
  %1700 = vmatprep.subr.mxu0 0.0
  %1701 = vmatpush1.msra.mxu0 0.0
  %1702 = vmatprep.subr.mxu0 0.0
  %1703 = vmatpush1.msra.mxu0 0.0
  %1704 = vmatprep.subr.mxu0 0.0
  %1705 = vmatpush1.msra.mxu0 0.0
  %1706 = vmatprep.subr.mxu0 0.0
  %1707 = vmatpush1.msra.mxu0 0.0
  %1708 = vmatprep.subr.mxu0 0.0
  %1709 = vmatpush1.msra.mxu0 0.0
  %1710 = vmatprep.subr.mxu0 0.0
  %1711 = vmatpush1.msra.mxu0 0.0
  %1712 = vmatprep.subr.mxu0 0.0
  %1713 = vmatpush1.msra.mxu0 0.0
  %1714 = vmatprep.subr.mxu0 0.0
  %1715 = vmatpush1.msra.mxu0 0.0
  %1716 = vmatprep.subr.mxu0 0.0
  %1717 = vmatpush1.msra.mxu0 0.0
  %1718 = vmatprep.subr.mxu0 0.0
  %1719 = vmatpush1.msra.mxu0 0.0
  %1720 = vmatprep.subr.mxu0 0.0
  %1721 = vmatpush1.msra.mxu0 0.0
  %1722 = vmatprep.mubr.f32.mxu0 0.0
  %1723 = vmatmul.mubr.f32.gmra.mrb[0].mxu0 %v1586
  %v1724 = vpop.f32.mrb[0].mxu0
  %v1725 = vadd.f32 0.0, %v1724
  %v1726 = vpop.f32.mrb[0].mxu0
  %v1727 = vadd.f32 0.0, %v1726
  %1728 = vdwg.mxu0
  %1729 = vmatprep.subr.mxu0 %v1597
  %1730 = vmatpush1.msra.mxu0 %v1596
  %1731 = vmatprep.subr.mxu0 %v1601
  %1732 = vmatpush1.msra.mxu0 %v1600
  %1733 = vmatprep.subr.mxu0 %v1605
  %1734 = vmatpush1.msra.mxu0 %v1604
  %1735 = vmatprep.subr.mxu0 %v1609
  %1736 = vmatpush1.msra.mxu0 %v1608
  %1737 = vmatprep.subr.mxu0 %v1613
  %1738 = vmatpush1.msra.mxu0 %v1612
  %1739 = vmatprep.subr.mxu0 %v1617
  %1740 = vmatpush1.msra.mxu0 %v1616
  %1741 = vmatprep.subr.mxu0 %v1621
  %1742 = vmatpush1.msra.mxu0 %v1620
  %1743 = vmatprep.subr.mxu0 %v1625
  %1744 = vmatpush1.msra.mxu0 %v1624
  %1745 = vmatprep.subr.mxu0 %v1629
  %1746 = vmatpush1.msra.mxu0 %v1628
  %1747 = vmatprep.subr.mxu0 %v1633
  %1748 = vmatpush1.msra.mxu0 %v1632
  %1749 = vmatprep.subr.mxu0 %v1637
  %1750 = vmatpush1.msra.mxu0 %v1636
  %1751 = vmatprep.subr.mxu0 %v1641
  %1752 = vmatpush1.msra.mxu0 %v1640
  %1753 = vmatprep.subr.mxu0 %v1645
  %1754 = vmatpush1.msra.mxu0 %v1644
  %1755 = vmatprep.subr.mxu0 %v1649
  %1756 = vmatpush1.msra.mxu0 %v1648
  %1757 = vmatprep.subr.mxu0 %v1653
  %1758 = vmatpush1.msra.mxu0 %v1652
  %1759 = vmatprep.subr.mxu0 %v1657
  %1760 = vmatpush1.msra.mxu0 %v1656
  %1761 = vmatprep.subr.mxu0 0.0
  %1762 = vmatpush1.msra.mxu0 0.0
  %1763 = vmatprep.subr.mxu0 0.0
  %1764 = vmatpush1.msra.mxu0 0.0
  %1765 = vmatprep.subr.mxu0 0.0
  %1766 = vmatpush1.msra.mxu0 0.0
  %1767 = vmatprep.subr.mxu0 0.0
  %1768 = vmatpush1.msra.mxu0 0.0
  %1769 = vmatprep.subr.mxu0 0.0
  %1770 = vmatpush1.msra.mxu0 0.0
  %1771 = vmatprep.subr.mxu0 0.0
  %1772 = vmatpush1.msra.mxu0 0.0
  %1773 = vmatprep.subr.mxu0 0.0
  %1774 = vmatpush1.msra.mxu0 0.0
  %1775 = vmatprep.subr.mxu0 0.0
  %1776 = vmatpush1.msra.mxu0 0.0
  %1777 = vmatprep.subr.mxu0 0.0
  %1778 = vmatpush1.msra.mxu0 0.0
  %1779 = vmatprep.subr.mxu0 0.0
  %1780 = vmatpush1.msra.mxu0 0.0
  %1781 = vmatprep.subr.mxu0 0.0
  %1782 = vmatpush1.msra.mxu0 0.0
  %1783 = vmatprep.subr.mxu0 0.0
  %1784 = vmatpush1.msra.mxu0 0.0
  %1785 = vmatprep.subr.mxu0 0.0
  %1786 = vmatpush1.msra.mxu0 0.0
  %1787 = vmatprep.subr.mxu0 0.0
  %1788 = vmatpush1.msra.mxu0 0.0
  %1789 = vmatprep.subr.mxu0 0.0
  %1790 = vmatpush1.msra.mxu0 0.0
  %1791 = vmatprep.subr.mxu0 0.0
  %1792 = vmatpush1.msra.mxu0 0.0
  %1793 = vmatprep.mubr.f32.mxu0 0.0
  %1794 = vmatmul.mubr.f32.gmra.mrb[0].mxu0 %v1586
  %v1795 = vpop.f32.mrb[0].mxu0
  %v1796 = vadd.f32 0.0, %v1795
  %v1797 = vpop.f32.mrb[0].mxu0
  %v1798 = vadd.f32 0.0, %v1797
  %1799 = vdwg.mxu0
  %v1800 = vadd.f32 %v1590, %v1725
  %v1801 = vadd.f32 %v1591, %v1727
  %v1802 = vadd.f32 %v1592, %v1796
  %v1803 = vadd.f32 %v1593, %v1798
  %v1804 = vxor.u32 %v1800, 2147483648
  %v1805 = vmul.f32 %v1804, 1.442695
  %v1806 = vpow.pop %v1805
  %v1807 = vadd.f32 %v1806, 1.0
  %v1808 = vrcp.pop %v1807
  %v1809 = vmul.f32 1.0, %v1808
  %v1810 = vxor.u32 %v1801, 2147483648
  %v1811 = vmul.f32 %v1810, 1.442695
  %v1812 = vpow.pop %v1811
  %v1813 = vadd.f32 %v1812, 1.0
  %v1814 = vrcp.pop %v1813
  %v1815 = vmul.f32 1.0, %v1814
  %v1816 = vtanh.pop %v1802
  %v1817 = vxor.u32 %v1803, 2147483648
  %v1818 = vmul.f32 %v1817, 1.442695
  %v1819 = vpow.pop %v1818
  %v1820 = vadd.f32 %v1819, 1.0
  %v1821 = vrcp.pop %v1820
  %v1822 = vmul.f32 1.0, %v1821
  %v1823 = vmul.f32 %v1815, %v1584
  %v1824 = vmul.f32 %v1809, %v1816
  %v1825 = vadd.f32 %v1823, %v1824
  %v1826 = vtanh.pop %v1825
  %v1827 = vmul.f32 %v1822, %v1826
  %s1828 = scalar_lea.vmem [#allocation3], 40
  %1829 = vst [vmem:[%s1828] sm:$0xff] %v1827
  %s1830 = scalar_lea.vmem [#allocation2], 192
  %v1831 = vld [vmem:[%s1830] sm:$0xff]
  %v1832 = vld [vmem:[%s1830 + $0x8] sm:$0xff]
  %v1833 = vld [vmem:[%s1830 + $0x10] sm:$0xff]
  %v1834 = vld [vmem:[%s1830 + $0x18] sm:$0xff]
  %v1835 = vld [vmem:[%s2] sm:$0xff]
  %v1836 = vld [vmem:[%s2 + $0x8] sm:$0xff]
  %v1837 = vld [vmem:[%s2 + $0x10] sm:$0xff]
  %v1838 = vld [vmem:[%s2 + $0x18] sm:$0xff]
  %v1839 = vld [vmem:[%s2 + $0x20] sm:$0xff]
  %v1840 = vld [vmem:[%s2 + $0x28] sm:$0xff]
  %v1841 = vld [vmem:[%s2 + $0x30] sm:$0xff]
  %v1842 = vld [vmem:[%s2 + $0x38] sm:$0xff]
  %v1843 = vld [vmem:[%s2 + $0x40] sm:$0xff]
  %v1844 = vld [vmem:[%s2 + $0x48] sm:$0xff]
  %v1845 = vld [vmem:[%s2 + $0x50] sm:$0xff]
  %v1846 = vld [vmem:[%s2 + $0x58] sm:$0xff]
  %v1847 = vld [vmem:[%s2 + $0x60] sm:$0xff]
  %v1848 = vld [vmem:[%s2 + $0x68] sm:$0xff]
  %v1849 = vld [vmem:[%s2 + $0x70] sm:$0xff]
  %v1850 = vld [vmem:[%s2 + $0x78] sm:$0xff]
  %v1851 = vld [vmem:[%s2 + $0x80] sm:$0xff]
  %v1852 = vld [vmem:[%s2 + $0x88] sm:$0xff]
  %v1853 = vld [vmem:[%s2 + $0x90] sm:$0xff]
  %v1854 = vld [vmem:[%s2 + $0x98] sm:$0xff]
  %v1855 = vld [vmem:[%s2 + $0xa0] sm:$0xff]
  %v1856 = vld [vmem:[%s2 + $0xa8] sm:$0xff]
  %v1857 = vld [vmem:[%s2 + $0xb0] sm:$0xff]
  %v1858 = vld [vmem:[%s2 + $0xb8] sm:$0xff]
  %v1859 = vld [vmem:[%s2 + $0xc0] sm:$0xff]
  %v1860 = vld [vmem:[%s2 + $0xc8] sm:$0xff]
  %v1861 = vld [vmem:[%s2 + $0xd0] sm:$0xff]
  %v1862 = vld [vmem:[%s2 + $0xd8] sm:$0xff]
  %v1863 = vld [vmem:[%s2 + $0xe0] sm:$0xff]
  %v1864 = vld [vmem:[%s2 + $0xe8] sm:$0xff]
  %v1865 = vld [vmem:[%s2 + $0xf0] sm:$0xff]
  %v1866 = vld [vmem:[%s2 + $0xf8] sm:$0xff]
  %v1867 = vld [vmem:[%s2 + $0x100] sm:$0xff]
  %v1868 = vld [vmem:[%s2 + $0x108] sm:$0xff]
  %v1869 = vld [vmem:[%s2 + $0x110] sm:$0xff]
  %v1870 = vld [vmem:[%s2 + $0x118] sm:$0xff]
  %v1871 = vld [vmem:[%s2 + $0x120] sm:$0xff]
  %v1872 = vld [vmem:[%s2 + $0x128] sm:$0xff]
  %v1873 = vld [vmem:[%s2 + $0x130] sm:$0xff]
  %v1874 = vld [vmem:[%s2 + $0x138] sm:$0xff]
  %v1875 = vld [vmem:[%s2 + $0x140] sm:$0xff]
  %v1876 = vld [vmem:[%s2 + $0x148] sm:$0xff]
  %v1877 = vld [vmem:[%s2 + $0x150] sm:$0xff]
  %v1878 = vld [vmem:[%s2 + $0x158] sm:$0xff]
  %v1879 = vld [vmem:[%s2 + $0x160] sm:$0xff]
  %v1880 = vld [vmem:[%s2 + $0x168] sm:$0xff]
  %v1881 = vld [vmem:[%s2 + $0x170] sm:$0xff]
  %v1882 = vld [vmem:[%s2 + $0x178] sm:$0xff]
  %v1883 = vld [vmem:[%s2 + $0x180] sm:$0xff]
  %v1884 = vld [vmem:[%s2 + $0x188] sm:$0xff]
  %v1885 = vld [vmem:[%s2 + $0x190] sm:$0xff]
  %v1886 = vld [vmem:[%s2 + $0x198] sm:$0xff]
  %v1887 = vld [vmem:[%s2 + $0x1a0] sm:$0xff]
  %v1888 = vld [vmem:[%s2 + $0x1a8] sm:$0xff]
  %v1889 = vld [vmem:[%s2 + $0x1b0] sm:$0xff]
  %v1890 = vld [vmem:[%s2 + $0x1b8] sm:$0xff]
  %v1891 = vld [vmem:[%s2 + $0x1c0] sm:$0xff]
  %v1892 = vld [vmem:[%s2 + $0x1c8] sm:$0xff]
  %v1893 = vld [vmem:[%s2 + $0x1d0] sm:$0xff]
  %v1894 = vld [vmem:[%s2 + $0x1d8] sm:$0xff]
  %v1895 = vld [vmem:[%s2 + $0x1e0] sm:$0xff]
  %v1896 = vld [vmem:[%s2 + $0x1e8] sm:$0xff]
  %v1897 = vld [vmem:[%s2 + $0x1f0] sm:$0xff]
  %v1898 = vld [vmem:[%s2 + $0x1f8] sm:$0xff]
  %1899 = vmatprep.subr.mxu0 %v1836
  %1900 = vmatpush1.msra.mxu0 %v1835
  %1901 = vmatprep.subr.mxu0 %v1840
  %1902 = vmatpush1.msra.mxu0 %v1839
  %1903 = vmatprep.subr.mxu0 %v1844
  %1904 = vmatpush1.msra.mxu0 %v1843
  %1905 = vmatprep.subr.mxu0 %v1848
  %1906 = vmatpush1.msra.mxu0 %v1847
  %1907 = vmatprep.subr.mxu0 %v1852
  %1908 = vmatpush1.msra.mxu0 %v1851
  %1909 = vmatprep.subr.mxu0 %v1856
  %1910 = vmatpush1.msra.mxu0 %v1855
  %1911 = vmatprep.subr.mxu0 %v1860
  %1912 = vmatpush1.msra.mxu0 %v1859
  %1913 = vmatprep.subr.mxu0 %v1864
  %1914 = vmatpush1.msra.mxu0 %v1863
  %1915 = vmatprep.subr.mxu0 %v1868
  %1916 = vmatpush1.msra.mxu0 %v1867
  %1917 = vmatprep.subr.mxu0 %v1872
  %1918 = vmatpush1.msra.mxu0 %v1871
  %1919 = vmatprep.subr.mxu0 %v1876
  %1920 = vmatpush1.msra.mxu0 %v1875
  %1921 = vmatprep.subr.mxu0 %v1880
  %1922 = vmatpush1.msra.mxu0 %v1879
  %1923 = vmatprep.subr.mxu0 %v1884
  %1924 = vmatpush1.msra.mxu0 %v1883
  %1925 = vmatprep.subr.mxu0 %v1888
  %1926 = vmatpush1.msra.mxu0 %v1887
  %1927 = vmatprep.subr.mxu0 %v1892
  %1928 = vmatpush1.msra.mxu0 %v1891
  %1929 = vmatprep.subr.mxu0 %v1896
  %1930 = vmatpush1.msra.mxu0 %v1895
  %1931 = vmatprep.subr.mxu0 0.0
  %1932 = vmatpush1.msra.mxu0 0.0
  %1933 = vmatprep.subr.mxu0 0.0
  %1934 = vmatpush1.msra.mxu0 0.0
  %1935 = vmatprep.subr.mxu0 0.0
  %1936 = vmatpush1.msra.mxu0 0.0
  %1937 = vmatprep.subr.mxu0 0.0
  %1938 = vmatpush1.msra.mxu0 0.0
  %1939 = vmatprep.subr.mxu0 0.0
  %1940 = vmatpush1.msra.mxu0 0.0
  %1941 = vmatprep.subr.mxu0 0.0
  %1942 = vmatpush1.msra.mxu0 0.0
  %1943 = vmatprep.subr.mxu0 0.0
  %1944 = vmatpush1.msra.mxu0 0.0
  %1945 = vmatprep.subr.mxu0 0.0
  %1946 = vmatpush1.msra.mxu0 0.0
  %1947 = vmatprep.subr.mxu0 0.0
  %1948 = vmatpush1.msra.mxu0 0.0
  %1949 = vmatprep.subr.mxu0 0.0
  %1950 = vmatpush1.msra.mxu0 0.0
  %1951 = vmatprep.subr.mxu0 0.0
  %1952 = vmatpush1.msra.mxu0 0.0
  %1953 = vmatprep.subr.mxu0 0.0
  %1954 = vmatpush1.msra.mxu0 0.0
  %1955 = vmatprep.subr.mxu0 0.0
  %1956 = vmatpush1.msra.mxu0 0.0
  %1957 = vmatprep.subr.mxu0 0.0
  %1958 = vmatpush1.msra.mxu0 0.0
  %1959 = vmatprep.subr.mxu0 0.0
  %1960 = vmatpush1.msra.mxu0 0.0
  %1961 = vmatprep.subr.mxu0 0.0
  %1962 = vmatpush1.msra.mxu0 0.0
  %1963 = vmatprep.mubr.f32.mxu0 0.0
  %1964 = vmatmul.mubr.f32.gmra.mrb[0].mxu0 %v1827
  %v1965 = vpop.f32.mrb[0].mxu0
  %v1966 = vadd.f32 0.0, %v1965
  %v1967 = vpop.f32.mrb[0].mxu0
  %v1968 = vadd.f32 0.0, %v1967
  %1969 = vdwg.mxu0
  %1970 = vmatprep.subr.mxu0 %v1838
  %1971 = vmatpush1.msra.mxu0 %v1837
  %1972 = vmatprep.subr.mxu0 %v1842
  %1973 = vmatpush1.msra.mxu0 %v1841
  %1974 = vmatprep.subr.mxu0 %v1846
  %1975 = vmatpush1.msra.mxu0 %v1845
  %1976 = vmatprep.subr.mxu0 %v1850
  %1977 = vmatpush1.msra.mxu0 %v1849
  %1978 = vmatprep.subr.mxu0 %v1854
  %1979 = vmatpush1.msra.mxu0 %v1853
  %1980 = vmatprep.subr.mxu0 %v1858
  %1981 = vmatpush1.msra.mxu0 %v1857
  %1982 = vmatprep.subr.mxu0 %v1862
  %1983 = vmatpush1.msra.mxu0 %v1861
  %1984 = vmatprep.subr.mxu0 %v1866
  %1985 = vmatpush1.msra.mxu0 %v1865
  %1986 = vmatprep.subr.mxu0 %v1870
  %1987 = vmatpush1.msra.mxu0 %v1869
  %1988 = vmatprep.subr.mxu0 %v1874
  %1989 = vmatpush1.msra.mxu0 %v1873
  %1990 = vmatprep.subr.mxu0 %v1878
  %1991 = vmatpush1.msra.mxu0 %v1877
  %1992 = vmatprep.subr.mxu0 %v1882
  %1993 = vmatpush1.msra.mxu0 %v1881
  %1994 = vmatprep.subr.mxu0 %v1886
  %1995 = vmatpush1.msra.mxu0 %v1885
  %1996 = vmatprep.subr.mxu0 %v1890
  %1997 = vmatpush1.msra.mxu0 %v1889
  %1998 = vmatprep.subr.mxu0 %v1894
  %1999 = vmatpush1.msra.mxu0 %v1893
  %2000 = vmatprep.subr.mxu0 %v1898
  %2001 = vmatpush1.msra.mxu0 %v1897
  %2002 = vmatprep.subr.mxu0 0.0
  %2003 = vmatpush1.msra.mxu0 0.0
  %2004 = vmatprep.subr.mxu0 0.0
  %2005 = vmatpush1.msra.mxu0 0.0
  %2006 = vmatprep.subr.mxu0 0.0
  %2007 = vmatpush1.msra.mxu0 0.0
  %2008 = vmatprep.subr.mxu0 0.0
  %2009 = vmatpush1.msra.mxu0 0.0
  %2010 = vmatprep.subr.mxu0 0.0
  %2011 = vmatpush1.msra.mxu0 0.0
  %2012 = vmatprep.subr.mxu0 0.0
  %2013 = vmatpush1.msra.mxu0 0.0
  %2014 = vmatprep.subr.mxu0 0.0
  %2015 = vmatpush1.msra.mxu0 0.0
  %2016 = vmatprep.subr.mxu0 0.0
  %2017 = vmatpush1.msra.mxu0 0.0
  %2018 = vmatprep.subr.mxu0 0.0
  %2019 = vmatpush1.msra.mxu0 0.0
  %2020 = vmatprep.subr.mxu0 0.0
  %2021 = vmatpush1.msra.mxu0 0.0
  %2022 = vmatprep.subr.mxu0 0.0
  %2023 = vmatpush1.msra.mxu0 0.0
  %2024 = vmatprep.subr.mxu0 0.0
  %2025 = vmatpush1.msra.mxu0 0.0
  %2026 = vmatprep.subr.mxu0 0.0
  %2027 = vmatpush1.msra.mxu0 0.0
  %2028 = vmatprep.subr.mxu0 0.0
  %2029 = vmatpush1.msra.mxu0 0.0
  %2030 = vmatprep.subr.mxu0 0.0
  %2031 = vmatpush1.msra.mxu0 0.0
  %2032 = vmatprep.subr.mxu0 0.0
  %2033 = vmatpush1.msra.mxu0 0.0
  %2034 = vmatprep.mubr.f32.mxu0 0.0
  %2035 = vmatmul.mubr.f32.gmra.mrb[0].mxu0 %v1827
  %v2036 = vpop.f32.mrb[0].mxu0
  %v2037 = vadd.f32 0.0, %v2036
  %v2038 = vpop.f32.mrb[0].mxu0
  %v2039 = vadd.f32 0.0, %v2038
  %2040 = vdwg.mxu0
  %v2041 = vadd.f32 %v1831, %v1966
  %v2042 = vadd.f32 %v1832, %v1968
  %v2043 = vadd.f32 %v1833, %v2037
  %v2044 = vadd.f32 %v1834, %v2039
  %v2045 = vxor.u32 %v2041, 2147483648
  %v2046 = vmul.f32 %v2045, 1.442695
  %v2047 = vpow.pop %v2046
  %v2048 = vadd.f32 %v2047, 1.0
  %v2049 = vrcp.pop %v2048
  %v2050 = vmul.f32 1.0, %v2049
  %v2051 = vxor.u32 %v2042, 2147483648
  %v2052 = vmul.f32 %v2051, 1.442695
  %v2053 = vpow.pop %v2052
  %v2054 = vadd.f32 %v2053, 1.0
  %v2055 = vrcp.pop %v2054
  %v2056 = vmul.f32 1.0, %v2055
  %v2057 = vtanh.pop %v2043
  %v2058 = vxor.u32 %v2044, 2147483648
  %v2059 = vmul.f32 %v2058, 1.442695
  %v2060 = vpow.pop %v2059
  %v2061 = vadd.f32 %v2060, 1.0
  %v2062 = vrcp.pop %v2061
  %v2063 = vmul.f32 1.0, %v2062
  %v2064 = vmul.f32 %v2056, %v1825
  %v2065 = vmul.f32 %v2050, %v2057
  %v2066 = vadd.f32 %v2064, %v2065
  %v2067 = vtanh.pop %v2066
  %v2068 = vmul.f32 %v2063, %v2067
  %s2069 = scalar_lea.vmem [#allocation3], 48
  %2070 = vst [vmem:[%s2069] sm:$0xff] %v2068
  %s2071 = scalar_lea.vmem [#allocation2], 224
  %v2072 = vld [vmem:[%s2071] sm:$0xff]
  %v2073 = vld [vmem:[%s2071 + $0x8] sm:$0xff]
  %v2074 = vld [vmem:[%s2071 + $0x10] sm:$0xff]
  %v2075 = vld [vmem:[%s2071 + $0x18] sm:$0xff]
  %v2076 = vld [vmem:[%s2] sm:$0xff]
  %v2077 = vld [vmem:[%s2 + $0x8] sm:$0xff]
  %v2078 = vld [vmem:[%s2 + $0x10] sm:$0xff]
  %v2079 = vld [vmem:[%s2 + $0x18] sm:$0xff]
  %v2080 = vld [vmem:[%s2 + $0x20] sm:$0xff]
  %v2081 = vld [vmem:[%s2 + $0x28] sm:$0xff]
  %v2082 = vld [vmem:[%s2 + $0x30] sm:$0xff]
  %v2083 = vld [vmem:[%s2 + $0x38] sm:$0xff]
  %v2084 = vld [vmem:[%s2 + $0x40] sm:$0xff]
  %v2085 = vld [vmem:[%s2 + $0x48] sm:$0xff]
  %v2086 = vld [vmem:[%s2 + $0x50] sm:$0xff]
  %v2087 = vld [vmem:[%s2 + $0x58] sm:$0xff]
  %v2088 = vld [vmem:[%s2 + $0x60] sm:$0xff]
  %v2089 = vld [vmem:[%s2 + $0x68] sm:$0xff]
  %v2090 = vld [vmem:[%s2 + $0x70] sm:$0xff]
  %v2091 = vld [vmem:[%s2 + $0x78] sm:$0xff]
  %v2092 = vld [vmem:[%s2 + $0x80] sm:$0xff]
  %v2093 = vld [vmem:[%s2 + $0x88] sm:$0xff]
  %v2094 = vld [vmem:[%s2 + $0x90] sm:$0xff]
  %v2095 = vld [vmem:[%s2 + $0x98] sm:$0xff]
  %v2096 = vld [vmem:[%s2 + $0xa0] sm:$0xff]
  %v2097 = vld [vmem:[%s2 + $0xa8] sm:$0xff]
  %v2098 = vld [vmem:[%s2 + $0xb0] sm:$0xff]
  %v2099 = vld [vmem:[%s2 + $0xb8] sm:$0xff]
  %v2100 = vld [vmem:[%s2 + $0xc0] sm:$0xff]
  %v2101 = vld [vmem:[%s2 + $0xc8] sm:$0xff]
  %v2102 = vld [vmem:[%s2 + $0xd0] sm:$0xff]
  %v2103 = vld [vmem:[%s2 + $0xd8] sm:$0xff]
  %v2104 = vld [vmem:[%s2 + $0xe0] sm:$0xff]
  %v2105 = vld [vmem:[%s2 + $0xe8] sm:$0xff]
  %v2106 = vld [vmem:[%s2 + $0xf0] sm:$0xff]
  %v2107 = vld [vmem:[%s2 + $0xf8] sm:$0xff]
  %v2108 = vld [vmem:[%s2 + $0x100] sm:$0xff]
  %v2109 = vld [vmem:[%s2 + $0x108] sm:$0xff]
  %v2110 = vld [vmem:[%s2 + $0x110] sm:$0xff]
  %v2111 = vld [vmem:[%s2 + $0x118] sm:$0xff]
  %v2112 = vld [vmem:[%s2 + $0x120] sm:$0xff]
  %v2113 = vld [vmem:[%s2 + $0x128] sm:$0xff]
  %v2114 = vld [vmem:[%s2 + $0x130] sm:$0xff]
  %v2115 = vld [vmem:[%s2 + $0x138] sm:$0xff]
  %v2116 = vld [vmem:[%s2 + $0x140] sm:$0xff]
  %v2117 = vld [vmem:[%s2 + $0x148] sm:$0xff]
  %v2118 = vld [vmem:[%s2 + $0x150] sm:$0xff]
  %v2119 = vld [vmem:[%s2 + $0x158] sm:$0xff]
  %v2120 = vld [vmem:[%s2 + $0x160] sm:$0xff]
  %v2121 = vld [vmem:[%s2 + $0x168] sm:$0xff]
  %v2122 = vld [vmem:[%s2 + $0x170] sm:$0xff]
  %v2123 = vld [vmem:[%s2 + $0x178] sm:$0xff]
  %v2124 = vld [vmem:[%s2 + $0x180] sm:$0xff]
  %v2125 = vld [vmem:[%s2 + $0x188] sm:$0xff]
  %v2126 = vld [vmem:[%s2 + $0x190] sm:$0xff]
  %v2127 = vld [vmem:[%s2 + $0x198] sm:$0xff]
  %v2128 = vld [vmem:[%s2 + $0x1a0] sm:$0xff]
  %v2129 = vld [vmem:[%s2 + $0x1a8] sm:$0xff]
  %v2130 = vld [vmem:[%s2 + $0x1b0] sm:$0xff]
  %v2131 = vld [vmem:[%s2 + $0x1b8] sm:$0xff]
  %v2132 = vld [vmem:[%s2 + $0x1c0] sm:$0xff]
  %v2133 = vld [vmem:[%s2 + $0x1c8] sm:$0xff]
  %v2134 = vld [vmem:[%s2 + $0x1d0] sm:$0xff]
  %v2135 = vld [vmem:[%s2 + $0x1d8] sm:$0xff]
  %v2136 = vld [vmem:[%s2 + $0x1e0] sm:$0xff]
  %v2137 = vld [vmem:[%s2 + $0x1e8] sm:$0xff]
  %v2138 = vld [vmem:[%s2 + $0x1f0] sm:$0xff]
  %v2139 = vld [vmem:[%s2 + $0x1f8] sm:$0xff]
  %2140 = vmatprep.subr.mxu0 %v2077
  %2141 = vmatpush1.msra.mxu0 %v2076
  %2142 = vmatprep.subr.mxu0 %v2081
  %2143 = vmatpush1.msra.mxu0 %v2080
  %2144 = vmatprep.subr.mxu0 %v2085
  %2145 = vmatpush1.msra.mxu0 %v2084
  %2146 = vmatprep.subr.mxu0 %v2089
  %2147 = vmatpush1.msra.mxu0 %v2088
  %2148 = vmatprep.subr.mxu0 %v2093
  %2149 = vmatpush1.msra.mxu0 %v2092
  %2150 = vmatprep.subr.mxu0 %v2097
  %2151 = vmatpush1.msra.mxu0 %v2096
  %2152 = vmatprep.subr.mxu0 %v2101
  %2153 = vmatpush1.msra.mxu0 %v2100
  %2154 = vmatprep.subr.mxu0 %v2105
  %2155 = vmatpush1.msra.mxu0 %v2104
  %2156 = vmatprep.subr.mxu0 %v2109
  %2157 = vmatpush1.msra.mxu0 %v2108
  %2158 = vmatprep.subr.mxu0 %v2113
  %2159 = vmatpush1.msra.mxu0 %v2112
  %2160 = vmatprep.subr.mxu0 %v2117
  %2161 = vmatpush1.msra.mxu0 %v2116
  %2162 = vmatprep.subr.mxu0 %v2121
  %2163 = vmatpush1.msra.mxu0 %v2120
  %2164 = vmatprep.subr.mxu0 %v2125
  %2165 = vmatpush1.msra.mxu0 %v2124
  %2166 = vmatprep.subr.mxu0 %v2129
  %2167 = vmatpush1.msra.mxu0 %v2128
  %2168 = vmatprep.subr.mxu0 %v2133
  %2169 = vmatpush1.msra.mxu0 %v2132
  %2170 = vmatprep.subr.mxu0 %v2137
  %2171 = vmatpush1.msra.mxu0 %v2136
  %2172 = vmatprep.subr.mxu0 0.0
  %2173 = vmatpush1.msra.mxu0 0.0
  %2174 = vmatprep.subr.mxu0 0.0
  %2175 = vmatpush1.msra.mxu0 0.0
  %2176 = vmatprep.subr.mxu0 0.0
  %2177 = vmatpush1.msra.mxu0 0.0
  %2178 = vmatprep.subr.mxu0 0.0
  %2179 = vmatpush1.msra.mxu0 0.0
  %2180 = vmatprep.subr.mxu0 0.0
  %2181 = vmatpush1.msra.mxu0 0.0
  %2182 = vmatprep.subr.mxu0 0.0
  %2183 = vmatpush1.msra.mxu0 0.0
  %2184 = vmatprep.subr.mxu0 0.0
  %2185 = vmatpush1.msra.mxu0 0.0
  %2186 = vmatprep.subr.mxu0 0.0
  %2187 = vmatpush1.msra.mxu0 0.0
  %2188 = vmatprep.subr.mxu0 0.0
  %2189 = vmatpush1.msra.mxu0 0.0
  %2190 = vmatprep.subr.mxu0 0.0
  %2191 = vmatpush1.msra.mxu0 0.0
  %2192 = vmatprep.subr.mxu0 0.0
  %2193 = vmatpush1.msra.mxu0 0.0
  %2194 = vmatprep.subr.mxu0 0.0
  %2195 = vmatpush1.msra.mxu0 0.0
  %2196 = vmatprep.subr.mxu0 0.0
  %2197 = vmatpush1.msra.mxu0 0.0
  %2198 = vmatprep.subr.mxu0 0.0
  %2199 = vmatpush1.msra.mxu0 0.0
  %2200 = vmatprep.subr.mxu0 0.0
  %2201 = vmatpush1.msra.mxu0 0.0
  %2202 = vmatprep.subr.mxu0 0.0
  %2203 = vmatpush1.msra.mxu0 0.0
  %2204 = vmatprep.mubr.f32.mxu0 0.0
  %2205 = vmatmul.mubr.f32.gmra.mrb[0].mxu0 %v2068
  %v2206 = vpop.f32.mrb[0].mxu0
  %v2207 = vadd.f32 0.0, %v2206
  %v2208 = vpop.f32.mrb[0].mxu0
  %v2209 = vadd.f32 0.0, %v2208
  %2210 = vdwg.mxu0
  %2211 = vmatprep.subr.mxu0 %v2079
  %2212 = vmatpush1.msra.mxu0 %v2078
  %2213 = vmatprep.subr.mxu0 %v2083
  %2214 = vmatpush1.msra.mxu0 %v2082
  %2215 = vmatprep.subr.mxu0 %v2087
  %2216 = vmatpush1.msra.mxu0 %v2086
  %2217 = vmatprep.subr.mxu0 %v2091
  %2218 = vmatpush1.msra.mxu0 %v2090
  %2219 = vmatprep.subr.mxu0 %v2095
  %2220 = vmatpush1.msra.mxu0 %v2094
  %2221 = vmatprep.subr.mxu0 %v2099
  %2222 = vmatpush1.msra.mxu0 %v2098
  %2223 = vmatprep.subr.mxu0 %v2103
  %2224 = vmatpush1.msra.mxu0 %v2102
  %2225 = vmatprep.subr.mxu0 %v2107
  %2226 = vmatpush1.msra.mxu0 %v2106
  %2227 = vmatprep.subr.mxu0 %v2111
  %2228 = vmatpush1.msra.mxu0 %v2110
  %2229 = vmatprep.subr.mxu0 %v2115
  %2230 = vmatpush1.msra.mxu0 %v2114
  %2231 = vmatprep.subr.mxu0 %v2119
  %2232 = vmatpush1.msra.mxu0 %v2118
  %2233 = vmatprep.subr.mxu0 %v2123
  %2234 = vmatpush1.msra.mxu0 %v2122
  %2235 = vmatprep.subr.mxu0 %v2127
  %2236 = vmatpush1.msra.mxu0 %v2126
  %2237 = vmatprep.subr.mxu0 %v2131
  %2238 = vmatpush1.msra.mxu0 %v2130
  %2239 = vmatprep.subr.mxu0 %v2135
  %2240 = vmatpush1.msra.mxu0 %v2134
  %2241 = vmatprep.subr.mxu0 %v2139
  %2242 = vmatpush1.msra.mxu0 %v2138
  %2243 = vmatprep.subr.mxu0 0.0
  %2244 = vmatpush1.msra.mxu0 0.0
  %2245 = vmatprep.subr.mxu0 0.0
  %2246 = vmatpush1.msra.mxu0 0.0
  %2247 = vmatprep.subr.mxu0 0.0
  %2248 = vmatpush1.msra.mxu0 0.0
  %2249 = vmatprep.subr.mxu0 0.0
  %2250 = vmatpush1.msra.mxu0 0.0
  %2251 = vmatprep.subr.mxu0 0.0
  %2252 = vmatpush1.msra.mxu0 0.0
  %2253 = vmatprep.subr.mxu0 0.0
  %2254 = vmatpush1.msra.mxu0 0.0
  %2255 = vmatprep.subr.mxu0 0.0
  %2256 = vmatpush1.msra.mxu0 0.0
  %2257 = vmatprep.subr.mxu0 0.0
  %2258 = vmatpush1.msra.mxu0 0.0
  %2259 = vmatprep.subr.mxu0 0.0
  %2260 = vmatpush1.msra.mxu0 0.0
  %2261 = vmatprep.subr.mxu0 0.0
  %2262 = vmatpush1.msra.mxu0 0.0
  %2263 = vmatprep.subr.mxu0 0.0
  %2264 = vmatpush1.msra.mxu0 0.0
  %2265 = vmatprep.subr.mxu0 0.0
  %2266 = vmatpush1.msra.mxu0 0.0
  %2267 = vmatprep.subr.mxu0 0.0
  %2268 = vmatpush1.msra.mxu0 0.0
  %2269 = vmatprep.subr.mxu0 0.0
  %2270 = vmatpush1.msra.mxu0 0.0
  %2271 = vmatprep.subr.mxu0 0.0
  %2272 = vmatpush1.msra.mxu0 0.0
  %2273 = vmatprep.subr.mxu0 0.0
  %2274 = vmatpush1.msra.mxu0 0.0
  %2275 = vmatprep.mubr.f32.mxu0 0.0
  %2276 = vmatmul.mubr.f32.gmra.mrb[0].mxu0 %v2068
  %v2277 = vpop.f32.mrb[0].mxu0
  %v2278 = vadd.f32 0.0, %v2277
  %v2279 = vpop.f32.mrb[0].mxu0
  %v2280 = vadd.f32 0.0, %v2279
  %2281 = vdwg.mxu0
  %v2282 = vadd.f32 %v2072, %v2207
  %v2283 = vadd.f32 %v2073, %v2209
  %v2284 = vadd.f32 %v2074, %v2278
  %v2285 = vadd.f32 %v2075, %v2280
  %v2286 = vxor.u32 %v2282, 2147483648
  %v2287 = vmul.f32 %v2286, 1.442695
  %v2288 = vpow.pop %v2287
  %v2289 = vadd.f32 %v2288, 1.0
  %v2290 = vrcp.pop %v2289
  %v2291 = vmul.f32 1.0, %v2290
  %v2292 = vxor.u32 %v2283, 2147483648
  %v2293 = vmul.f32 %v2292, 1.442695
  %v2294 = vpow.pop %v2293
  %v2295 = vadd.f32 %v2294, 1.0
  %v2296 = vrcp.pop %v2295
  %v2297 = vmul.f32 1.0, %v2296
  %v2298 = vtanh.pop %v2284
  %v2299 = vxor.u32 %v2285, 2147483648
  %v2300 = vmul.f32 %v2299, 1.442695
  %v2301 = vpow.pop %v2300
  %v2302 = vadd.f32 %v2301, 1.0
  %v2303 = vrcp.pop %v2302
  %v2304 = vmul.f32 1.0, %v2303
  %v2305 = vmul.f32 %v2297, %v2066
  %v2306 = vmul.f32 %v2291, %v2298
  %v2307 = vadd.f32 %v2305, %v2306
  %v2308 = vtanh.pop %v2307
  %v2309 = vmul.f32 %v2304, %v2308
  %s2310 = scalar_lea.vmem [#allocation3], 56
  %2311 = vst [vmem:[%s2310] sm:$0xff] %v2309
  %2312 = vst [vmem:[%s9] sm:$0xff] %v2309
  %2313 = vst [vmem:[%s10] sm:$0xff] %v2307
  %v2314 = vld [vmem:[#allocation3] sm:$0xff]
  %v2315 = vld [vmem:[#allocation3 + $0x8] sm:$0xff]
  %v2316 = vld [vmem:[#allocation3 + $0x10] sm:$0xff]
  %v2317 = vld [vmem:[#allocation3 + $0x18] sm:$0xff]
  %v2318 = vld [vmem:[#allocation3 + $0x20] sm:$0xff]
  %v2319 = vld [vmem:[#allocation3 + $0x28] sm:$0xff]
  %v2320 = vld [vmem:[#allocation3 + $0x30] sm:$0xff]
  %v2321 = vld [vmem:[#allocation3 + $0x38] sm:$0xff]
  %v2322 = vld [vmem:[%s4] sm:$0xff]
  %v2323 = vld [vmem:[%s4 + $0x8] sm:$0xff]
  %v2324 = vld [vmem:[%s4 + $0x10] sm:$0xff]
  %v2325 = vld [vmem:[%s4 + $0x18] sm:$0xff]
  %v2326 = vld [vmem:[%s4 + $0x20] sm:$0xff]
  %v2327 = vld [vmem:[%s4 + $0x28] sm:$0xff]
  %v2328 = vld [vmem:[%s4 + $0x30] sm:$0xff]
  %v2329 = vld [vmem:[%s4 + $0x38] sm:$0xff]
  %v2330 = vld [vmem:[%s4 + $0x40] sm:$0xff]
  %v2331 = vld [vmem:[%s4 + $0x48] sm:$0xff]
  %v2332 = vld [vmem:[%s4 + $0x50] sm:$0xff]
  %v2333 = vld [vmem:[%s4 + $0x58] sm:$0xff]
  %v2334 = vld [vmem:[%s4 + $0x60] sm:$0xff]
  %v2335 = vld [vmem:[%s4 + $0x68] sm:$0xff]
  %v2336 = vld [vmem:[%s4 + $0x70] sm:$0xff]
  %v2337 = vld [vmem:[%s4 + $0x78] sm:$0xff]
  %v2338 = vld [vmem:[%s5] sm:$0x1]
  %v2340 = vlaneseq
  %v2341 = vshrl.u32 %v2340, 7
  %v2342 = vsub.s32 0, %v2341
  %v2343 = vrot.slane %v2338, %v2342
  %2345 = vmatprep.subr.mxu0 0.0
  %2346 = vmatpush1.msra.mxu0 %v2322
  %2347 = vmatprep.subr.mxu0 0.0
  %2348 = vmatpush1.msra.mxu0 %v2323
  %2349 = vmatprep.subr.mxu0 0.0
  %2350 = vmatpush1.msra.mxu0 %v2324
  %2351 = vmatprep.subr.mxu0 0.0
  %2352 = vmatpush1.msra.mxu0 %v2325
  %2353 = vmatprep.subr.mxu0 0.0
  %2354 = vmatpush1.msra.mxu0 %v2326
  %2355 = vmatprep.subr.mxu0 0.0
  %2356 = vmatpush1.msra.mxu0 %v2327
  %2357 = vmatprep.subr.mxu0 0.0
  %2358 = vmatpush1.msra.mxu0 %v2328
  %2359 = vmatprep.subr.mxu0 0.0
  %2360 = vmatpush1.msra.mxu0 %v2329
  %2361 = vmatprep.subr.mxu0 0.0
  %2362 = vmatpush1.msra.mxu0 %v2330
  %2363 = vmatprep.subr.mxu0 0.0
  %2364 = vmatpush1.msra.mxu0 %v2331
  %2365 = vmatprep.subr.mxu0 0.0
  %2366 = vmatpush1.msra.mxu0 %v2332
  %2367 = vmatprep.subr.mxu0 0.0
  %2368 = vmatpush1.msra.mxu0 %v2333
  %2369 = vmatprep.subr.mxu0 0.0
  %2370 = vmatpush1.msra.mxu0 %v2334
  %2371 = vmatprep.subr.mxu0 0.0
  %2372 = vmatpush1.msra.mxu0 %v2335
  %2373 = vmatprep.subr.mxu0 0.0
  %2374 = vmatpush1.msra.mxu0 %v2336
  %2375 = vmatprep.subr.mxu0 0.0
  %2376 = vmatpush1.msra.mxu0 %v2337
  %2377 = vmatprep.subr.mxu0 0.0
  %2378 = vmatpush1.msra.mxu0 0.0
  %2379 = vmatprep.subr.mxu0 0.0
  %2380 = vmatpush1.msra.mxu0 0.0
  %2381 = vmatprep.subr.mxu0 0.0
  %2382 = vmatpush1.msra.mxu0 0.0
  %2383 = vmatprep.subr.mxu0 0.0
  %2384 = vmatpush1.msra.mxu0 0.0
  %2385 = vmatprep.subr.mxu0 0.0
  %2386 = vmatpush1.msra.mxu0 0.0
  %2387 = vmatprep.subr.mxu0 0.0
  %2388 = vmatpush1.msra.mxu0 0.0
  %2389 = vmatprep.subr.mxu0 0.0
  %2390 = vmatpush1.msra.mxu0 0.0
  %2391 = vmatprep.subr.mxu0 0.0
  %2392 = vmatpush1.msra.mxu0 0.0
  %2393 = vmatprep.subr.mxu0 0.0
  %2394 = vmatpush1.msra.mxu0 0.0
  %2395 = vmatprep.subr.mxu0 0.0
  %2396 = vmatpush1.msra.mxu0 0.0
  %2397 = vmatprep.subr.mxu0 0.0
  %2398 = vmatpush1.msra.mxu0 0.0
  %2399 = vmatprep.subr.mxu0 0.0
  %2400 = vmatpush1.msra.mxu0 0.0
  %2401 = vmatprep.subr.mxu0 0.0
  %2402 = vmatpush1.msra.mxu0 0.0
  %2403 = vmatprep.subr.mxu0 0.0
  %2404 = vmatpush1.msra.mxu0 0.0
  %2405 = vmatprep.subr.mxu0 0.0
  %2406 = vmatpush1.msra.mxu0 0.0
  %2407 = vmatprep.subr.mxu0 0.0
  %2408 = vmatpush1.msra.mxu0 0.0
  %2409 = vmatprep.mubr.f32.mxu0 0.0
  %2410 = vmatmul.mubr.f32.gmra.mrb[0].mxu0 %v2314
  %v2411 = vpop.f32.mrb[0].mxu0
  %v2412 = vadd.f32 %v2343, %v2411
  %v2413 = vpop.f32.mrb[0].mxu0
  %2414 = vmatprep.mubr.f32.mxu0 0.0
  %2415 = vmatmul.mubr.f32.gmra.mrb[0].mxu0 %v2315
  %v2416 = vpop.f32.mrb[0].mxu0
  %v2417 = vadd.f32 %v2343, %v2416
  %v2418 = vpop.f32.mrb[0].mxu0
  %2419 = vmatprep.mubr.f32.mxu0 0.0
  %2420 = vmatmul.mubr.f32.gmra.mrb[0].mxu0 %v2316
  %v2421 = vpop.f32.mrb[0].mxu0
  %v2422 = vadd.f32 %v2343, %v2421
  %v2423 = vpop.f32.mrb[0].mxu0
  %2424 = vmatprep.mubr.f32.mxu0 0.0
  %2425 = vmatmul.mubr.f32.gmra.mrb[0].mxu0 %v2317
  %v2426 = vpop.f32.mrb[0].mxu0
  %v2427 = vadd.f32 %v2343, %v2426
  %v2428 = vpop.f32.mrb[0].mxu0
  %2429 = vmatprep.mubr.f32.mxu0 0.0
  %2430 = vmatmul.mubr.f32.gmra.mrb[0].mxu0 %v2318
  %v2431 = vpop.f32.mrb[0].mxu0
  %v2432 = vadd.f32 %v2343, %v2431
  %v2433 = vpop.f32.mrb[0].mxu0
  %2434 = vmatprep.mubr.f32.mxu0 0.0
  %2435 = vmatmul.mubr.f32.gmra.mrb[0].mxu0 %v2319
  %v2436 = vpop.f32.mrb[0].mxu0
  %v2437 = vadd.f32 %v2343, %v2436
  %v2438 = vpop.f32.mrb[0].mxu0
  %2439 = vmatprep.mubr.f32.mxu0 0.0
  %2440 = vmatmul.mubr.f32.gmra.mrb[0].mxu0 %v2320
  %v2441 = vpop.f32.mrb[0].mxu0
  %v2442 = vadd.f32 %v2343, %v2441
  %v2443 = vpop.f32.mrb[0].mxu0
  %2444 = vmatprep.mubr.f32.mxu0 0.0
  %2445 = vmatmul.mubr.f32.gmra.mrb[0].mxu0 %v2321
  %v2446 = vpop.f32.mrb[0].mxu0
  %v2447 = vadd.f32 %v2343, %v2446
  %v2448 = vpop.f32.mrb[0].mxu0
  %2449 = vdwg.mxu0
  %2450 = vst [vmem:[%s8] sm:$0xff] %v2412
  %2451 = vst [vmem:[%s8 + $0x8] sm:$0xff] %v2417
  %2452 = vst [vmem:[%s8 + $0x10] sm:$0xff] %v2422
  %2453 = vst [vmem:[%s8 + $0x18] sm:$0xff] %v2427
  %2454 = vst [vmem:[%s8 + $0x20] sm:$0xff] %v2432
  %2455 = vst [vmem:[%s8 + $0x28] sm:$0xff] %v2437
  %2456 = vst [vmem:[%s8 + $0x30] sm:$0xff] %v2442
  %2457 = vst [vmem:[%s8 + $0x38] sm:$0xff] %v2447
  // Predicated region
  $region34: #{char_decoder_forward.1} parent=0 // pred_check
    _
  $region35: #{char_decoder_forward.1} parent=0 // pred_check_branch
    %2459 = sbr.rel (0) target = $region37
  $region36: #{char_decoder_forward.1} parent=0 // pred_region
    _
  $region37: #{char_decoder_forward.1} parent=0 // pred_fallthru
    _
  // Predicated region
  $region38: #{char_decoder_forward.1} parent=0 // pred_check
    _
  $region39: #{char_decoder_forward.1} parent=0 // pred_check_branch
    %2461 = sbr.rel (0) target = $region41
  $region40: #{char_decoder_forward.1} parent=0 // pred_region
    _
  $region41: #{char_decoder_forward.1} parent=0 // pred_fallthru
    _
  // Predicated region
  $region42: #{char_decoder_forward.1} parent=0 // pred_check
    _
  $region43: #{char_decoder_forward.1} parent=0 // pred_check_branch
    %2463 = sbr.rel (0) target = $region45
  $region44: #{char_decoder_forward.1} parent=0 // pred_region
    _
  $region45: #{char_decoder_forward.1} parent=0 // pred_fallthru
    _
  // Predicated region
  $region46: #{char_decoder_forward.1} parent=0 // pred_check
    _
  $region47: #{char_decoder_forward.1} parent=0 // pred_check_branch
    %2465 = sbr.rel (0) target = $region49
  $region48: #{char_decoder_forward.1} parent=0 // pred_region
    _
  $region49: #{char_decoder_forward.1} parent=0 // pred_fallthru
    _
  // Predicated region
  $region50: #{char_decoder_forward.1} parent=0 // pred_check
    _
  $region51: #{char_decoder_forward.1} parent=0 // pred_check_branch
    %2467 = sbr.rel (0) target = $region53
  $region52: #{char_decoder_forward.1} parent=0 // pred_region
    _
  $region53: #{char_decoder_forward.1} parent=0 // pred_fallthru
    _
  // Predicated region
  $region54: #{char_decoder_forward.1} parent=0 // pred_check
    _
  $region55: #{char_decoder_forward.1} parent=0 // pred_check_branch
    %2469 = sbr.rel (0) target = $region57
  $region56: #{char_decoder_forward.1} parent=0 // pred_region
    _
  $region57: #{char_decoder_forward.1} parent=0 // pred_fallthru
    _

</llo_original>
